<compile_context>
chip_gen: v5e
topology: v5e:2x2
jax: 0.10.0
libtpu: 0.0.40
codegen_flags: <defaults>
</compile_context>

<pallas_src>
import functools

import jax
import jax.numpy as jnp
from jax import lax
from jax.experimental import pallas as pl
from jax.experimental.pallas import tpu as pltpu


def _blending_kernel(f1_ref, f2_ref, x_ref, w1_ref, b1_ref, p_ref, b2_ref,
                     out_ref, *, H, WC):
  hp = lax.Precision.HIGHEST

  # ---- 1x1 conv (block-diagonal form), lane-dense: (H, W*C) @ (W*C, W*C2) ----
  a = jnp.dot(x_ref[...], w1_ref[...],
              precision=hp, preferred_element_type=jnp.float32)
  a = jnp.maximum(a + b1_ref[...], 0.0)                       # (H, W*C2)

  # ---- 3x3 conv: horizontal taps + channel reduction + C-replication folded
  #      into one matmul over the lane axis. ----
  b_all = jnp.dot(a, p_ref[...],
                  precision=hp, preferred_element_type=jnp.float32)  # (H, 3*WC)

  top = b_all[:, 0 * WC:1 * WC]   # dy=0 taps: need rows from y-1
  mid = b_all[:, 1 * WC:2 * WC]   # dy=1 taps: aligned
  bot = b_all[:, 2 * WC:3 * WC]   # dy=2 taps: need rows from y+1

  zrow = jnp.zeros((1, WC), jnp.float32)
  z = (mid
       + jnp.concatenate([zrow, top[:H - 1, :]], axis=0)   # row y += top[y-1]
       + jnp.concatenate([bot[1:, :], zrow], axis=0))      # row y += bot[y+1]

  m = jax.nn.sigmoid(z + b2_ref[0])   # (H, W*C): per-pixel mask, replicated over C

  # ---- blend (full-width, lane-dense store) ----
  out_ref[...] = f1_ref[...] * m + (1.0 - m) * f2_ref[...]


def _fold_weights(w1, b1, w2, W, C, C2):
  """One-time (tiny, plain-JAX) re-layout of the conv weights.

  Returns:
    w1_blk:   (W*C, W*C2) block-diagonal 1x1-conv weight.
    b1_dense: (1, W*C2)   bias for the block-diagonal 1x1 conv.
    p:        (W*C2, 3*W*C) banded matrix: horizontal 3x3 taps x channel
              reduction x C-replication, one lane-block per dy.
  """
  w1 = w1.astype(jnp.float32)
  w2 = w2.astype(jnp.float32)

  # W1_blk[x*C + c, x'*C2 + c2] = w1[c, c2] if x == x' else 0
  eye_w = jnp.eye(W, dtype=jnp.float32)
  w1_blk = jnp.einsum("xy,cd->xcyd", eye_w, w1).reshape(W * C, W * C2)

  # b1_dense[0, x*C2 + c2] = b1[c2]
  b1_dense = jnp.tile(b1.reshape(1, C2).astype(jnp.float32), (1, W))

  # P[x''*C2 + c2, dy*W*C + x*C + c'] = w2[dy, x'' - x + 1, c2]  (0 if |x''-x|>1)
  xs = jnp.arange(W)
  blocks = []
  for dy in range(3):
    m_dy = jnp.zeros((W, C2, W), jnp.float32)
    for dx in range(3):
      sel = (xs[:, None] == (xs[None, :] + (dx - 1))).astype(jnp.float32)
      m_dy = m_dy + sel[:, None, :] * w2[dy, dx, :][None, :, None]
    blocks.append(
        jnp.broadcast_to(m_dy[:, :, :, None], (W, C2, W, C))
        .reshape(W * C2, W * C))
  p = jnp.concatenate(blocks, axis=1)                     # (W*C2, 3*W*C)
  return w1_blk, b1_dense, p


def blending(f1, f2, emap, w1, b1, w2, b2):
  B, H, W, C = f1.shape
  C2 = w1.shape[1]
  WC, WC2 = W * C, W * C2

  w1_blk, b1_dense, p = _fold_weights(w1, b1, w2, W, C, C2)
  b2_scalar = b2.reshape(-1).astype(jnp.float32)          # (1,) scalar in SMEM

  # Free contiguous reshapes to the lane-dense (B, H, W*C) layout.
  f1d = f1.reshape(B, H, WC)
  f2d = f2.reshape(B, H, WC)
  xd = emap.reshape(B, H, WC)

  kernel = functools.partial(_blending_kernel, H=H, WC=WC)
  frame_spec = pl.BlockSpec((None, H, WC), lambda b: (b, 0, 0))

  out = pl.pallas_call(
      kernel,
      out_shape=jax.ShapeDtypeStruct((B, H, WC), jnp.float32),
      grid=(B,),
      in_specs=[
          frame_spec,                                         # f1  (lane-dense)
          frame_spec,                                         # f2  (lane-dense)
          frame_spec,                                         # emap(lane-dense)
          pl.BlockSpec((WC, WC2), lambda b: (0, 0)),          # w1_blk (resident)
          pl.BlockSpec((1, WC2), lambda b: (0, 0)),           # b1_dense
          pl.BlockSpec((WC2, 3 * WC), lambda b: (0, 0)),      # p      (resident)
          pl.BlockSpec(memory_space=pltpu.MemorySpace.SMEM),  # b2 scalar
      ],
      out_specs=frame_spec,
      compiler_params=pltpu.CompilerParams(
          dimension_semantics=("parallel",),
          vmem_limit_bytes=32 * 1024 * 1024),
  )(f1d, f2d, xd, w1_blk, b1_dense, p, b2_scalar)

  return out.reshape(B, H, W, C)


def blending_reference(f1, f2, emap, w1, b1, w2, b2):
  """Pure-JAX (XLA) reference of the same math, NHWC."""
  C2 = w1.shape[1]
  a = jnp.einsum("bhwc,cd->bhwd", emap, w1,
                 precision=lax.Precision.HIGHEST) + b1.reshape(1, 1, 1, -1)
  a = jnp.maximum(a, 0.0)
  k = w2.reshape(3, 3, C2, 1)
  m = lax.conv_general_dilated(
      a, k, window_strides=(1, 1), padding="SAME",
      dimension_numbers=("NHWC", "HWIO", "NHWC"),
      precision=lax.Precision.HIGHEST) + b2.reshape(1, 1, 1, 1)
  m = jax.nn.sigmoid(m)
  return f1 * m + (1.0 - m) * f2


if __name__ == "__main__":
  B, H, W, C = 2, 16, 16, 8
  C2 = 2 * C

  key = jax.random.PRNGKey(0)
  kf1, kf2, ke, kw1, kb1, kw2, kb2 = jax.random.split(key, 7)

  f1 = jax.random.normal(kf1, (B, H, W, C), jnp.float32)
  f2 = jax.random.normal(kf2, (B, H, W, C), jnp.float32)
  emap = jax.random.normal(ke, (B, H, W, C), jnp.float32)

  # Deterministic synthetic parameters (PyTorch: Conv2d(C,2C,1), Conv2d(2C,1,3)).
  w1 = 0.1 * jax.random.normal(kw1, (C, C2), jnp.float32)     # (Cin, Cout) of 1x1
  b1 = 0.1 * jax.random.normal(kb1, (1, C2), jnp.float32)
  w2 = 0.1 * jax.random.normal(kw2, (3, 3, C2), jnp.float32)  # (kh, kw, Cin), Cout=1
  b2 = 0.1 * jax.random.normal(kb2, (1, 1), jnp.float32)

  out = blending(f1, f2, emap, w1, b1, w2, b2)
  out = jax.block_until_ready(out)

  ref = blending_reference(f1, f2, emap, w1, b1, w2, b2)
  assert out.shape == (B, H, W, C)
  err = jnp.max(jnp.abs(out - ref))
  assert jnp.allclose(out, ref, atol=1e-4, rtol=1e-4), f"max err = {err}"

  print("KERNEL_OK")
</pallas_src>

<mosaic_0001>
module attributes {stable_mosaic.version = 11 : i64} {
  func.func @_blending_kernel(%arg0: i32, %arg1: memref<1x16x128xf32, #tpu.memory_space<vmem>>, %arg2: memref<1x16x128xf32, #tpu.memory_space<vmem>>, %arg3: memref<1x16x128xf32, #tpu.memory_space<vmem>>, %arg4: memref<128x256xf32, #tpu.memory_space<vmem>>, %arg5: memref<1x256xf32, #tpu.memory_space<vmem>>, %arg6: memref<256x384xf32, #tpu.memory_space<vmem>>, %arg7: memref<1xf32, #tpu.memory_space<smem>>, %arg8: memref<1x16x128xf32, #tpu.memory_space<vmem>>) attributes {dimension_semantics = [#tpu.dimension_semantics<parallel>], iteration_bounds = array<i64: 2>, scalar_prefetch = 0 : i64, scratch_operands = 0 : i64, tpu.core_type = #tpu.core_type<tc>, window_params = [{transform_indices = @transform_0, window_bounds = array<i64: 1, 16, 128>}, {transform_indices = @transform_1, window_bounds = array<i64: 1, 16, 128>}, {transform_indices = @transform_2, window_bounds = array<i64: 1, 16, 128>}, {pipeline_mode = #tpu.pipeline_mode<synchronous>, transform_indices = @transform_3, window_bounds = array<i64: 128, 256>}, {pipeline_mode = #tpu.pipeline_mode<synchronous>, transform_indices = @transform_4, window_bounds = array<i64: 1, 256>}, {pipeline_mode = #tpu.pipeline_mode<synchronous>, transform_indices = @transform_5, window_bounds = array<i64: 256, 384>}, {transform_indices = @transform_6, window_bounds = array<i64: 1>}, {transform_indices = @transform_7, window_bounds = array<i64: 1, 16, 128>}]} {
    %c0 = arith.constant 0 : index
    %c0_0 = arith.constant 0 : index
    %c0_1 = arith.constant 0 : index
    %0 = vector.load %arg3[%c0, %c0_0, %c0_1] : memref<1x16x128xf32, #tpu.memory_space<vmem>>, vector<1x16x128xf32>
    %1 = vector.shape_cast %0 : vector<1x16x128xf32> to vector<16x128xf32>
    %c0_2 = arith.constant 0 : index
    %c0_3 = arith.constant 0 : index
    %2 = vector.load %arg4[%c0_2, %c0_3] : memref<128x256xf32, #tpu.memory_space<vmem>>, vector<128x256xf32>
    %cst = arith.constant dense<0.000000e+00> : vector<16x256xf32>
    %3 = tpu.matmul %1, %2, %cst {dimension_numbers = #tpu.dot_dimension_numbers<[1], [0], [0], [1], [0, 0, 1, 1], [], []>, precision = #tpu.contract_precision<fp32>} : vector<16x128xf32>, vector<128x256xf32>, vector<16x256xf32> -> vector<16x256xf32>
    %c0_4 = arith.constant 0 : index
    %c0_5 = arith.constant 0 : index
    %4 = vector.load %arg5[%c0_4, %c0_5] : memref<1x256xf32, #tpu.memory_space<vmem>>, vector<1x256xf32>
    %5 = vector.broadcast %4 : vector<1x256xf32> to vector<16x256xf32>
    %6 = arith.addf %3, %5 : vector<16x256xf32>
    %cst_6 = arith.constant 0.000000e+00 : f32
    %7 = vector.broadcast %cst_6 : f32 to vector<16x256xf32>
    %8 = arith.maximumf %6, %7 : vector<16x256xf32>
    %c0_7 = arith.constant 0 : index
    %c0_8 = arith.constant 0 : index
    %9 = vector.load %arg6[%c0_7, %c0_8] : memref<256x384xf32, #tpu.memory_space<vmem>>, vector<256x384xf32>
    %cst_9 = arith.constant dense<0.000000e+00> : vector<16x384xf32>
    %10 = tpu.matmul %8, %9, %cst_9 {dimension_numbers = #tpu.dot_dimension_numbers<[1], [0], [0], [1], [0, 0, 1, 1], [], []>, precision = #tpu.contract_precision<fp32>} : vector<16x256xf32>, vector<256x384xf32>, vector<16x384xf32> -> vector<16x384xf32>
    %11 = vector.extract_strided_slice %10 {offsets = [0, 0], sizes = [16, 128], strides = [1, 1]} : vector<16x384xf32> to vector<16x128xf32>
    %12 = vector.extract_strided_slice %10 {offsets = [0, 128], sizes = [16, 128], strides = [1, 1]} : vector<16x384xf32> to vector<16x128xf32>
    %13 = vector.extract_strided_slice %10 {offsets = [0, 256], sizes = [16, 128], strides = [1, 1]} : vector<16x384xf32> to vector<16x128xf32>
    %cst_10 = arith.constant 0.000000e+00 : f32
    %14 = vector.broadcast %cst_10 : f32 to vector<1x128xf32>
    %15 = vector.extract_strided_slice %11 {offsets = [0, 0], sizes = [15, 128], strides = [1, 1]} : vector<16x128xf32> to vector<15x128xf32>
    %16 = tpu.concatenate %14, %15 in 0 : vector<1x128xf32>, vector<15x128xf32> -> vector<16x128xf32>
    %17 = arith.addf %12, %16 : vector<16x128xf32>
    %18 = vector.extract_strided_slice %13 {offsets = [1, 0], sizes = [15, 128], strides = [1, 1]} : vector<16x128xf32> to vector<15x128xf32>
    %19 = tpu.concatenate %18, %14 in 0 : vector<15x128xf32>, vector<1x128xf32> -> vector<16x128xf32>
    %20 = arith.addf %17, %19 : vector<16x128xf32>
    %c0_11 = arith.constant 0 : index
    %21 = memref.load %arg7[%c0_11] : memref<1xf32, #tpu.memory_space<smem>>
    %22 = vector.broadcast %21 : f32 to vector<16x128xf32>
    %23 = arith.addf %20, %22 : vector<16x128xf32>
    %24 = arith.negf %23 : vector<16x128xf32>
    %25 = math.exp %24 : vector<16x128xf32>
    %cst_12 = arith.constant 1.000000e+00 : f32
    %26 = vector.broadcast %cst_12 : f32 to vector<16x128xf32>
    %27 = arith.addf %26, %25 : vector<16x128xf32>
    %28 = arith.divf %26, %27 : vector<16x128xf32>
    %c0_13 = arith.constant 0 : index
    %c0_14 = arith.constant 0 : index
    %c0_15 = arith.constant 0 : index
    %29 = vector.load %arg1[%c0_13, %c0_14, %c0_15] : memref<1x16x128xf32, #tpu.memory_space<vmem>>, vector<1x16x128xf32>
    %30 = vector.shape_cast %29 : vector<1x16x128xf32> to vector<16x128xf32>
    %31 = arith.mulf %30, %28 : vector<16x128xf32>
    %cst_16 = arith.constant 1.000000e+00 : f32
    %32 = vector.broadcast %cst_16 : f32 to vector<16x128xf32>
    %33 = arith.subf %32, %28 : vector<16x128xf32>
    %c0_17 = arith.constant 0 : index
    %c0_18 = arith.constant 0 : index
    %c0_19 = arith.constant 0 : index
    %34 = vector.load %arg2[%c0_17, %c0_18, %c0_19] : memref<1x16x128xf32, #tpu.memory_space<vmem>>, vector<1x16x128xf32>
    %35 = vector.shape_cast %34 : vector<1x16x128xf32> to vector<16x128xf32>
    %36 = arith.mulf %33, %35 : vector<16x128xf32>
    %37 = arith.addf %31, %36 : vector<16x128xf32>
    %c0_20 = arith.constant 0 : index
    %c0_21 = arith.constant 0 : index
    %c0_22 = arith.constant 0 : index
    %38 = vector.load %arg8[%c0_20, %c0_21, %c0_22] : memref<1x16x128xf32, #tpu.memory_space<vmem>>, vector<1x16x128xf32>
    %39 = vector.shape_cast %38 : vector<1x16x128xf32> to vector<16x128xf32>
    %40 = vector.shape_cast %37 : vector<16x128xf32> to vector<1x16x128xf32>
    tpu.vector_store %arg8[%c0_20, %c0_21, %c0_22], %40 {strides = array<i32>} : memref<1x16x128xf32, #tpu.memory_space<vmem>>, vector<1x16x128xf32>,
    return
  }
  func.func @transform_0(%arg0: i32) -> (i32, i32, i32) {
    %c0_i32 = arith.constant 0 : i32
    %c0_i32_0 = arith.constant 0 : i32
    %c0_i32_1 = arith.constant 0 : i32
    return %arg0, %c0_i32, %c0_i32_0 : i32, i32, i32
  }
  func.func @transform_1(%arg0: i32) -> (i32, i32, i32) {
    %c0_i32 = arith.constant 0 : i32
    %c0_i32_0 = arith.constant 0 : i32
    %c0_i32_1 = arith.constant 0 : i32
    return %arg0, %c0_i32, %c0_i32_0 : i32, i32, i32
  }
  func.func @transform_2(%arg0: i32) -> (i32, i32, i32) {
    %c0_i32 = arith.constant 0 : i32
    %c0_i32_0 = arith.constant 0 : i32
    %c0_i32_1 = arith.constant 0 : i32
    return %arg0, %c0_i32, %c0_i32_0 : i32, i32, i32
  }
  func.func @transform_3(%arg0: i32) -> (i32, i32) {
    %c0_i32 = arith.constant 0 : i32
    %c0_i32_0 = arith.constant 0 : i32
    %c0_i32_1 = arith.constant 0 : i32
    return %c0_i32, %c0_i32_0 : i32, i32
  }
  func.func @transform_4(%arg0: i32) -> (i32, i32) {
    %c0_i32 = arith.constant 0 : i32
    %c0_i32_0 = arith.constant 0 : i32
    %c0_i32_1 = arith.constant 0 : i32
    return %c0_i32, %c0_i32_0 : i32, i32
  }
  func.func @transform_5(%arg0: i32) -> (i32, i32) {
    %c0_i32 = arith.constant 0 : i32
    %c0_i32_0 = arith.constant 0 : i32
    %c0_i32_1 = arith.constant 0 : i32
    return %c0_i32, %c0_i32_0 : i32, i32
  }
  func.func @transform_6(%arg0: i32) -> i32 {
    %c0_i32 = arith.constant 0 : i32
    %c0_i32_0 = arith.constant 0 : i32
    return %c0_i32 : i32
  }
  func.func @transform_7(%arg0: i32) -> (i32, i32, i32) {
    %c0_i32 = arith.constant 0 : i32
    %c0_i32_0 = arith.constant 0 : i32
    %c0_i32_1 = arith.constant 0 : i32
    return %arg0, %c0_i32, %c0_i32_0 : i32, i32, i32
  }
}

</mosaic_0001>

<llo_original>
// kernel: tpu_custom_call.1
$region0: #{tpu_custom_call.1}
  #allocation0 [shape = 'u32[]', space=smem, size = 0x4, offset = 0x4, fixed_abs, tag = 'smem constant byte address 0x4 - core index']
  #allocation1 [shape = 'u32[72,128]{1,0:T(1,128)}', space=vmem, size = 0x9000, scoped, tag = 'internal scratch']
  #allocation2 [shape = 'f32[1]{0:T(128)S(6)}', space=smem, size = 0x200, scoped, tag = 'scoped memory for tpu_custom_call.1']
  %s0 = inlined_call_operand.hbm [shape: f32[2,16,128], index: 0, kind: input, shape index: {}]
  %s1 = inlined_call_operand.hbm [shape: f32[2,16,128], index: 1, kind: input, shape index: {}]
  %s2 = inlined_call_operand.hbm [shape: f32[2,16,128], index: 2, kind: input, shape index: {}]
  %s3 = inlined_call_operand.hbm [shape: f32[128,256], index: 3, kind: input, shape index: {}]
  %s4 = inlined_call_operand.vmem [shape: f32[1,256], index: 4, kind: input, shape index: {}]
  %s5 = inlined_call_operand.hbm [shape: f32[256,384], index: 5, kind: input, shape index: {}]
  %s6 = inlined_call_operand.<no memory space> [shape: f32[1], index: 6, kind: input, shape index: {}]
  %s7 = inlined_call_operand.hbm [shape: f32[2,16,128], index: 7, kind: output, shape index: {}]
  %s8 = sld [smem:[#allocation0]]
  $region81: #{tpu_custom_call.1} parent=0
    _
  %s10 = ssub.s32 1, %s8
  %s11 = scalar_select 0, %s10, %s8
  %12 = sst [smem:[#allocation2]] %s6
  $region1: #{tpu_custom_call.1} parent=0
    #allocation3 [shape = 'u8[16384]{0}', space=vmem, size = 0x4000, scoped, tag = 'input window, operand 0']
    #allocation4 [shape = 's32[2]{0}', space=sflag, size = 0x8, scoped, tag = 'scoped memory for tpu_custom_call.1']
    #allocation5 [shape = 's32[2]{0}', space=sflag, size = 0x8, scoped, tag = 'scoped memory for tpu_custom_call.1']
    #allocation6 [shape = 'u8[16384]{0}', space=vmem, size = 0x4000, scoped, tag = 'input window, operand 1']
    #allocation7 [shape = 's32[2]{0}', space=sflag, size = 0x8, scoped, tag = 'scoped memory for tpu_custom_call.1']
    #allocation8 [shape = 'u8[16384]{0}', space=vmem, size = 0x4000, scoped, tag = 'input window, operand 2']
    #allocation9 [shape = 'u8[131072]{0}', space=vmem, size = 0x20000, scoped, tag = 'input window, operand 3, single buffered']
    #allocation10 [shape = 's32[1]{0}', space=sflag, size = 0x4, scoped, tag = 'scoped memory for tpu_custom_call.1']
    #allocation11 [shape = 'u8[393216]{0}', space=vmem, size = 0x60000, scoped, tag = 'input window, operand 5, single buffered']
    #allocation12 [shape = 'u8[16384]{0}', space=vmem, size = 0x4000, scoped, tag = 'output window, operand 0']
    %13 = vsyncpa [#allocation4], 0
    %s14 = scalar_lea.sflag [#allocation4], 1
    %15 = vsyncpa %s14, 0
    %16 = vsyncpa [#allocation7], 0
    %s17 = scalar_lea.sflag [#allocation7], 1
    %18 = vsyncpa %s17, 0
    %19 = vsyncpa [#allocation10], 0
    %20 = vsyncpa [#allocation5], 0
    %s21 = scalar_lea.sflag [#allocation5], 1
    %22 = vsyncpa %s21, 0
    loop: start=0, step=1, limit=4
    $region2: #{tpu_custom_call.1} parent=1 // loop_pre_header
      _
    $region3: #{tpu_custom_call.1} parent=1 // loop_header
      %s24 = sphi 0, %s28
      %p25 = scmp.ge.s32.totalorder %s24, 4
      %s34 = sphi 0, %s36
      %s37 = sphi 0, %s34
      %s38 = sphi 0, %s37
      %s54 = sphi 0, %s38
      %s60 = sphi 0, %s62
      %s63 = sphi 0, %s60
      %s64 = sphi 0, %s63
      %s80 = sphi 0, %s64
      %s86 = sphi 0, %s88
      %s89 = sphi 0, %s86
      %s90 = sphi 0, %s89
      %s106 = sphi 0, %s90
      %s110 = sphi 0, %s110
      %s112 = sphi 0, %s110
      %s113 = sphi 0, %s112
      %s127 = sphi 0, %s113
      %s131 = sphi 0, %s131
      %s133 = sphi 0, %s131
      %s134 = sphi 0, %s133
      %s148 = sphi 0, %s134
      %s152 = sphi 0, %s152
      %s154 = sphi 0, %s152
      %s155 = sphi 0, %s154
      %s169 = sphi 0, %s155
      %s173 = sphi 0, %s173
      %s175 = sphi 0, %s173
      %s176 = sphi 0, %s175
      %s190 = sphi 0, %s176
      %s196 = sphi 0, %s198
      %s199 = sphi 0, %s196
      %s200 = sphi 0, %s199
      %s216 = sphi 0, %s200
    $region4: #{tpu_custom_call.1} parent=1 // loop_header_branch
      %27 = sbr.rel (%p25) target = $region8
    $region5: #{tpu_custom_call.1} parent=1 // loop_body
      %s29 = ssub.s32 %s24, 1
      %s30 = ssub.s32 %s24, 2
      %s31 = sadd.s32 %s24, 1
      %s32 = ssub.s32 %s24, %s31
      %p33 = scmp.eq.s32.totalorder %s32, 0
      %s35 = sadd.s32 %s34, 1
      %s36 = scalar_select %p33, %s34, %s35
      %p39 = pneg %p33
      %p40 = scmp.eq.s32.totalorder %s24, 1
      %p41 = por %p39, %p40
      %p42 = scmp.ne.s32.totalorder %s34, %s37
      %p43 = scmp.eq.s32.totalorder %s24, 0
      %p44 = por %p42, %p43
      %p45 = scmp.ne.s32.totalorder %s34, %s37
      %p46 = scmp.eq.s32.totalorder %s29, 1
      %p47 = por %p45, %p46
      %p48 = scmp.ne.s32.totalorder %s37, %s38
      %p49 = scmp.eq.s32.totalorder %s29, 0
      %p50 = por %p48, %p49
      %p51 = scmp.ne.s32.totalorder %s37, %s38
      %p52 = scmp.eq.s32.totalorder %s30, 1
      %p53 = por %p51, %p52
      %p55 = scmp.ne.s32.totalorder %s38, %s54
      %p56 = scmp.eq.s32.totalorder %s30, 0
      %p57 = por %p55, %p56
      %s58 = ssub.s32 %s24, %s31
      %p59 = scmp.eq.s32.totalorder %s58, 0
      %s61 = sadd.s32 %s60, 1
      %s62 = scalar_select %p59, %s60, %s61
      %p65 = pneg %p59
      %p66 = scmp.eq.s32.totalorder %s24, 1
      %p67 = por %p65, %p66
      %p68 = scmp.ne.s32.totalorder %s60, %s63
      %p69 = scmp.eq.s32.totalorder %s24, 0
      %p70 = por %p68, %p69
      %p71 = scmp.ne.s32.totalorder %s60, %s63
      %p72 = scmp.eq.s32.totalorder %s29, 1
      %p73 = por %p71, %p72
      %p74 = scmp.ne.s32.totalorder %s63, %s64
      %p75 = scmp.eq.s32.totalorder %s29, 0
      %p76 = por %p74, %p75
      %p77 = scmp.ne.s32.totalorder %s63, %s64
      %p78 = scmp.eq.s32.totalorder %s30, 1
      %p79 = por %p77, %p78
      %p81 = scmp.ne.s32.totalorder %s64, %s80
      %p82 = scmp.eq.s32.totalorder %s30, 0
      %p83 = por %p81, %p82
      %s84 = ssub.s32 %s24, %s31
      %p85 = scmp.eq.s32.totalorder %s84, 0
      %s87 = sadd.s32 %s86, 1
      %s88 = scalar_select %p85, %s86, %s87
      %p91 = pneg %p85
      %p92 = scmp.eq.s32.totalorder %s24, 1
      %p93 = por %p91, %p92
      %p94 = scmp.ne.s32.totalorder %s86, %s89
      %p95 = scmp.eq.s32.totalorder %s24, 0
      %p96 = por %p94, %p95
      %p97 = scmp.ne.s32.totalorder %s86, %s89
      %p98 = scmp.eq.s32.totalorder %s29, 1
      %p99 = por %p97, %p98
      %p100 = scmp.ne.s32.totalorder %s89, %s90
      %p101 = scmp.eq.s32.totalorder %s29, 0
      %p102 = por %p100, %p101
      %p103 = scmp.ne.s32.totalorder %s89, %s90
      %p104 = scmp.eq.s32.totalorder %s30, 1
      %p105 = por %p103, %p104
      %p107 = scmp.ne.s32.totalorder %s90, %s106
      %p108 = scmp.eq.s32.totalorder %s30, 0
      %p109 = por %p107, %p108
      %s111 = sadd.s32 %s110, 1
      %p114 = scmp.eq.s32.totalorder %s24, 1
      %p115 = scmp.ne.s32.totalorder %s110, %s112
      %p116 = scmp.eq.s32.totalorder %s24, 0
      %p117 = por %p115, %p116
      %p118 = scmp.ne.s32.totalorder %s110, %s112
      %p119 = scmp.eq.s32.totalorder %s29, 1
      %p120 = por %p118, %p119
      %p121 = scmp.ne.s32.totalorder %s112, %s113
      %p122 = scmp.eq.s32.totalorder %s29, 0
      %p123 = por %p121, %p122
      %p124 = scmp.ne.s32.totalorder %s112, %s113
      %p125 = scmp.eq.s32.totalorder %s30, 1
      %p126 = por %p124, %p125
      %p128 = scmp.ne.s32.totalorder %s113, %s127
      %p129 = scmp.eq.s32.totalorder %s30, 0
      %p130 = por %p128, %p129
      %s132 = sadd.s32 %s131, 1
      %p135 = scmp.eq.s32.totalorder %s24, 1
      %p136 = scmp.ne.s32.totalorder %s131, %s133
      %p137 = scmp.eq.s32.totalorder %s24, 0
      %p138 = por %p136, %p137
      %p139 = scmp.ne.s32.totalorder %s131, %s133
      %p140 = scmp.eq.s32.totalorder %s29, 1
      %p141 = por %p139, %p140
      %p142 = scmp.ne.s32.totalorder %s133, %s134
      %p143 = scmp.eq.s32.totalorder %s29, 0
      %p144 = por %p142, %p143
      %p145 = scmp.ne.s32.totalorder %s133, %s134
      %p146 = scmp.eq.s32.totalorder %s30, 1
      %p147 = por %p145, %p146
      %p149 = scmp.ne.s32.totalorder %s134, %s148
      %p150 = scmp.eq.s32.totalorder %s30, 0
      %p151 = por %p149, %p150
      %s153 = sadd.s32 %s152, 1
      %p156 = scmp.eq.s32.totalorder %s24, 1
      %p157 = scmp.ne.s32.totalorder %s152, %s154
      %p158 = scmp.eq.s32.totalorder %s24, 0
      %p159 = por %p157, %p158
      %p160 = scmp.ne.s32.totalorder %s152, %s154
      %p161 = scmp.eq.s32.totalorder %s29, 1
      %p162 = por %p160, %p161
      %p163 = scmp.ne.s32.totalorder %s154, %s155
      %p164 = scmp.eq.s32.totalorder %s29, 0
      %p165 = por %p163, %p164
      %p166 = scmp.ne.s32.totalorder %s154, %s155
      %p167 = scmp.eq.s32.totalorder %s30, 1
      %p168 = por %p166, %p167
      %p170 = scmp.ne.s32.totalorder %s155, %s169
      %p171 = scmp.eq.s32.totalorder %s30, 0
      %p172 = por %p170, %p171
      %s174 = sadd.s32 %s173, 1
      %p177 = scmp.eq.s32.totalorder %s24, 1
      %p178 = scmp.ne.s32.totalorder %s173, %s175
      %p179 = scmp.eq.s32.totalorder %s24, 0
      %p180 = por %p178, %p179
      %p181 = scmp.ne.s32.totalorder %s173, %s175
      %p182 = scmp.eq.s32.totalorder %s29, 1
      %p183 = por %p181, %p182
      %p184 = scmp.ne.s32.totalorder %s175, %s176
      %p185 = scmp.eq.s32.totalorder %s29, 0
      %p186 = por %p184, %p185
      %p187 = scmp.ne.s32.totalorder %s175, %s176
      %p188 = scmp.eq.s32.totalorder %s30, 1
      %p189 = por %p187, %p188
      %p191 = scmp.ne.s32.totalorder %s176, %s190
      %p192 = scmp.eq.s32.totalorder %s30, 0
      %p193 = por %p191, %p192
      %s194 = ssub.s32 %s24, %s31
      %p195 = scmp.eq.s32.totalorder %s194, 0
      %s197 = sadd.s32 %s196, 1
      %s198 = scalar_select %p195, %s196, %s197
      %p201 = pneg %p195
      %p202 = scmp.eq.s32.totalorder %s24, 1
      %p203 = por %p201, %p202
      %p204 = scmp.ne.s32.totalorder %s196, %s199
      %p205 = scmp.eq.s32.totalorder %s24, 0
      %p206 = por %p204, %p205
      %p207 = scmp.ne.s32.totalorder %s196, %s199
      %p208 = scmp.eq.s32.totalorder %s29, 1
      %p209 = por %p207, %p208
      %p210 = scmp.ne.s32.totalorder %s199, %s200
      %p211 = scmp.eq.s32.totalorder %s29, 0
      %p212 = por %p210, %p211
      %p213 = scmp.ne.s32.totalorder %s199, %s200
      %p214 = scmp.eq.s32.totalorder %s30, 1
      %p215 = por %p213, %p214
      %p217 = scmp.ne.s32.totalorder %s200, %s216
      %p218 = scmp.eq.s32.totalorder %s30, 0
      %p219 = por %p217, %p218
      %p220 = scmp.le.s32.totalorder 1, %s24
      %p221 = scmp.lt.s32.totalorder %s24, 3
      %p222 = pnand %p220, %p221
      %p223 = pneg %p222
      // Predicated region
      $region9: #{tpu_custom_call.1} parent=5 // pred_check
        _
      $region10: #{tpu_custom_call.1} parent=5 // pred_check_branch
        %225 = sbr.rel (%p222) target = $region12
      $region11: #{tpu_custom_call.1} parent=5 // pred_region
        %s226 = ssub.s32 %s24, 1
        // Predicated region
        $region13: #{tpu_custom_call.1} parent=11 // pred_check
          %p227 = pneg %p123
        $region14: #{tpu_custom_call.1} parent=11 // pred_check_branch
          %229 = sbr.rel (%p227) target = $region16
        $region15: #{tpu_custom_call.1} parent=11 // pred_region
          %231 = vsyncadd [#allocation10], 0
          %s232 = sshll.u32 %s3, 4
          %s233 = int_to_ptr.hbm [resolvable:$true] %s232
          %s234 = sshll.u32 [#allocation9], 4
          %s235 = int_to_ptr.vmem [resolvable:$true] %s234
          %240 = dma.hbm_to_vmem [thread:$0]  %s233, 4096, %s235, [#allocation10], 256, 256, 16
        $region16: #{tpu_custom_call.1} parent=11 // pred_fallthru
          _
        // Predicated region
        $region17: #{tpu_custom_call.1} parent=11 // pred_check
          %p241 = pneg %p144
        $region18: #{tpu_custom_call.1} parent=11 // pred_check_branch
          %243 = sbr.rel (%p241) target = $region20
        $region19: #{tpu_custom_call.1} parent=11 // pred_region
          _
        $region20: #{tpu_custom_call.1} parent=11 // pred_fallthru
          _
        // Predicated region
        $region21: #{tpu_custom_call.1} parent=11 // pred_check
          %p244 = pneg %p165
        $region22: #{tpu_custom_call.1} parent=11 // pred_check_branch
          %246 = sbr.rel (%p244) target = $region24
        $region23: #{tpu_custom_call.1} parent=11 // pred_region
          %248 = vsyncadd [#allocation10], 0
          %s249 = sshll.u32 %s5, 4
          %s250 = int_to_ptr.hbm [resolvable:$true] %s249
          %s251 = sshll.u32 [#allocation11], 4
          %s252 = int_to_ptr.vmem [resolvable:$true] %s251
          %257 = dma.hbm_to_vmem [thread:$0]  %s250, 12288, %s252, [#allocation10], 384, 384, 24
        $region24: #{tpu_custom_call.1} parent=11 // pred_fallthru
          _
        // Predicated region
        $region25: #{tpu_custom_call.1} parent=11 // pred_check
          %p258 = pneg %p186
        $region26: #{tpu_custom_call.1} parent=11 // pred_check_branch
          %260 = sbr.rel (%p258) target = $region28
        $region27: #{tpu_custom_call.1} parent=11 // pred_region
          _
        $region28: #{tpu_custom_call.1} parent=11 // pred_fallthru
          _
      $region12: #{tpu_custom_call.1} parent=5 // pred_fallthru
        _
      %p261 = scmp.lt.s32.totalorder %s24, 2
      // Predicated region
      $region29: #{tpu_custom_call.1} parent=5 // pred_check
        %p262 = pneg %p261
      $region30: #{tpu_custom_call.1} parent=5 // pred_check_branch
        %264 = sbr.rel (%p262) target = $region32
      $region31: #{tpu_custom_call.1} parent=5 // pred_region
        // Predicated region
        $region33: #{tpu_custom_call.1} parent=31 // pred_check
          %p265 = pneg %p44
        $region34: #{tpu_custom_call.1} parent=31 // pred_check_branch
          %267 = sbr.rel (%p265) target = $region36
        $region35: #{tpu_custom_call.1} parent=31 // pred_region
          %s268 = sand.u32 %s34, 1
          %s269 = scalar_lea.sflag [#allocation4], %s268
          %s270 = sand.u32 %s34, 1
          %s271 = smul.addr %s270, 16
          %s272 = scalar_lea.vmem [#allocation3], %s271
          %274 = vsyncadd %s269, 0
          %s275 = smul.addr %s24, 2
          %s276 = smul.addr %s275, 8
          %s277 = scalar_lea.hbm %s0, %s276
          %s278 = sshll.u32 %s277, 4
          %s279 = int_to_ptr.hbm [resolvable:$true] %s278
          %s280 = sshll.u32 %s272, 4
          %s281 = int_to_ptr.vmem [resolvable:$true] %s280
          %286 = dma.hbm_to_vmem [thread:$0]  %s279, 256, %s281, %s269, 128, 128, 8
        $region36: #{tpu_custom_call.1} parent=31 // pred_fallthru
          _
        // Predicated region
        $region37: #{tpu_custom_call.1} parent=31 // pred_check
          %p287 = pneg %p70
        $region38: #{tpu_custom_call.1} parent=31 // pred_check_branch
          %289 = sbr.rel (%p287) target = $region40
        $region39: #{tpu_custom_call.1} parent=31 // pred_region
          %s290 = sand.u32 %s24, 1
          %s291 = scalar_lea.sflag [#allocation7], %s290
          %s292 = sand.u32 %s60, 1
          %s293 = smul.addr %s292, 16
          %s294 = scalar_lea.vmem [#allocation6], %s293
          %296 = vsyncadd %s291, 0
          %s297 = smul.addr %s24, 2
          %s298 = smul.addr %s297, 8
          %s299 = scalar_lea.hbm %s1, %s298
          %s300 = sshll.u32 %s299, 4
          %s301 = int_to_ptr.hbm [resolvable:$true] %s300
          %s302 = sshll.u32 %s294, 4
          %s303 = int_to_ptr.vmem [resolvable:$true] %s302
          %308 = dma.hbm_to_vmem [thread:$0]  %s301, 256, %s303, %s291, 128, 128, 8
        $region40: #{tpu_custom_call.1} parent=31 // pred_fallthru
          _
        // Predicated region
        $region41: #{tpu_custom_call.1} parent=31 // pred_check
          %p309 = pneg %p96
        $region42: #{tpu_custom_call.1} parent=31 // pred_check_branch
          %311 = sbr.rel (%p309) target = $region44
        $region43: #{tpu_custom_call.1} parent=31 // pred_region
          %s312 = sand.u32 %s24, 1
          %s313 = scalar_lea.sflag [#allocation7], %s312
          %s314 = sand.u32 %s86, 1
          %s315 = smul.addr %s314, 16
          %s316 = scalar_lea.vmem [#allocation8], %s315
          %318 = vsyncadd %s313, 0
          %s319 = smul.addr %s24, 2
          %s320 = smul.addr %s319, 8
          %s321 = scalar_lea.hbm %s2, %s320
          %s322 = sshll.u32 %s321, 4
          %s323 = int_to_ptr.hbm [resolvable:$true] %s322
          %s324 = sshll.u32 %s316, 4
          %s325 = int_to_ptr.vmem [resolvable:$true] %s324
          %330 = dma.hbm_to_vmem [thread:$0]  %s323, 256, %s325, %s313, 128, 128, 8
        $region44: #{tpu_custom_call.1} parent=31 // pred_fallthru
          _
      $region32: #{tpu_custom_call.1} parent=5 // pred_fallthru
        _
      %p331 = scmp.le.s32.totalorder 1, %s24
      %p332 = scmp.lt.s32.totalorder %s24, 3
      %p333 = pnand %p331, %p332
      %p334 = pneg %p333
      // Predicated region
      $region45: #{tpu_custom_call.1} parent=5 // pred_check
        _
      $region46: #{tpu_custom_call.1} parent=5 // pred_check_branch
        %336 = sbr.rel (%p333) target = $region48
      $region47: #{tpu_custom_call.1} parent=5 // pred_region
        %s337 = ssub.s32 %s24, 1
        %s338 = sand.u32 %s37, 1
        %s339 = scalar_lea.sflag [#allocation4], %s338
        %s340 = sand.u32 %s37, 1
        %s341 = smul.addr %s340, 16
        %s342 = scalar_lea.vmem [#allocation3], %s341
        // Predicated region
        $region49: #{tpu_custom_call.1} parent=47 // pred_check
          %p343 = pneg %p50
        $region50: #{tpu_custom_call.1} parent=47 // pred_check_branch
          %345 = sbr.rel (%p343) target = $region52
        $region51: #{tpu_custom_call.1} parent=47 // pred_region
          %347 = dma.done %s339, 256
        $region52: #{tpu_custom_call.1} parent=47 // pred_fallthru
          _
        %s348 = sand.u32 %s29, 1
        %s349 = scalar_lea.sflag [#allocation7], %s348
        %s350 = sand.u32 %s63, 1
        %s351 = smul.addr %s350, 16
        %s352 = scalar_lea.vmem [#allocation6], %s351
        // Predicated region
        $region53: #{tpu_custom_call.1} parent=47 // pred_check
          %p353 = pneg %p76
        $region54: #{tpu_custom_call.1} parent=47 // pred_check_branch
          %355 = sbr.rel (%p353) target = $region56
        $region55: #{tpu_custom_call.1} parent=47 // pred_region
          %357 = dma.done %s349, 256
        $region56: #{tpu_custom_call.1} parent=47 // pred_fallthru
          _
        %s358 = sand.u32 %s29, 1
        %s359 = scalar_lea.sflag [#allocation7], %s358
        %s360 = sand.u32 %s89, 1
        %s361 = smul.addr %s360, 16
        %s362 = scalar_lea.vmem [#allocation8], %s361
        // Predicated region
        $region57: #{tpu_custom_call.1} parent=47 // pred_check
          %p363 = pneg %p102
        $region58: #{tpu_custom_call.1} parent=47 // pred_check_branch
          %365 = sbr.rel (%p363) target = $region60
        $region59: #{tpu_custom_call.1} parent=47 // pred_region
          %367 = dma.done %s359, 256
        $region60: #{tpu_custom_call.1} parent=47 // pred_fallthru
          _
        // Predicated region
        $region61: #{tpu_custom_call.1} parent=47 // pred_check
          %p368 = pneg %p123
        $region62: #{tpu_custom_call.1} parent=47 // pred_check_branch
          %370 = sbr.rel (%p368) target = $region64
        $region63: #{tpu_custom_call.1} parent=47 // pred_region
          %372 = dma.done [#allocation10], 4096
        $region64: #{tpu_custom_call.1} parent=47 // pred_fallthru
          _
        // Predicated region
        $region65: #{tpu_custom_call.1} parent=47 // pred_check
          %p373 = pneg %p165
        $region66: #{tpu_custom_call.1} parent=47 // pred_check_branch
          %375 = sbr.rel (%p373) target = $region68
        $region67: #{tpu_custom_call.1} parent=47 // pred_region
          %377 = dma.done [#allocation10], 12288
        $region68: #{tpu_custom_call.1} parent=47 // pred_fallthru
          _
        %s378 = sand.u32 %s37, 1
        %s379 = scalar_lea.sflag [#allocation4], %s378
        %s380 = sand.u32 %s37, 1
        %s381 = smul.addr %s380, 16
        %s382 = scalar_lea.vmem [#allocation3], %s381
        %p383 = pneg %p50
        %p384 = pneg %p47
        %s385 = sand.u32 %s29, 1
        %s386 = scalar_lea.sflag [#allocation7], %s385
        %s387 = sand.u32 %s63, 1
        %s388 = smul.addr %s387, 16
        %s389 = scalar_lea.vmem [#allocation6], %s388
        %p390 = pneg %p76
        %p391 = pneg %p73
        %s392 = sand.u32 %s29, 1
        %s393 = scalar_lea.sflag [#allocation7], %s392
        %s394 = sand.u32 %s89, 1
        %s395 = smul.addr %s394, 16
        %s396 = scalar_lea.vmem [#allocation8], %s395
        %p397 = pneg %p102
        %p398 = pneg %p99
        %p399 = pneg %p123
        %p400 = pneg %p120
        %p401 = pneg %p144
        %p402 = pneg %p141
        %p403 = pneg %p165
        %p404 = pneg %p162
        %p405 = pneg %p186
        %p406 = pneg %p183
        %p407 = pneg %p212
        %p408 = pneg %p209
        %s409 = sand.u32 %s199, 1
        %s410 = scalar_lea.sflag [#allocation5], %s409
        %s411 = sand.u32 %s199, 1
        %s412 = smul.addr %s411, 16
        %s413 = scalar_lea.vmem [#allocation12], %s412
        %v414 = vld [vmem:[%s362] sm:$0xff]
        %v415 = vld [vmem:[%s362 + $0x8] sm:$0xff]
        %v416 = vld [vmem:[#allocation9] sm:$0xff]
        %v417 = vld [vmem:[#allocation9 + $0x8] sm:$0xff]
        %v418 = vld [vmem:[#allocation9 + $0x10] sm:$0xff]
        %v419 = vld [vmem:[#allocation9 + $0x18] sm:$0xff]
        %v420 = vld [vmem:[#allocation9 + $0x20] sm:$0xff]
        %v421 = vld [vmem:[#allocation9 + $0x28] sm:$0xff]
        %v422 = vld [vmem:[#allocation9 + $0x30] sm:$0xff]
        %v423 = vld [vmem:[#allocation9 + $0x38] sm:$0xff]
        %v424 = vld [vmem:[#allocation9 + $0x40] sm:$0xff]
        %v425 = vld [vmem:[#allocation9 + $0x48] sm:$0xff]
        %v426 = vld [vmem:[#allocation9 + $0x50] sm:$0xff]
        %v427 = vld [vmem:[#allocation9 + $0x58] sm:$0xff]
        %v428 = vld [vmem:[#allocation9 + $0x60] sm:$0xff]
        %v429 = vld [vmem:[#allocation9 + $0x68] sm:$0xff]
        %v430 = vld [vmem:[#allocation9 + $0x70] sm:$0xff]
        %v431 = vld [vmem:[#allocation9 + $0x78] sm:$0xff]
        %v432 = vld [vmem:[#allocation9 + $0x80] sm:$0xff]
        %v433 = vld [vmem:[#allocation9 + $0x88] sm:$0xff]
        %v434 = vld [vmem:[#allocation9 + $0x90] sm:$0xff]
        %v435 = vld [vmem:[#allocation9 + $0x98] sm:$0xff]
        %v436 = vld [vmem:[#allocation9 + $0xa0] sm:$0xff]
        %v437 = vld [vmem:[#allocation9 + $0xa8] sm:$0xff]
        %v438 = vld [vmem:[#allocation9 + $0xb0] sm:$0xff]
        %v439 = vld [vmem:[#allocation9 + $0xb8] sm:$0xff]
        %v440 = vld [vmem:[#allocation9 + $0xc0] sm:$0xff]
        %v441 = vld [vmem:[#allocation9 + $0xc8] sm:$0xff]
        %v442 = vld [vmem:[#allocation9 + $0xd0] sm:$0xff]
        %v443 = vld [vmem:[#allocation9 + $0xd8] sm:$0xff]
        %v444 = vld [vmem:[#allocation9 + $0xe0] sm:$0xff]
        %v445 = vld [vmem:[#allocation9 + $0xe8] sm:$0xff]
        %v446 = vld [vmem:[#allocation9 + $0xf0] sm:$0xff]
        %v447 = vld [vmem:[#allocation9 + $0xf8] sm:$0xff]
        %v448 = vld [vmem:[%s4] sm:$0x3]
        %v450 = vperm.slane %v448, 0
        %v451 = vperm.slane %v448, 1
        %v454 = vand.u32 %v446, 4294901760
        %455 = vmatpush.msra.mxu0 %v454
        %v456 = vand.u32 %v444, 4294901760
        %457 = vmatpush.msra.mxu0 %v456
        %v458 = vand.u32 %v442, 4294901760
        %459 = vmatpush.msra.mxu0 %v458
        %v460 = vand.u32 %v440, 4294901760
        %461 = vmatpush.msra.mxu0 %v460
        %v462 = vand.u32 %v438, 4294901760
        %463 = vmatpush.msra.mxu0 %v462
        %v464 = vand.u32 %v436, 4294901760
        %465 = vmatpush.msra.mxu0 %v464
        %v466 = vand.u32 %v434, 4294901760
        %467 = vmatpush.msra.mxu0 %v466
        %v468 = vand.u32 %v432, 4294901760
        %469 = vmatpush.msra.mxu0 %v468
        %v470 = vand.u32 %v430, 4294901760
        %471 = vmatpush.msra.mxu0 %v470
        %v472 = vand.u32 %v428, 4294901760
        %473 = vmatpush.msra.mxu0 %v472
        %v474 = vand.u32 %v426, 4294901760
        %475 = vmatpush.msra.mxu0 %v474
        %v476 = vand.u32 %v424, 4294901760
        %477 = vmatpush.msra.mxu0 %v476
        %v478 = vand.u32 %v422, 4294901760
        %479 = vmatpush.msra.mxu0 %v478
        %v480 = vand.u32 %v420, 4294901760
        %481 = vmatpush.msra.mxu0 %v480
        %v482 = vand.u32 %v418, 4294901760
        %483 = vmatpush.msra.mxu0 %v482
        %v484 = vand.u32 %v416, 4294901760
        %485 = vmatpush.msra.mxu0 %v484
        %v486 = vand.u32 %v414, 4294901760
        %v487 = vsub.f32 %v414, %v486
        %v488 = vand.u32 %v487, 4294901760
        %v489 = vsub.f32 %v487, %v488
        %v490 = vand.u32 %v489, 4294901760
        %491 = vmatmul.f32.gmra.mxu0 %v490
        %v492 = vpop.f32.mrf.mxu0
        %v493 = vadd.f32 %v450, %v492
        %v494 = vand.u32 %v415, 4294901760
        %v495 = vsub.f32 %v415, %v494
        %v496 = vand.u32 %v495, 4294901760
        %v497 = vsub.f32 %v495, %v496
        %v498 = vand.u32 %v497, 4294901760
        %499 = vmatmul.f32.gmra.mxu0 %v498
        %v500 = vpop.f32.mrf.mxu0
        %v501 = vadd.f32 %v450, %v500
        %502 = vdwg.mxu0
        %v503 = vand.u32 %v446, 4294901760
        %v504 = vsub.f32 %v446, %v503
        %v505 = vand.u32 %v504, 4294901760
        %v506 = vsub.f32 %v504, %v505
        %v507 = vand.u32 %v506, 4294901760
        %508 = vmatpush.msra.mxu0 %v507
        %v509 = vand.u32 %v444, 4294901760
        %v510 = vsub.f32 %v444, %v509
        %v511 = vand.u32 %v510, 4294901760
        %v512 = vsub.f32 %v510, %v511
        %v513 = vand.u32 %v512, 4294901760
        %514 = vmatpush.msra.mxu0 %v513
        %v515 = vand.u32 %v442, 4294901760
        %v516 = vsub.f32 %v442, %v515
        %v517 = vand.u32 %v516, 4294901760
        %v518 = vsub.f32 %v516, %v517
        %v519 = vand.u32 %v518, 4294901760
        %520 = vmatpush.msra.mxu0 %v519
        %v521 = vand.u32 %v440, 4294901760
        %v522 = vsub.f32 %v440, %v521
        %v523 = vand.u32 %v522, 4294901760
        %v524 = vsub.f32 %v522, %v523
        %v525 = vand.u32 %v524, 4294901760
        %526 = vmatpush.msra.mxu0 %v525
        %v527 = vand.u32 %v438, 4294901760
        %v528 = vsub.f32 %v438, %v527
        %v529 = vand.u32 %v528, 4294901760
        %v530 = vsub.f32 %v528, %v529
        %v531 = vand.u32 %v530, 4294901760
        %532 = vmatpush.msra.mxu0 %v531
        %v533 = vand.u32 %v436, 4294901760
        %v534 = vsub.f32 %v436, %v533
        %v535 = vand.u32 %v534, 4294901760
        %v536 = vsub.f32 %v534, %v535
        %v537 = vand.u32 %v536, 4294901760
        %538 = vmatpush.msra.mxu0 %v537
        %v539 = vand.u32 %v434, 4294901760
        %v540 = vsub.f32 %v434, %v539
        %v541 = vand.u32 %v540, 4294901760
        %v542 = vsub.f32 %v540, %v541
        %v543 = vand.u32 %v542, 4294901760
        %544 = vmatpush.msra.mxu0 %v543
        %v545 = vand.u32 %v432, 4294901760
        %v546 = vsub.f32 %v432, %v545
        %v547 = vand.u32 %v546, 4294901760
        %v548 = vsub.f32 %v546, %v547
        %v549 = vand.u32 %v548, 4294901760
        %550 = vmatpush.msra.mxu0 %v549
        %v551 = vand.u32 %v430, 4294901760
        %v552 = vsub.f32 %v430, %v551
        %v553 = vand.u32 %v552, 4294901760
        %v554 = vsub.f32 %v552, %v553
        %v555 = vand.u32 %v554, 4294901760
        %556 = vmatpush.msra.mxu0 %v555
        %v557 = vand.u32 %v428, 4294901760
        %v558 = vsub.f32 %v428, %v557
        %v559 = vand.u32 %v558, 4294901760
        %v560 = vsub.f32 %v558, %v559
        %v561 = vand.u32 %v560, 4294901760
        %562 = vmatpush.msra.mxu0 %v561
        %v563 = vand.u32 %v426, 4294901760
        %v564 = vsub.f32 %v426, %v563
        %v565 = vand.u32 %v564, 4294901760
        %v566 = vsub.f32 %v564, %v565
        %v567 = vand.u32 %v566, 4294901760
        %568 = vmatpush.msra.mxu0 %v567
        %v569 = vand.u32 %v424, 4294901760
        %v570 = vsub.f32 %v424, %v569
        %v571 = vand.u32 %v570, 4294901760
        %v572 = vsub.f32 %v570, %v571
        %v573 = vand.u32 %v572, 4294901760
        %574 = vmatpush.msra.mxu0 %v573
        %v575 = vand.u32 %v422, 4294901760
        %v576 = vsub.f32 %v422, %v575
        %v577 = vand.u32 %v576, 4294901760
        %v578 = vsub.f32 %v576, %v577
        %v579 = vand.u32 %v578, 4294901760
        %580 = vmatpush.msra.mxu0 %v579
        %v581 = vand.u32 %v420, 4294901760
        %v582 = vsub.f32 %v420, %v581
        %v583 = vand.u32 %v582, 4294901760
        %v584 = vsub.f32 %v582, %v583
        %v585 = vand.u32 %v584, 4294901760
        %586 = vmatpush.msra.mxu0 %v585
        %v587 = vand.u32 %v418, 4294901760
        %v588 = vsub.f32 %v418, %v587
        %v589 = vand.u32 %v588, 4294901760
        %v590 = vsub.f32 %v588, %v589
        %v591 = vand.u32 %v590, 4294901760
        %592 = vmatpush.msra.mxu0 %v591
        %v593 = vand.u32 %v416, 4294901760
        %v594 = vsub.f32 %v416, %v593
        %v595 = vand.u32 %v594, 4294901760
        %v596 = vsub.f32 %v594, %v595
        %v597 = vand.u32 %v596, 4294901760
        %598 = vmatpush.msra.mxu0 %v597
        %v599 = vand.u32 %v414, 4294901760
        %600 = vmatmul.f32.gmra.mxu0 %v599
        %v601 = vpop.f32.mrf.mxu0
        %v602 = vadd.f32 %v493, %v601
        %v603 = vand.u32 %v415, 4294901760
        %604 = vmatmul.f32.gmra.mxu0 %v603
        %v605 = vpop.f32.mrf.mxu0
        %v606 = vadd.f32 %v501, %v605
        %607 = vdwg.mxu0
        %v608 = vand.u32 %v446, 4294901760
        %v609 = vsub.f32 %v446, %v608
        %610 = vmatpush.msra.mxu0 %v609
        %v611 = vand.u32 %v444, 4294901760
        %v612 = vsub.f32 %v444, %v611
        %613 = vmatpush.msra.mxu0 %v612
        %v614 = vand.u32 %v442, 4294901760
        %v615 = vsub.f32 %v442, %v614
        %616 = vmatpush.msra.mxu0 %v615
        %v617 = vand.u32 %v440, 4294901760
        %v618 = vsub.f32 %v440, %v617
        %619 = vmatpush.msra.mxu0 %v618
        %v620 = vand.u32 %v438, 4294901760
        %v621 = vsub.f32 %v438, %v620
        %622 = vmatpush.msra.mxu0 %v621
        %v623 = vand.u32 %v436, 4294901760
        %v624 = vsub.f32 %v436, %v623
        %625 = vmatpush.msra.mxu0 %v624
        %v626 = vand.u32 %v434, 4294901760
        %v627 = vsub.f32 %v434, %v626
        %628 = vmatpush.msra.mxu0 %v627
        %v629 = vand.u32 %v432, 4294901760
        %v630 = vsub.f32 %v432, %v629
        %631 = vmatpush.msra.mxu0 %v630
        %v632 = vand.u32 %v430, 4294901760
        %v633 = vsub.f32 %v430, %v632
        %634 = vmatpush.msra.mxu0 %v633
        %v635 = vand.u32 %v428, 4294901760
        %v636 = vsub.f32 %v428, %v635
        %637 = vmatpush.msra.mxu0 %v636
        %v638 = vand.u32 %v426, 4294901760
        %v639 = vsub.f32 %v426, %v638
        %640 = vmatpush.msra.mxu0 %v639
        %v641 = vand.u32 %v424, 4294901760
        %v642 = vsub.f32 %v424, %v641
        %643 = vmatpush.msra.mxu0 %v642
        %v644 = vand.u32 %v422, 4294901760
        %v645 = vsub.f32 %v422, %v644
        %646 = vmatpush.msra.mxu0 %v645
        %v647 = vand.u32 %v420, 4294901760
        %v648 = vsub.f32 %v420, %v647
        %649 = vmatpush.msra.mxu0 %v648
        %v650 = vand.u32 %v418, 4294901760
        %v651 = vsub.f32 %v418, %v650
        %652 = vmatpush.msra.mxu0 %v651
        %v653 = vand.u32 %v416, 4294901760
        %v654 = vsub.f32 %v416, %v653
        %655 = vmatpush.msra.mxu0 %v654
        %v656 = vand.u32 %v414, 4294901760
        %v657 = vsub.f32 %v414, %v656
        %658 = vmatmul.f32.gmra.mxu0 %v657
        %v659 = vpop.f32.mrf.mxu0
        %v660 = vadd.f32 %v602, %v659
        %v661 = vand.u32 %v415, 4294901760
        %v662 = vsub.f32 %v415, %v661
        %663 = vmatmul.f32.gmra.mxu0 %v662
        %v664 = vpop.f32.mrf.mxu0
        %v665 = vadd.f32 %v606, %v664
        %666 = vdwg.mxu0
        %v667 = vand.u32 %v446, 4294901760
        %668 = vmatpush.msra.mxu0 %v667
        %v669 = vand.u32 %v444, 4294901760
        %670 = vmatpush.msra.mxu0 %v669
        %v671 = vand.u32 %v442, 4294901760
        %672 = vmatpush.msra.mxu0 %v671
        %v673 = vand.u32 %v440, 4294901760
        %674 = vmatpush.msra.mxu0 %v673
        %v675 = vand.u32 %v438, 4294901760
        %676 = vmatpush.msra.mxu0 %v675
        %v677 = vand.u32 %v436, 4294901760
        %678 = vmatpush.msra.mxu0 %v677
        %v679 = vand.u32 %v434, 4294901760
        %680 = vmatpush.msra.mxu0 %v679
        %v681 = vand.u32 %v432, 4294901760
        %682 = vmatpush.msra.mxu0 %v681
        %v683 = vand.u32 %v430, 4294901760
        %684 = vmatpush.msra.mxu0 %v683
        %v685 = vand.u32 %v428, 4294901760
        %686 = vmatpush.msra.mxu0 %v685
        %v687 = vand.u32 %v426, 4294901760
        %688 = vmatpush.msra.mxu0 %v687
        %v689 = vand.u32 %v424, 4294901760
        %690 = vmatpush.msra.mxu0 %v689
        %v691 = vand.u32 %v422, 4294901760
        %692 = vmatpush.msra.mxu0 %v691
        %v693 = vand.u32 %v420, 4294901760
        %694 = vmatpush.msra.mxu0 %v693
        %v695 = vand.u32 %v418, 4294901760
        %696 = vmatpush.msra.mxu0 %v695
        %v697 = vand.u32 %v416, 4294901760
        %698 = vmatpush.msra.mxu0 %v697
        %v699 = vand.u32 %v414, 4294901760
        %v700 = vsub.f32 %v414, %v699
        %v701 = vand.u32 %v700, 4294901760
        %702 = vmatmul.f32.gmra.mxu0 %v701
        %v703 = vpop.f32.mrf.mxu0
        %v704 = vadd.f32 %v660, %v703
        %v705 = vand.u32 %v415, 4294901760
        %v706 = vsub.f32 %v415, %v705
        %v707 = vand.u32 %v706, 4294901760
        %708 = vmatmul.f32.gmra.mxu0 %v707
        %v709 = vpop.f32.mrf.mxu0
        %v710 = vadd.f32 %v665, %v709
        %711 = vdwg.mxu0
        %v712 = vand.u32 %v446, 4294901760
        %v713 = vsub.f32 %v446, %v712
        %v714 = vand.u32 %v713, 4294901760
        %715 = vmatpush.msra.mxu0 %v714
        %v716 = vand.u32 %v444, 4294901760
        %v717 = vsub.f32 %v444, %v716
        %v718 = vand.u32 %v717, 4294901760
        %719 = vmatpush.msra.mxu0 %v718
        %v720 = vand.u32 %v442, 4294901760
        %v721 = vsub.f32 %v442, %v720
        %v722 = vand.u32 %v721, 4294901760
        %723 = vmatpush.msra.mxu0 %v722
        %v724 = vand.u32 %v440, 4294901760
        %v725 = vsub.f32 %v440, %v724
        %v726 = vand.u32 %v725, 4294901760
        %727 = vmatpush.msra.mxu0 %v726
        %v728 = vand.u32 %v438, 4294901760
        %v729 = vsub.f32 %v438, %v728
        %v730 = vand.u32 %v729, 4294901760
        %731 = vmatpush.msra.mxu0 %v730
        %v732 = vand.u32 %v436, 4294901760
        %v733 = vsub.f32 %v436, %v732
        %v734 = vand.u32 %v733, 4294901760
        %735 = vmatpush.msra.mxu0 %v734
        %v736 = vand.u32 %v434, 4294901760
        %v737 = vsub.f32 %v434, %v736
        %v738 = vand.u32 %v737, 4294901760
        %739 = vmatpush.msra.mxu0 %v738
        %v740 = vand.u32 %v432, 4294901760
        %v741 = vsub.f32 %v432, %v740
        %v742 = vand.u32 %v741, 4294901760
        %743 = vmatpush.msra.mxu0 %v742
        %v744 = vand.u32 %v430, 4294901760
        %v745 = vsub.f32 %v430, %v744
        %v746 = vand.u32 %v745, 4294901760
        %747 = vmatpush.msra.mxu0 %v746
        %v748 = vand.u32 %v428, 4294901760
        %v749 = vsub.f32 %v428, %v748
        %v750 = vand.u32 %v749, 4294901760
        %751 = vmatpush.msra.mxu0 %v750
        %v752 = vand.u32 %v426, 4294901760
        %v753 = vsub.f32 %v426, %v752
        %v754 = vand.u32 %v753, 4294901760
        %755 = vmatpush.msra.mxu0 %v754
        %v756 = vand.u32 %v424, 4294901760
        %v757 = vsub.f32 %v424, %v756
        %v758 = vand.u32 %v757, 4294901760
        %759 = vmatpush.msra.mxu0 %v758
        %v760 = vand.u32 %v422, 4294901760
        %v761 = vsub.f32 %v422, %v760
        %v762 = vand.u32 %v761, 4294901760
        %763 = vmatpush.msra.mxu0 %v762
        %v764 = vand.u32 %v420, 4294901760
        %v765 = vsub.f32 %v420, %v764
        %v766 = vand.u32 %v765, 4294901760
        %767 = vmatpush.msra.mxu0 %v766
        %v768 = vand.u32 %v418, 4294901760
        %v769 = vsub.f32 %v418, %v768
        %v770 = vand.u32 %v769, 4294901760
        %771 = vmatpush.msra.mxu0 %v770
        %v772 = vand.u32 %v416, 4294901760
        %v773 = vsub.f32 %v416, %v772
        %v774 = vand.u32 %v773, 4294901760
        %775 = vmatpush.msra.mxu0 %v774
        %v776 = vand.u32 %v414, 4294901760
        %777 = vmatmul.f32.gmra.mxu0 %v776
        %v778 = vpop.f32.mrf.mxu0
        %v779 = vadd.f32 %v704, %v778
        %v780 = vand.u32 %v415, 4294901760
        %781 = vmatmul.f32.gmra.mxu0 %v780
        %v782 = vpop.f32.mrf.mxu0
        %v783 = vadd.f32 %v710, %v782
        %784 = vdwg.mxu0
        %v785 = vand.u32 %v446, 4294901760
        %786 = vmatpush.msra.mxu0 %v785
        %v787 = vand.u32 %v444, 4294901760
        %788 = vmatpush.msra.mxu0 %v787
        %v789 = vand.u32 %v442, 4294901760
        %790 = vmatpush.msra.mxu0 %v789
        %v791 = vand.u32 %v440, 4294901760
        %792 = vmatpush.msra.mxu0 %v791
        %v793 = vand.u32 %v438, 4294901760
        %794 = vmatpush.msra.mxu0 %v793
        %v795 = vand.u32 %v436, 4294901760
        %796 = vmatpush.msra.mxu0 %v795
        %v797 = vand.u32 %v434, 4294901760
        %798 = vmatpush.msra.mxu0 %v797
        %v799 = vand.u32 %v432, 4294901760
        %800 = vmatpush.msra.mxu0 %v799
        %v801 = vand.u32 %v430, 4294901760
        %802 = vmatpush.msra.mxu0 %v801
        %v803 = vand.u32 %v428, 4294901760
        %804 = vmatpush.msra.mxu0 %v803
        %v805 = vand.u32 %v426, 4294901760
        %806 = vmatpush.msra.mxu0 %v805
        %v807 = vand.u32 %v424, 4294901760
        %808 = vmatpush.msra.mxu0 %v807
        %v809 = vand.u32 %v422, 4294901760
        %810 = vmatpush.msra.mxu0 %v809
        %v811 = vand.u32 %v420, 4294901760
        %812 = vmatpush.msra.mxu0 %v811
        %v813 = vand.u32 %v418, 4294901760
        %814 = vmatpush.msra.mxu0 %v813
        %v815 = vand.u32 %v416, 4294901760
        %816 = vmatpush.msra.mxu0 %v815
        %v817 = vand.u32 %v414, 4294901760
        %818 = vmatmul.f32.gmra.mxu0 %v817
        %v819 = vpop.f32.mrf.mxu0
        %v820 = vadd.f32 %v779, %v819
        %v821 = vand.u32 %v415, 4294901760
        %822 = vmatmul.f32.gmra.mxu0 %v821
        %v823 = vpop.f32.mrf.mxu0
        %v824 = vadd.f32 %v783, %v823
        %825 = vdwg.mxu0
        %v826 = vand.u32 %v447, 4294901760
        %827 = vmatpush.msra.mxu0 %v826
        %v828 = vand.u32 %v445, 4294901760
        %829 = vmatpush.msra.mxu0 %v828
        %v830 = vand.u32 %v443, 4294901760
        %831 = vmatpush.msra.mxu0 %v830
        %v832 = vand.u32 %v441, 4294901760
        %833 = vmatpush.msra.mxu0 %v832
        %v834 = vand.u32 %v439, 4294901760
        %835 = vmatpush.msra.mxu0 %v834
        %v836 = vand.u32 %v437, 4294901760
        %837 = vmatpush.msra.mxu0 %v836
        %v838 = vand.u32 %v435, 4294901760
        %839 = vmatpush.msra.mxu0 %v838
        %v840 = vand.u32 %v433, 4294901760
        %841 = vmatpush.msra.mxu0 %v840
        %v842 = vand.u32 %v431, 4294901760
        %843 = vmatpush.msra.mxu0 %v842
        %v844 = vand.u32 %v429, 4294901760
        %845 = vmatpush.msra.mxu0 %v844
        %v846 = vand.u32 %v427, 4294901760
        %847 = vmatpush.msra.mxu0 %v846
        %v848 = vand.u32 %v425, 4294901760
        %849 = vmatpush.msra.mxu0 %v848
        %v850 = vand.u32 %v423, 4294901760
        %851 = vmatpush.msra.mxu0 %v850
        %v852 = vand.u32 %v421, 4294901760
        %853 = vmatpush.msra.mxu0 %v852
        %v854 = vand.u32 %v419, 4294901760
        %855 = vmatpush.msra.mxu0 %v854
        %v856 = vand.u32 %v417, 4294901760
        %857 = vmatpush.msra.mxu0 %v856
        %v858 = vand.u32 %v414, 4294901760
        %v859 = vsub.f32 %v414, %v858
        %v860 = vand.u32 %v859, 4294901760
        %v861 = vsub.f32 %v859, %v860
        %v862 = vand.u32 %v861, 4294901760
        %863 = vmatmul.f32.gmra.mxu0 %v862
        %v864 = vpop.f32.mrf.mxu0
        %v865 = vadd.f32 %v451, %v864
        %v866 = vand.u32 %v415, 4294901760
        %v867 = vsub.f32 %v415, %v866
        %v868 = vand.u32 %v867, 4294901760
        %v869 = vsub.f32 %v867, %v868
        %v870 = vand.u32 %v869, 4294901760
        %871 = vmatmul.f32.gmra.mxu0 %v870
        %v872 = vpop.f32.mrf.mxu0
        %v873 = vadd.f32 %v451, %v872
        %874 = vdwg.mxu0
        %v875 = vand.u32 %v447, 4294901760
        %v876 = vsub.f32 %v447, %v875
        %v877 = vand.u32 %v876, 4294901760
        %v878 = vsub.f32 %v876, %v877
        %v879 = vand.u32 %v878, 4294901760
        %880 = vmatpush.msra.mxu0 %v879
        %v881 = vand.u32 %v445, 4294901760
        %v882 = vsub.f32 %v445, %v881
        %v883 = vand.u32 %v882, 4294901760
        %v884 = vsub.f32 %v882, %v883
        %v885 = vand.u32 %v884, 4294901760
        %886 = vmatpush.msra.mxu0 %v885
        %v887 = vand.u32 %v443, 4294901760
        %v888 = vsub.f32 %v443, %v887
        %v889 = vand.u32 %v888, 4294901760
        %v890 = vsub.f32 %v888, %v889
        %v891 = vand.u32 %v890, 4294901760
        %892 = vmatpush.msra.mxu0 %v891
        %v893 = vand.u32 %v441, 4294901760
        %v894 = vsub.f32 %v441, %v893
        %v895 = vand.u32 %v894, 4294901760
        %v896 = vsub.f32 %v894, %v895
        %v897 = vand.u32 %v896, 4294901760
        %898 = vmatpush.msra.mxu0 %v897
        %v899 = vand.u32 %v439, 4294901760
        %v900 = vsub.f32 %v439, %v899
        %v901 = vand.u32 %v900, 4294901760
        %v902 = vsub.f32 %v900, %v901
        %v903 = vand.u32 %v902, 4294901760
        %904 = vmatpush.msra.mxu0 %v903
        %v905 = vand.u32 %v437, 4294901760
        %v906 = vsub.f32 %v437, %v905
        %v907 = vand.u32 %v906, 4294901760
        %v908 = vsub.f32 %v906, %v907
        %v909 = vand.u32 %v908, 4294901760
        %910 = vmatpush.msra.mxu0 %v909
        %v911 = vand.u32 %v435, 4294901760
        %v912 = vsub.f32 %v435, %v911
        %v913 = vand.u32 %v912, 4294901760
        %v914 = vsub.f32 %v912, %v913
        %v915 = vand.u32 %v914, 4294901760
        %916 = vmatpush.msra.mxu0 %v915
        %v917 = vand.u32 %v433, 4294901760
        %v918 = vsub.f32 %v433, %v917
        %v919 = vand.u32 %v918, 4294901760
        %v920 = vsub.f32 %v918, %v919
        %v921 = vand.u32 %v920, 4294901760
        %922 = vmatpush.msra.mxu0 %v921
        %v923 = vand.u32 %v431, 4294901760
        %v924 = vsub.f32 %v431, %v923
        %v925 = vand.u32 %v924, 4294901760
        %v926 = vsub.f32 %v924, %v925
        %v927 = vand.u32 %v926, 4294901760
        %928 = vmatpush.msra.mxu0 %v927
        %v929 = vand.u32 %v429, 4294901760
        %v930 = vsub.f32 %v429, %v929
        %v931 = vand.u32 %v930, 4294901760
        %v932 = vsub.f32 %v930, %v931
        %v933 = vand.u32 %v932, 4294901760
        %934 = vmatpush.msra.mxu0 %v933
        %v935 = vand.u32 %v427, 4294901760
        %v936 = vsub.f32 %v427, %v935
        %v937 = vand.u32 %v936, 4294901760
        %v938 = vsub.f32 %v936, %v937
        %v939 = vand.u32 %v938, 4294901760
        %940 = vmatpush.msra.mxu0 %v939
        %v941 = vand.u32 %v425, 4294901760
        %v942 = vsub.f32 %v425, %v941
        %v943 = vand.u32 %v942, 4294901760
        %v944 = vsub.f32 %v942, %v943
        %v945 = vand.u32 %v944, 4294901760
        %946 = vmatpush.msra.mxu0 %v945
        %v947 = vand.u32 %v423, 4294901760
        %v948 = vsub.f32 %v423, %v947
        %v949 = vand.u32 %v948, 4294901760
        %v950 = vsub.f32 %v948, %v949
        %v951 = vand.u32 %v950, 4294901760
        %952 = vmatpush.msra.mxu0 %v951
        %v953 = vand.u32 %v421, 4294901760
        %v954 = vsub.f32 %v421, %v953
        %v955 = vand.u32 %v954, 4294901760
        %v956 = vsub.f32 %v954, %v955
        %v957 = vand.u32 %v956, 4294901760
        %958 = vmatpush.msra.mxu0 %v957
        %v959 = vand.u32 %v419, 4294901760
        %v960 = vsub.f32 %v419, %v959
        %v961 = vand.u32 %v960, 4294901760
        %v962 = vsub.f32 %v960, %v961
        %v963 = vand.u32 %v962, 4294901760
        %964 = vmatpush.msra.mxu0 %v963
        %v965 = vand.u32 %v417, 4294901760
        %v966 = vsub.f32 %v417, %v965
        %v967 = vand.u32 %v966, 4294901760
        %v968 = vsub.f32 %v966, %v967
        %v969 = vand.u32 %v968, 4294901760
        %970 = vmatpush.msra.mxu0 %v969
        %v971 = vand.u32 %v414, 4294901760
        %972 = vmatmul.f32.gmra.mxu0 %v971
        %v973 = vpop.f32.mrf.mxu0
        %v974 = vadd.f32 %v865, %v973
        %v975 = vand.u32 %v415, 4294901760
        %976 = vmatmul.f32.gmra.mxu0 %v975
        %v977 = vpop.f32.mrf.mxu0
        %v978 = vadd.f32 %v873, %v977
        %979 = vdwg.mxu0
        %v980 = vand.u32 %v447, 4294901760
        %v981 = vsub.f32 %v447, %v980
        %982 = vmatpush.msra.mxu0 %v981
        %v983 = vand.u32 %v445, 4294901760
        %v984 = vsub.f32 %v445, %v983
        %985 = vmatpush.msra.mxu0 %v984
        %v986 = vand.u32 %v443, 4294901760
        %v987 = vsub.f32 %v443, %v986
        %988 = vmatpush.msra.mxu0 %v987
        %v989 = vand.u32 %v441, 4294901760
        %v990 = vsub.f32 %v441, %v989
        %991 = vmatpush.msra.mxu0 %v990
        %v992 = vand.u32 %v439, 4294901760
        %v993 = vsub.f32 %v439, %v992
        %994 = vmatpush.msra.mxu0 %v993
        %v995 = vand.u32 %v437, 4294901760
        %v996 = vsub.f32 %v437, %v995
        %997 = vmatpush.msra.mxu0 %v996
        %v998 = vand.u32 %v435, 4294901760
        %v999 = vsub.f32 %v435, %v998
        %1000 = vmatpush.msra.mxu0 %v999
        %v1001 = vand.u32 %v433, 4294901760
        %v1002 = vsub.f32 %v433, %v1001
        %1003 = vmatpush.msra.mxu0 %v1002
        %v1004 = vand.u32 %v431, 4294901760
        %v1005 = vsub.f32 %v431, %v1004
        %1006 = vmatpush.msra.mxu0 %v1005
        %v1007 = vand.u32 %v429, 4294901760
        %v1008 = vsub.f32 %v429, %v1007
        %1009 = vmatpush.msra.mxu0 %v1008
        %v1010 = vand.u32 %v427, 4294901760
        %v1011 = vsub.f32 %v427, %v1010
        %1012 = vmatpush.msra.mxu0 %v1011
        %v1013 = vand.u32 %v425, 4294901760
        %v1014 = vsub.f32 %v425, %v1013
        %1015 = vmatpush.msra.mxu0 %v1014
        %v1016 = vand.u32 %v423, 4294901760
        %v1017 = vsub.f32 %v423, %v1016
        %1018 = vmatpush.msra.mxu0 %v1017
        %v1019 = vand.u32 %v421, 4294901760
        %v1020 = vsub.f32 %v421, %v1019
        %1021 = vmatpush.msra.mxu0 %v1020
        %v1022 = vand.u32 %v419, 4294901760
        %v1023 = vsub.f32 %v419, %v1022
        %1024 = vmatpush.msra.mxu0 %v1023
        %v1025 = vand.u32 %v417, 4294901760
        %v1026 = vsub.f32 %v417, %v1025
        %1027 = vmatpush.msra.mxu0 %v1026
        %v1028 = vand.u32 %v414, 4294901760
        %v1029 = vsub.f32 %v414, %v1028
        %1030 = vmatmul.f32.gmra.mxu0 %v1029
        %v1031 = vpop.f32.mrf.mxu0
        %v1032 = vadd.f32 %v974, %v1031
        %v1033 = vand.u32 %v415, 4294901760
        %v1034 = vsub.f32 %v415, %v1033
        %1035 = vmatmul.f32.gmra.mxu0 %v1034
        %v1036 = vpop.f32.mrf.mxu0
        %v1037 = vadd.f32 %v978, %v1036
        %1038 = vdwg.mxu0
        %v1039 = vand.u32 %v447, 4294901760
        %1040 = vmatpush.msra.mxu0 %v1039
        %v1041 = vand.u32 %v445, 4294901760
        %1042 = vmatpush.msra.mxu0 %v1041
        %v1043 = vand.u32 %v443, 4294901760
        %1044 = vmatpush.msra.mxu0 %v1043
        %v1045 = vand.u32 %v441, 4294901760
        %1046 = vmatpush.msra.mxu0 %v1045
        %v1047 = vand.u32 %v439, 4294901760
        %1048 = vmatpush.msra.mxu0 %v1047
        %v1049 = vand.u32 %v437, 4294901760
        %1050 = vmatpush.msra.mxu0 %v1049
        %v1051 = vand.u32 %v435, 4294901760
        %1052 = vmatpush.msra.mxu0 %v1051
        %v1053 = vand.u32 %v433, 4294901760
        %1054 = vmatpush.msra.mxu0 %v1053
        %v1055 = vand.u32 %v431, 4294901760
        %1056 = vmatpush.msra.mxu0 %v1055
        %v1057 = vand.u32 %v429, 4294901760
        %1058 = vmatpush.msra.mxu0 %v1057
        %v1059 = vand.u32 %v427, 4294901760
        %1060 = vmatpush.msra.mxu0 %v1059
        %v1061 = vand.u32 %v425, 4294901760
        %1062 = vmatpush.msra.mxu0 %v1061
        %v1063 = vand.u32 %v423, 4294901760
        %1064 = vmatpush.msra.mxu0 %v1063
        %v1065 = vand.u32 %v421, 4294901760
        %1066 = vmatpush.msra.mxu0 %v1065
        %v1067 = vand.u32 %v419, 4294901760
        %1068 = vmatpush.msra.mxu0 %v1067
        %v1069 = vand.u32 %v417, 4294901760
        %1070 = vmatpush.msra.mxu0 %v1069
        %v1071 = vand.u32 %v414, 4294901760
        %v1072 = vsub.f32 %v414, %v1071
        %v1073 = vand.u32 %v1072, 4294901760
        %1074 = vmatmul.f32.gmra.mxu0 %v1073
        %v1075 = vpop.f32.mrf.mxu0
        %v1076 = vadd.f32 %v1032, %v1075
        %v1077 = vand.u32 %v415, 4294901760
        %v1078 = vsub.f32 %v415, %v1077
        %v1079 = vand.u32 %v1078, 4294901760
        %1080 = vmatmul.f32.gmra.mxu0 %v1079
        %v1081 = vpop.f32.mrf.mxu0
        %v1082 = vadd.f32 %v1037, %v1081
        %1083 = vdwg.mxu0
        %v1084 = vand.u32 %v447, 4294901760
        %v1085 = vsub.f32 %v447, %v1084
        %v1086 = vand.u32 %v1085, 4294901760
        %1087 = vmatpush.msra.mxu0 %v1086
        %v1088 = vand.u32 %v445, 4294901760
        %v1089 = vsub.f32 %v445, %v1088
        %v1090 = vand.u32 %v1089, 4294901760
        %1091 = vmatpush.msra.mxu0 %v1090
        %v1092 = vand.u32 %v443, 4294901760
        %v1093 = vsub.f32 %v443, %v1092
        %v1094 = vand.u32 %v1093, 4294901760
        %1095 = vmatpush.msra.mxu0 %v1094
        %v1096 = vand.u32 %v441, 4294901760
        %v1097 = vsub.f32 %v441, %v1096
        %v1098 = vand.u32 %v1097, 4294901760
        %1099 = vmatpush.msra.mxu0 %v1098
        %v1100 = vand.u32 %v439, 4294901760
        %v1101 = vsub.f32 %v439, %v1100
        %v1102 = vand.u32 %v1101, 4294901760
        %1103 = vmatpush.msra.mxu0 %v1102
        %v1104 = vand.u32 %v437, 4294901760
        %v1105 = vsub.f32 %v437, %v1104
        %v1106 = vand.u32 %v1105, 4294901760
        %1107 = vmatpush.msra.mxu0 %v1106
        %v1108 = vand.u32 %v435, 4294901760
        %v1109 = vsub.f32 %v435, %v1108
        %v1110 = vand.u32 %v1109, 4294901760
        %1111 = vmatpush.msra.mxu0 %v1110
        %v1112 = vand.u32 %v433, 4294901760
        %v1113 = vsub.f32 %v433, %v1112
        %v1114 = vand.u32 %v1113, 4294901760
        %1115 = vmatpush.msra.mxu0 %v1114
        %v1116 = vand.u32 %v431, 4294901760
        %v1117 = vsub.f32 %v431, %v1116
        %v1118 = vand.u32 %v1117, 4294901760
        %1119 = vmatpush.msra.mxu0 %v1118
        %v1120 = vand.u32 %v429, 4294901760
        %v1121 = vsub.f32 %v429, %v1120
        %v1122 = vand.u32 %v1121, 4294901760
        %1123 = vmatpush.msra.mxu0 %v1122
        %v1124 = vand.u32 %v427, 4294901760
        %v1125 = vsub.f32 %v427, %v1124
        %v1126 = vand.u32 %v1125, 4294901760
        %1127 = vmatpush.msra.mxu0 %v1126
        %v1128 = vand.u32 %v425, 4294901760
        %v1129 = vsub.f32 %v425, %v1128
        %v1130 = vand.u32 %v1129, 4294901760
        %1131 = vmatpush.msra.mxu0 %v1130
        %v1132 = vand.u32 %v423, 4294901760
        %v1133 = vsub.f32 %v423, %v1132
        %v1134 = vand.u32 %v1133, 4294901760
        %1135 = vmatpush.msra.mxu0 %v1134
        %v1136 = vand.u32 %v421, 4294901760
        %v1137 = vsub.f32 %v421, %v1136
        %v1138 = vand.u32 %v1137, 4294901760
        %1139 = vmatpush.msra.mxu0 %v1138
        %v1140 = vand.u32 %v419, 4294901760
        %v1141 = vsub.f32 %v419, %v1140
        %v1142 = vand.u32 %v1141, 4294901760
        %1143 = vmatpush.msra.mxu0 %v1142
        %v1144 = vand.u32 %v417, 4294901760
        %v1145 = vsub.f32 %v417, %v1144
        %v1146 = vand.u32 %v1145, 4294901760
        %1147 = vmatpush.msra.mxu0 %v1146
        %v1148 = vand.u32 %v414, 4294901760
        %1149 = vmatmul.f32.gmra.mxu0 %v1148
        %v1150 = vpop.f32.mrf.mxu0
        %v1151 = vadd.f32 %v1076, %v1150
        %v1152 = vand.u32 %v415, 4294901760
        %1153 = vmatmul.f32.gmra.mxu0 %v1152
        %v1154 = vpop.f32.mrf.mxu0
        %v1155 = vadd.f32 %v1082, %v1154
        %1156 = vdwg.mxu0
        %v1157 = vand.u32 %v447, 4294901760
        %1158 = vmatpush.msra.mxu0 %v1157
        %v1159 = vand.u32 %v445, 4294901760
        %1160 = vmatpush.msra.mxu0 %v1159
        %v1161 = vand.u32 %v443, 4294901760
        %1162 = vmatpush.msra.mxu0 %v1161
        %v1163 = vand.u32 %v441, 4294901760
        %1164 = vmatpush.msra.mxu0 %v1163
        %v1165 = vand.u32 %v439, 4294901760
        %1166 = vmatpush.msra.mxu0 %v1165
        %v1167 = vand.u32 %v437, 4294901760
        %1168 = vmatpush.msra.mxu0 %v1167
        %v1169 = vand.u32 %v435, 4294901760
        %1170 = vmatpush.msra.mxu0 %v1169
        %v1171 = vand.u32 %v433, 4294901760
        %1172 = vmatpush.msra.mxu0 %v1171
        %v1173 = vand.u32 %v431, 4294901760
        %1174 = vmatpush.msra.mxu0 %v1173
        %v1175 = vand.u32 %v429, 4294901760
        %1176 = vmatpush.msra.mxu0 %v1175
        %v1177 = vand.u32 %v427, 4294901760
        %1178 = vmatpush.msra.mxu0 %v1177
        %v1179 = vand.u32 %v425, 4294901760
        %1180 = vmatpush.msra.mxu0 %v1179
        %v1181 = vand.u32 %v423, 4294901760
        %1182 = vmatpush.msra.mxu0 %v1181
        %v1183 = vand.u32 %v421, 4294901760
        %1184 = vmatpush.msra.mxu0 %v1183
        %v1185 = vand.u32 %v419, 4294901760
        %1186 = vmatpush.msra.mxu0 %v1185
        %v1187 = vand.u32 %v417, 4294901760
        %1188 = vmatpush.msra.mxu0 %v1187
        %v1189 = vand.u32 %v414, 4294901760
        %1190 = vmatmul.f32.gmra.mxu0 %v1189
        %v1191 = vpop.f32.mrf.mxu0
        %v1192 = vadd.f32 %v1151, %v1191
        %v1193 = vand.u32 %v415, 4294901760
        %1194 = vmatmul.f32.gmra.mxu0 %v1193
        %v1195 = vpop.f32.mrf.mxu0
        %v1196 = vadd.f32 %v1155, %v1195
        %1197 = vdwg.mxu0
        %v1198 = vmax.f32 %v820, 0.0
        %v1199 = vmax.f32 %v1192, 0.0
        %v1200 = vmax.f32 %v824, 0.0
        %v1201 = vmax.f32 %v1196, 0.0
        %v1202 = vld [vmem:[#allocation11] sm:$0xff]
        %v1203 = vld [vmem:[#allocation11 + $0x8] sm:$0xff]
        %v1204 = vld [vmem:[#allocation11 + $0x10] sm:$0xff]
        %v1205 = vld [vmem:[#allocation11 + $0x18] sm:$0xff]
        %v1206 = vld [vmem:[#allocation11 + $0x20] sm:$0xff]
        %v1207 = vld [vmem:[#allocation11 + $0x28] sm:$0xff]
        %v1208 = vld [vmem:[#allocation11 + $0x30] sm:$0xff]
        %v1209 = vld [vmem:[#allocation11 + $0x38] sm:$0xff]
        %v1210 = vld [vmem:[#allocation11 + $0x40] sm:$0xff]
        %v1211 = vld [vmem:[#allocation11 + $0x48] sm:$0xff]
        %v1212 = vld [vmem:[#allocation11 + $0x50] sm:$0xff]
        %v1213 = vld [vmem:[#allocation11 + $0x58] sm:$0xff]
        %v1214 = vld [vmem:[#allocation11 + $0x60] sm:$0xff]
        %v1215 = vld [vmem:[#allocation11 + $0x68] sm:$0xff]
        %v1216 = vld [vmem:[#allocation11 + $0x70] sm:$0xff]
        %v1217 = vld [vmem:[#allocation11 + $0x78] sm:$0xff]
        %v1218 = vld [vmem:[#allocation11 + $0x80] sm:$0xff]
        %v1219 = vld [vmem:[#allocation11 + $0x88] sm:$0xff]
        %v1220 = vld [vmem:[#allocation11 + $0x90] sm:$0xff]
        %v1221 = vld [vmem:[#allocation11 + $0x98] sm:$0xff]
        %v1222 = vld [vmem:[#allocation11 + $0xa0] sm:$0xff]
        %v1223 = vld [vmem:[#allocation11 + $0xa8] sm:$0xff]
        %v1224 = vld [vmem:[#allocation11 + $0xb0] sm:$0xff]
        %v1225 = vld [vmem:[#allocation11 + $0xb8] sm:$0xff]
        %v1226 = vld [vmem:[#allocation11 + $0xc0] sm:$0xff]
        %v1227 = vld [vmem:[#allocation11 + $0xc8] sm:$0xff]
        %v1228 = vld [vmem:[#allocation11 + $0xd0] sm:$0xff]
        %v1229 = vld [vmem:[#allocation11 + $0xd8] sm:$0xff]
        %v1230 = vld [vmem:[#allocation11 + $0xe0] sm:$0xff]
        %v1231 = vld [vmem:[#allocation11 + $0xe8] sm:$0xff]
        %v1232 = vld [vmem:[#allocation11 + $0xf0] sm:$0xff]
        %v1233 = vld [vmem:[#allocation11 + $0xf8] sm:$0xff]
        %v1234 = vld [vmem:[#allocation11 + $0x100] sm:$0xff]
        %v1235 = vld [vmem:[#allocation11 + $0x108] sm:$0xff]
        %v1236 = vld [vmem:[#allocation11 + $0x110] sm:$0xff]
        %v1237 = vld [vmem:[#allocation11 + $0x118] sm:$0xff]
        %v1238 = vld [vmem:[#allocation11 + $0x120] sm:$0xff]
        %v1239 = vld [vmem:[#allocation11 + $0x128] sm:$0xff]
        %v1240 = vld [vmem:[#allocation11 + $0x130] sm:$0xff]
        %v1241 = vld [vmem:[#allocation11 + $0x138] sm:$0xff]
        %v1242 = vld [vmem:[#allocation11 + $0x140] sm:$0xff]
        %v1243 = vld [vmem:[#allocation11 + $0x148] sm:$0xff]
        %v1244 = vld [vmem:[#allocation11 + $0x150] sm:$0xff]
        %v1245 = vld [vmem:[#allocation11 + $0x158] sm:$0xff]
        %v1246 = vld [vmem:[#allocation11 + $0x160] sm:$0xff]
        %v1247 = vld [vmem:[#allocation11 + $0x168] sm:$0xff]
        %v1248 = vld [vmem:[#allocation11 + $0x170] sm:$0xff]
        %v1249 = vld [vmem:[#allocation11 + $0x178] sm:$0xff]
        %v1250 = vld [vmem:[#allocation11 + $0x180] sm:$0xff]
        %v1251 = vld [vmem:[#allocation11 + $0x188] sm:$0xff]
        %v1252 = vld [vmem:[#allocation11 + $0x190] sm:$0xff]
        %v1253 = vld [vmem:[#allocation11 + $0x198] sm:$0xff]
        %v1254 = vld [vmem:[#allocation11 + $0x1a0] sm:$0xff]
        %v1255 = vld [vmem:[#allocation11 + $0x1a8] sm:$0xff]
        %v1256 = vld [vmem:[#allocation11 + $0x1b0] sm:$0xff]
        %v1257 = vld [vmem:[#allocation11 + $0x1b8] sm:$0xff]
        %v1258 = vld [vmem:[#allocation11 + $0x1c0] sm:$0xff]
        %v1259 = vld [vmem:[#allocation11 + $0x1c8] sm:$0xff]
        %v1260 = vld [vmem:[#allocation11 + $0x1d0] sm:$0xff]
        %v1261 = vld [vmem:[#allocation11 + $0x1d8] sm:$0xff]
        %v1262 = vld [vmem:[#allocation11 + $0x1e0] sm:$0xff]
        %v1263 = vld [vmem:[#allocation11 + $0x1e8] sm:$0xff]
        %v1264 = vld [vmem:[#allocation11 + $0x1f0] sm:$0xff]
        %v1265 = vld [vmem:[#allocation11 + $0x1f8] sm:$0xff]
        %v1266 = vld [vmem:[#allocation11 + $0x200] sm:$0xff]
        %v1267 = vld [vmem:[#allocation11 + $0x208] sm:$0xff]
        %v1268 = vld [vmem:[#allocation11 + $0x210] sm:$0xff]
        %v1269 = vld [vmem:[#allocation11 + $0x218] sm:$0xff]
        %v1270 = vld [vmem:[#allocation11 + $0x220] sm:$0xff]
        %v1271 = vld [vmem:[#allocation11 + $0x228] sm:$0xff]
        %v1272 = vld [vmem:[#allocation11 + $0x230] sm:$0xff]
        %v1273 = vld [vmem:[#allocation11 + $0x238] sm:$0xff]
        %v1274 = vld [vmem:[#allocation11 + $0x240] sm:$0xff]
        %v1275 = vld [vmem:[#allocation11 + $0x248] sm:$0xff]
        %v1276 = vld [vmem:[#allocation11 + $0x250] sm:$0xff]
        %v1277 = vld [vmem:[#allocation11 + $0x258] sm:$0xff]
        %v1278 = vld [vmem:[#allocation11 + $0x260] sm:$0xff]
        %v1279 = vld [vmem:[#allocation11 + $0x268] sm:$0xff]
        %v1280 = vld [vmem:[#allocation11 + $0x270] sm:$0xff]
        %v1281 = vld [vmem:[#allocation11 + $0x278] sm:$0xff]
        %v1282 = vld [vmem:[#allocation11 + $0x280] sm:$0xff]
        %v1283 = vld [vmem:[#allocation11 + $0x288] sm:$0xff]
        %v1284 = vld [vmem:[#allocation11 + $0x290] sm:$0xff]
        %v1285 = vld [vmem:[#allocation11 + $0x298] sm:$0xff]
        %v1286 = vld [vmem:[#allocation11 + $0x2a0] sm:$0xff]
        %v1287 = vld [vmem:[#allocation11 + $0x2a8] sm:$0xff]
        %v1288 = vld [vmem:[#allocation11 + $0x2b0] sm:$0xff]
        %v1289 = vld [vmem:[#allocation11 + $0x2b8] sm:$0xff]
        %v1290 = vld [vmem:[#allocation11 + $0x2c0] sm:$0xff]
        %v1291 = vld [vmem:[#allocation11 + $0x2c8] sm:$0xff]
        %v1292 = vld [vmem:[#allocation11 + $0x2d0] sm:$0xff]
        %v1293 = vld [vmem:[#allocation11 + $0x2d8] sm:$0xff]
        %v1294 = vld [vmem:[#allocation11 + $0x2e0] sm:$0xff]
        %v1295 = vld [vmem:[#allocation11 + $0x2e8] sm:$0xff]
        %v1296 = vld [vmem:[#allocation11 + $0x2f0] sm:$0xff]
        %v1297 = vld [vmem:[#allocation11 + $0x2f8] sm:$0xff]
        %v1298 = vand.u32 %v1247, 4294901760
        %1299 = vmatpush.msra.mxu0 %v1298
        %v1300 = vand.u32 %v1244, 4294901760
        %1301 = vmatpush.msra.mxu0 %v1300
        %v1302 = vand.u32 %v1241, 4294901760
        %1303 = vmatpush.msra.mxu0 %v1302
        %v1304 = vand.u32 %v1238, 4294901760
        %1305 = vmatpush.msra.mxu0 %v1304
        %v1306 = vand.u32 %v1235, 4294901760
        %1307 = vmatpush.msra.mxu0 %v1306
        %v1308 = vand.u32 %v1232, 4294901760
        %1309 = vmatpush.msra.mxu0 %v1308
        %v1310 = vand.u32 %v1229, 4294901760
        %1311 = vmatpush.msra.mxu0 %v1310
        %v1312 = vand.u32 %v1226, 4294901760
        %1313 = vmatpush.msra.mxu0 %v1312
        %v1314 = vand.u32 %v1223, 4294901760
        %1315 = vmatpush.msra.mxu0 %v1314
        %v1316 = vand.u32 %v1220, 4294901760
        %1317 = vmatpush.msra.mxu0 %v1316
        %v1318 = vand.u32 %v1217, 4294901760
        %1319 = vmatpush.msra.mxu0 %v1318
        %v1320 = vand.u32 %v1214, 4294901760
        %1321 = vmatpush.msra.mxu0 %v1320
        %v1322 = vand.u32 %v1211, 4294901760
        %1323 = vmatpush.msra.mxu0 %v1322
        %v1324 = vand.u32 %v1208, 4294901760
        %1325 = vmatpush.msra.mxu0 %v1324
        %v1326 = vand.u32 %v1205, 4294901760
        %1327 = vmatpush.msra.mxu0 %v1326
        %v1328 = vand.u32 %v1202, 4294901760
        %1329 = vmatpush.msra.mxu0 %v1328
        %v1330 = vand.u32 %v1198, 4294901760
        %v1331 = vsub.f32 %v1198, %v1330
        %v1332 = vand.u32 %v1331, 4294901760
        %v1333 = vsub.f32 %v1331, %v1332
        %v1334 = vand.u32 %v1333, 4294901760
        %1335 = vmatmul.f32.gmra.mxu0 %v1334
        %v1336 = vpop.f32.mrf.mxu0
        %v1337 = vadd.f32 0.0, %v1336
        %v1338 = vand.u32 %v1200, 4294901760
        %v1339 = vsub.f32 %v1200, %v1338
        %v1340 = vand.u32 %v1339, 4294901760
        %v1341 = vsub.f32 %v1339, %v1340
        %v1342 = vand.u32 %v1341, 4294901760
        %1343 = vmatmul.f32.gmra.mxu0 %v1342
        %v1344 = vpop.f32.mrf.mxu0
        %v1345 = vadd.f32 0.0, %v1344
        %1346 = vdwg.mxu0
        %v1347 = vand.u32 %v1247, 4294901760
        %v1348 = vsub.f32 %v1247, %v1347
        %v1349 = vand.u32 %v1348, 4294901760
        %v1350 = vsub.f32 %v1348, %v1349
        %v1351 = vand.u32 %v1350, 4294901760
        %1352 = vmatpush.msra.mxu0 %v1351
        %v1353 = vand.u32 %v1244, 4294901760
        %v1354 = vsub.f32 %v1244, %v1353
        %v1355 = vand.u32 %v1354, 4294901760
        %v1356 = vsub.f32 %v1354, %v1355
        %v1357 = vand.u32 %v1356, 4294901760
        %1358 = vmatpush.msra.mxu0 %v1357
        %v1359 = vand.u32 %v1241, 4294901760
        %v1360 = vsub.f32 %v1241, %v1359
        %v1361 = vand.u32 %v1360, 4294901760
        %v1362 = vsub.f32 %v1360, %v1361
        %v1363 = vand.u32 %v1362, 4294901760
        %1364 = vmatpush.msra.mxu0 %v1363
        %v1365 = vand.u32 %v1238, 4294901760
        %v1366 = vsub.f32 %v1238, %v1365
        %v1367 = vand.u32 %v1366, 4294901760
        %v1368 = vsub.f32 %v1366, %v1367
        %v1369 = vand.u32 %v1368, 4294901760
        %1370 = vmatpush.msra.mxu0 %v1369
        %v1371 = vand.u32 %v1235, 4294901760
        %v1372 = vsub.f32 %v1235, %v1371
        %v1373 = vand.u32 %v1372, 4294901760
        %v1374 = vsub.f32 %v1372, %v1373
        %v1375 = vand.u32 %v1374, 4294901760
        %1376 = vmatpush.msra.mxu0 %v1375
        %v1377 = vand.u32 %v1232, 4294901760
        %v1378 = vsub.f32 %v1232, %v1377
        %v1379 = vand.u32 %v1378, 4294901760
        %v1380 = vsub.f32 %v1378, %v1379
        %v1381 = vand.u32 %v1380, 4294901760
        %1382 = vmatpush.msra.mxu0 %v1381
        %v1383 = vand.u32 %v1229, 4294901760
        %v1384 = vsub.f32 %v1229, %v1383
        %v1385 = vand.u32 %v1384, 4294901760
        %v1386 = vsub.f32 %v1384, %v1385
        %v1387 = vand.u32 %v1386, 4294901760
        %1388 = vmatpush.msra.mxu0 %v1387
        %v1389 = vand.u32 %v1226, 4294901760
        %v1390 = vsub.f32 %v1226, %v1389
        %v1391 = vand.u32 %v1390, 4294901760
        %v1392 = vsub.f32 %v1390, %v1391
        %v1393 = vand.u32 %v1392, 4294901760
        %1394 = vmatpush.msra.mxu0 %v1393
        %v1395 = vand.u32 %v1223, 4294901760
        %v1396 = vsub.f32 %v1223, %v1395
        %v1397 = vand.u32 %v1396, 4294901760
        %v1398 = vsub.f32 %v1396, %v1397
        %v1399 = vand.u32 %v1398, 4294901760
        %1400 = vmatpush.msra.mxu0 %v1399
        %v1401 = vand.u32 %v1220, 4294901760
        %v1402 = vsub.f32 %v1220, %v1401
        %v1403 = vand.u32 %v1402, 4294901760
        %v1404 = vsub.f32 %v1402, %v1403
        %v1405 = vand.u32 %v1404, 4294901760
        %1406 = vmatpush.msra.mxu0 %v1405
        %v1407 = vand.u32 %v1217, 4294901760
        %v1408 = vsub.f32 %v1217, %v1407
        %v1409 = vand.u32 %v1408, 4294901760
        %v1410 = vsub.f32 %v1408, %v1409
        %v1411 = vand.u32 %v1410, 4294901760
        %1412 = vmatpush.msra.mxu0 %v1411
        %v1413 = vand.u32 %v1214, 4294901760
        %v1414 = vsub.f32 %v1214, %v1413
        %v1415 = vand.u32 %v1414, 4294901760
        %v1416 = vsub.f32 %v1414, %v1415
        %v1417 = vand.u32 %v1416, 4294901760
        %1418 = vmatpush.msra.mxu0 %v1417
        %v1419 = vand.u32 %v1211, 4294901760
        %v1420 = vsub.f32 %v1211, %v1419
        %v1421 = vand.u32 %v1420, 4294901760
        %v1422 = vsub.f32 %v1420, %v1421
        %v1423 = vand.u32 %v1422, 4294901760
        %1424 = vmatpush.msra.mxu0 %v1423
        %v1425 = vand.u32 %v1208, 4294901760
        %v1426 = vsub.f32 %v1208, %v1425
        %v1427 = vand.u32 %v1426, 4294901760
        %v1428 = vsub.f32 %v1426, %v1427
        %v1429 = vand.u32 %v1428, 4294901760
        %1430 = vmatpush.msra.mxu0 %v1429
        %v1431 = vand.u32 %v1205, 4294901760
        %v1432 = vsub.f32 %v1205, %v1431
        %v1433 = vand.u32 %v1432, 4294901760
        %v1434 = vsub.f32 %v1432, %v1433
        %v1435 = vand.u32 %v1434, 4294901760
        %1436 = vmatpush.msra.mxu0 %v1435
        %v1437 = vand.u32 %v1202, 4294901760
        %v1438 = vsub.f32 %v1202, %v1437
        %v1439 = vand.u32 %v1438, 4294901760
        %v1440 = vsub.f32 %v1438, %v1439
        %v1441 = vand.u32 %v1440, 4294901760
        %1442 = vmatpush.msra.mxu0 %v1441
        %v1443 = vand.u32 %v1198, 4294901760
        %1444 = vmatmul.f32.gmra.mxu0 %v1443
        %v1445 = vpop.f32.mrf.mxu0
        %v1446 = vadd.f32 %v1337, %v1445
        %v1447 = vand.u32 %v1200, 4294901760
        %1448 = vmatmul.f32.gmra.mxu0 %v1447
        %v1449 = vpop.f32.mrf.mxu0
        %v1450 = vadd.f32 %v1345, %v1449
        %1451 = vdwg.mxu0
        %v1452 = vand.u32 %v1247, 4294901760
        %v1453 = vsub.f32 %v1247, %v1452
        %1454 = vmatpush.msra.mxu0 %v1453
        %v1455 = vand.u32 %v1244, 4294901760
        %v1456 = vsub.f32 %v1244, %v1455
        %1457 = vmatpush.msra.mxu0 %v1456
        %v1458 = vand.u32 %v1241, 4294901760
        %v1459 = vsub.f32 %v1241, %v1458
        %1460 = vmatpush.msra.mxu0 %v1459
        %v1461 = vand.u32 %v1238, 4294901760
        %v1462 = vsub.f32 %v1238, %v1461
        %1463 = vmatpush.msra.mxu0 %v1462
        %v1464 = vand.u32 %v1235, 4294901760
        %v1465 = vsub.f32 %v1235, %v1464
        %1466 = vmatpush.msra.mxu0 %v1465
        %v1467 = vand.u32 %v1232, 4294901760
        %v1468 = vsub.f32 %v1232, %v1467
        %1469 = vmatpush.msra.mxu0 %v1468
        %v1470 = vand.u32 %v1229, 4294901760
        %v1471 = vsub.f32 %v1229, %v1470
        %1472 = vmatpush.msra.mxu0 %v1471
        %v1473 = vand.u32 %v1226, 4294901760
        %v1474 = vsub.f32 %v1226, %v1473
        %1475 = vmatpush.msra.mxu0 %v1474
        %v1476 = vand.u32 %v1223, 4294901760
        %v1477 = vsub.f32 %v1223, %v1476
        %1478 = vmatpush.msra.mxu0 %v1477
        %v1479 = vand.u32 %v1220, 4294901760
        %v1480 = vsub.f32 %v1220, %v1479
        %1481 = vmatpush.msra.mxu0 %v1480
        %v1482 = vand.u32 %v1217, 4294901760
        %v1483 = vsub.f32 %v1217, %v1482
        %1484 = vmatpush.msra.mxu0 %v1483
        %v1485 = vand.u32 %v1214, 4294901760
        %v1486 = vsub.f32 %v1214, %v1485
        %1487 = vmatpush.msra.mxu0 %v1486
        %v1488 = vand.u32 %v1211, 4294901760
        %v1489 = vsub.f32 %v1211, %v1488
        %1490 = vmatpush.msra.mxu0 %v1489
        %v1491 = vand.u32 %v1208, 4294901760
        %v1492 = vsub.f32 %v1208, %v1491
        %1493 = vmatpush.msra.mxu0 %v1492
        %v1494 = vand.u32 %v1205, 4294901760
        %v1495 = vsub.f32 %v1205, %v1494
        %1496 = vmatpush.msra.mxu0 %v1495
        %v1497 = vand.u32 %v1202, 4294901760
        %v1498 = vsub.f32 %v1202, %v1497
        %1499 = vmatpush.msra.mxu0 %v1498
        %v1500 = vand.u32 %v1198, 4294901760
        %v1501 = vsub.f32 %v1198, %v1500
        %1502 = vmatmul.f32.gmra.mxu0 %v1501
        %v1503 = vpop.f32.mrf.mxu0
        %v1504 = vadd.f32 %v1446, %v1503
        %v1505 = vand.u32 %v1200, 4294901760
        %v1506 = vsub.f32 %v1200, %v1505
        %1507 = vmatmul.f32.gmra.mxu0 %v1506
        %v1508 = vpop.f32.mrf.mxu0
        %v1509 = vadd.f32 %v1450, %v1508
        %1510 = vdwg.mxu0
        %v1511 = vand.u32 %v1247, 4294901760
        %1512 = vmatpush.msra.mxu0 %v1511
        %v1513 = vand.u32 %v1244, 4294901760
        %1514 = vmatpush.msra.mxu0 %v1513
        %v1515 = vand.u32 %v1241, 4294901760
        %1516 = vmatpush.msra.mxu0 %v1515
        %v1517 = vand.u32 %v1238, 4294901760
        %1518 = vmatpush.msra.mxu0 %v1517
        %v1519 = vand.u32 %v1235, 4294901760
        %1520 = vmatpush.msra.mxu0 %v1519
        %v1521 = vand.u32 %v1232, 4294901760
        %1522 = vmatpush.msra.mxu0 %v1521
        %v1523 = vand.u32 %v1229, 4294901760
        %1524 = vmatpush.msra.mxu0 %v1523
        %v1525 = vand.u32 %v1226, 4294901760
        %1526 = vmatpush.msra.mxu0 %v1525
        %v1527 = vand.u32 %v1223, 4294901760
        %1528 = vmatpush.msra.mxu0 %v1527
        %v1529 = vand.u32 %v1220, 4294901760
        %1530 = vmatpush.msra.mxu0 %v1529
        %v1531 = vand.u32 %v1217, 4294901760
        %1532 = vmatpush.msra.mxu0 %v1531
        %v1533 = vand.u32 %v1214, 4294901760
        %1534 = vmatpush.msra.mxu0 %v1533
        %v1535 = vand.u32 %v1211, 4294901760
        %1536 = vmatpush.msra.mxu0 %v1535
        %v1537 = vand.u32 %v1208, 4294901760
        %1538 = vmatpush.msra.mxu0 %v1537
        %v1539 = vand.u32 %v1205, 4294901760
        %1540 = vmatpush.msra.mxu0 %v1539
        %v1541 = vand.u32 %v1202, 4294901760
        %1542 = vmatpush.msra.mxu0 %v1541
        %v1543 = vand.u32 %v1198, 4294901760
        %v1544 = vsub.f32 %v1198, %v1543
        %v1545 = vand.u32 %v1544, 4294901760
        %1546 = vmatmul.f32.gmra.mxu0 %v1545
        %v1547 = vpop.f32.mrf.mxu0
        %v1548 = vadd.f32 %v1504, %v1547
        %v1549 = vand.u32 %v1200, 4294901760
        %v1550 = vsub.f32 %v1200, %v1549
        %v1551 = vand.u32 %v1550, 4294901760
        %1552 = vmatmul.f32.gmra.mxu0 %v1551
        %v1553 = vpop.f32.mrf.mxu0
        %v1554 = vadd.f32 %v1509, %v1553
        %1555 = vdwg.mxu0
        %v1556 = vand.u32 %v1247, 4294901760
        %v1557 = vsub.f32 %v1247, %v1556
        %v1558 = vand.u32 %v1557, 4294901760
        %1559 = vmatpush.msra.mxu0 %v1558
        %v1560 = vand.u32 %v1244, 4294901760
        %v1561 = vsub.f32 %v1244, %v1560
        %v1562 = vand.u32 %v1561, 4294901760
        %1563 = vmatpush.msra.mxu0 %v1562
        %v1564 = vand.u32 %v1241, 4294901760
        %v1565 = vsub.f32 %v1241, %v1564
        %v1566 = vand.u32 %v1565, 4294901760
        %1567 = vmatpush.msra.mxu0 %v1566
        %v1568 = vand.u32 %v1238, 4294901760
        %v1569 = vsub.f32 %v1238, %v1568
        %v1570 = vand.u32 %v1569, 4294901760
        %1571 = vmatpush.msra.mxu0 %v1570
        %v1572 = vand.u32 %v1235, 4294901760
        %v1573 = vsub.f32 %v1235, %v1572
        %v1574 = vand.u32 %v1573, 4294901760
        %1575 = vmatpush.msra.mxu0 %v1574
        %v1576 = vand.u32 %v1232, 4294901760
        %v1577 = vsub.f32 %v1232, %v1576
        %v1578 = vand.u32 %v1577, 4294901760
        %1579 = vmatpush.msra.mxu0 %v1578
        %v1580 = vand.u32 %v1229, 4294901760
        %v1581 = vsub.f32 %v1229, %v1580
        %v1582 = vand.u32 %v1581, 4294901760
        %1583 = vmatpush.msra.mxu0 %v1582
        %v1584 = vand.u32 %v1226, 4294901760
        %v1585 = vsub.f32 %v1226, %v1584
        %v1586 = vand.u32 %v1585, 4294901760
        %1587 = vmatpush.msra.mxu0 %v1586
        %v1588 = vand.u32 %v1223, 4294901760
        %v1589 = vsub.f32 %v1223, %v1588
        %v1590 = vand.u32 %v1589, 4294901760
        %1591 = vmatpush.msra.mxu0 %v1590
        %v1592 = vand.u32 %v1220, 4294901760
        %v1593 = vsub.f32 %v1220, %v1592
        %v1594 = vand.u32 %v1593, 4294901760
        %1595 = vmatpush.msra.mxu0 %v1594
        %v1596 = vand.u32 %v1217, 4294901760
        %v1597 = vsub.f32 %v1217, %v1596
        %v1598 = vand.u32 %v1597, 4294901760
        %1599 = vmatpush.msra.mxu0 %v1598
        %v1600 = vand.u32 %v1214, 4294901760
        %v1601 = vsub.f32 %v1214, %v1600
        %v1602 = vand.u32 %v1601, 4294901760
        %1603 = vmatpush.msra.mxu0 %v1602
        %v1604 = vand.u32 %v1211, 4294901760
        %v1605 = vsub.f32 %v1211, %v1604
        %v1606 = vand.u32 %v1605, 4294901760
        %1607 = vmatpush.msra.mxu0 %v1606
        %v1608 = vand.u32 %v1208, 4294901760
        %v1609 = vsub.f32 %v1208, %v1608
        %v1610 = vand.u32 %v1609, 4294901760
        %1611 = vmatpush.msra.mxu0 %v1610
        %v1612 = vand.u32 %v1205, 4294901760
        %v1613 = vsub.f32 %v1205, %v1612
        %v1614 = vand.u32 %v1613, 4294901760
        %1615 = vmatpush.msra.mxu0 %v1614
        %v1616 = vand.u32 %v1202, 4294901760
        %v1617 = vsub.f32 %v1202, %v1616
        %v1618 = vand.u32 %v1617, 4294901760
        %1619 = vmatpush.msra.mxu0 %v1618
        %v1620 = vand.u32 %v1198, 4294901760
        %1621 = vmatmul.f32.gmra.mxu0 %v1620
        %v1622 = vpop.f32.mrf.mxu0
        %v1623 = vadd.f32 %v1548, %v1622
        %v1624 = vand.u32 %v1200, 4294901760
        %1625 = vmatmul.f32.gmra.mxu0 %v1624
        %v1626 = vpop.f32.mrf.mxu0
        %v1627 = vadd.f32 %v1554, %v1626
        %1628 = vdwg.mxu0
        %v1629 = vand.u32 %v1247, 4294901760
        %1630 = vmatpush.msra.mxu0 %v1629
        %v1631 = vand.u32 %v1244, 4294901760
        %1632 = vmatpush.msra.mxu0 %v1631
        %v1633 = vand.u32 %v1241, 4294901760
        %1634 = vmatpush.msra.mxu0 %v1633
        %v1635 = vand.u32 %v1238, 4294901760
        %1636 = vmatpush.msra.mxu0 %v1635
        %v1637 = vand.u32 %v1235, 4294901760
        %1638 = vmatpush.msra.mxu0 %v1637
        %v1639 = vand.u32 %v1232, 4294901760
        %1640 = vmatpush.msra.mxu0 %v1639
        %v1641 = vand.u32 %v1229, 4294901760
        %1642 = vmatpush.msra.mxu0 %v1641
        %v1643 = vand.u32 %v1226, 4294901760
        %1644 = vmatpush.msra.mxu0 %v1643
        %v1645 = vand.u32 %v1223, 4294901760
        %1646 = vmatpush.msra.mxu0 %v1645
        %v1647 = vand.u32 %v1220, 4294901760
        %1648 = vmatpush.msra.mxu0 %v1647
        %v1649 = vand.u32 %v1217, 4294901760
        %1650 = vmatpush.msra.mxu0 %v1649
        %v1651 = vand.u32 %v1214, 4294901760
        %1652 = vmatpush.msra.mxu0 %v1651
        %v1653 = vand.u32 %v1211, 4294901760
        %1654 = vmatpush.msra.mxu0 %v1653
        %v1655 = vand.u32 %v1208, 4294901760
        %1656 = vmatpush.msra.mxu0 %v1655
        %v1657 = vand.u32 %v1205, 4294901760
        %1658 = vmatpush.msra.mxu0 %v1657
        %v1659 = vand.u32 %v1202, 4294901760
        %1660 = vmatpush.msra.mxu0 %v1659
        %v1661 = vand.u32 %v1198, 4294901760
        %1662 = vmatmul.f32.gmra.mxu0 %v1661
        %v1663 = vpop.f32.mrf.mxu0
        %v1664 = vadd.f32 %v1623, %v1663
        %v1665 = vand.u32 %v1200, 4294901760
        %1666 = vmatmul.f32.gmra.mxu0 %v1665
        %v1667 = vpop.f32.mrf.mxu0
        %v1668 = vadd.f32 %v1627, %v1667
        %1669 = vdwg.mxu0
        %v1670 = vand.u32 %v1295, 4294901760
        %1671 = vmatpush.msra.mxu0 %v1670
        %v1672 = vand.u32 %v1292, 4294901760
        %1673 = vmatpush.msra.mxu0 %v1672
        %v1674 = vand.u32 %v1289, 4294901760
        %1675 = vmatpush.msra.mxu0 %v1674
        %v1676 = vand.u32 %v1286, 4294901760
        %1677 = vmatpush.msra.mxu0 %v1676
        %v1678 = vand.u32 %v1283, 4294901760
        %1679 = vmatpush.msra.mxu0 %v1678
        %v1680 = vand.u32 %v1280, 4294901760
        %1681 = vmatpush.msra.mxu0 %v1680
        %v1682 = vand.u32 %v1277, 4294901760
        %1683 = vmatpush.msra.mxu0 %v1682
        %v1684 = vand.u32 %v1274, 4294901760
        %1685 = vmatpush.msra.mxu0 %v1684
        %v1686 = vand.u32 %v1271, 4294901760
        %1687 = vmatpush.msra.mxu0 %v1686
        %v1688 = vand.u32 %v1268, 4294901760
        %1689 = vmatpush.msra.mxu0 %v1688
        %v1690 = vand.u32 %v1265, 4294901760
        %1691 = vmatpush.msra.mxu0 %v1690
        %v1692 = vand.u32 %v1262, 4294901760
        %1693 = vmatpush.msra.mxu0 %v1692
        %v1694 = vand.u32 %v1259, 4294901760
        %1695 = vmatpush.msra.mxu0 %v1694
        %v1696 = vand.u32 %v1256, 4294901760
        %1697 = vmatpush.msra.mxu0 %v1696
        %v1698 = vand.u32 %v1253, 4294901760
        %1699 = vmatpush.msra.mxu0 %v1698
        %v1700 = vand.u32 %v1250, 4294901760
        %1701 = vmatpush.msra.mxu0 %v1700
        %v1702 = vand.u32 %v1199, 4294901760
        %v1703 = vsub.f32 %v1199, %v1702
        %v1704 = vand.u32 %v1703, 4294901760
        %v1705 = vsub.f32 %v1703, %v1704
        %v1706 = vand.u32 %v1705, 4294901760
        %1707 = vmatmul.f32.gmra.mxu0 %v1706
        %v1708 = vpop.f32.mrf.mxu0
        %v1709 = vadd.f32 %v1664, %v1708
        %v1710 = vand.u32 %v1201, 4294901760
        %v1711 = vsub.f32 %v1201, %v1710
        %v1712 = vand.u32 %v1711, 4294901760
        %v1713 = vsub.f32 %v1711, %v1712
        %v1714 = vand.u32 %v1713, 4294901760
        %1715 = vmatmul.f32.gmra.mxu0 %v1714
        %v1716 = vpop.f32.mrf.mxu0
        %v1717 = vadd.f32 %v1668, %v1716
        %1718 = vdwg.mxu0
        %v1719 = vand.u32 %v1295, 4294901760
        %v1720 = vsub.f32 %v1295, %v1719
        %v1721 = vand.u32 %v1720, 4294901760
        %v1722 = vsub.f32 %v1720, %v1721
        %v1723 = vand.u32 %v1722, 4294901760
        %1724 = vmatpush.msra.mxu0 %v1723
        %v1725 = vand.u32 %v1292, 4294901760
        %v1726 = vsub.f32 %v1292, %v1725
        %v1727 = vand.u32 %v1726, 4294901760
        %v1728 = vsub.f32 %v1726, %v1727
        %v1729 = vand.u32 %v1728, 4294901760
        %1730 = vmatpush.msra.mxu0 %v1729
        %v1731 = vand.u32 %v1289, 4294901760
        %v1732 = vsub.f32 %v1289, %v1731
        %v1733 = vand.u32 %v1732, 4294901760
        %v1734 = vsub.f32 %v1732, %v1733
        %v1735 = vand.u32 %v1734, 4294901760
        %1736 = vmatpush.msra.mxu0 %v1735
        %v1737 = vand.u32 %v1286, 4294901760
        %v1738 = vsub.f32 %v1286, %v1737
        %v1739 = vand.u32 %v1738, 4294901760
        %v1740 = vsub.f32 %v1738, %v1739
        %v1741 = vand.u32 %v1740, 4294901760
        %1742 = vmatpush.msra.mxu0 %v1741
        %v1743 = vand.u32 %v1283, 4294901760
        %v1744 = vsub.f32 %v1283, %v1743
        %v1745 = vand.u32 %v1744, 4294901760
        %v1746 = vsub.f32 %v1744, %v1745
        %v1747 = vand.u32 %v1746, 4294901760
        %1748 = vmatpush.msra.mxu0 %v1747
        %v1749 = vand.u32 %v1280, 4294901760
        %v1750 = vsub.f32 %v1280, %v1749
        %v1751 = vand.u32 %v1750, 4294901760
        %v1752 = vsub.f32 %v1750, %v1751
        %v1753 = vand.u32 %v1752, 4294901760
        %1754 = vmatpush.msra.mxu0 %v1753
        %v1755 = vand.u32 %v1277, 4294901760
        %v1756 = vsub.f32 %v1277, %v1755
        %v1757 = vand.u32 %v1756, 4294901760
        %v1758 = vsub.f32 %v1756, %v1757
        %v1759 = vand.u32 %v1758, 4294901760
        %1760 = vmatpush.msra.mxu0 %v1759
        %v1761 = vand.u32 %v1274, 4294901760
        %v1762 = vsub.f32 %v1274, %v1761
        %v1763 = vand.u32 %v1762, 4294901760
        %v1764 = vsub.f32 %v1762, %v1763
        %v1765 = vand.u32 %v1764, 4294901760
        %1766 = vmatpush.msra.mxu0 %v1765
        %v1767 = vand.u32 %v1271, 4294901760
        %v1768 = vsub.f32 %v1271, %v1767
        %v1769 = vand.u32 %v1768, 4294901760
        %v1770 = vsub.f32 %v1768, %v1769
        %v1771 = vand.u32 %v1770, 4294901760
        %1772 = vmatpush.msra.mxu0 %v1771
        %v1773 = vand.u32 %v1268, 4294901760
        %v1774 = vsub.f32 %v1268, %v1773
        %v1775 = vand.u32 %v1774, 4294901760
        %v1776 = vsub.f32 %v1774, %v1775
        %v1777 = vand.u32 %v1776, 4294901760
        %1778 = vmatpush.msra.mxu0 %v1777
        %v1779 = vand.u32 %v1265, 4294901760
        %v1780 = vsub.f32 %v1265, %v1779
        %v1781 = vand.u32 %v1780, 4294901760
        %v1782 = vsub.f32 %v1780, %v1781
        %v1783 = vand.u32 %v1782, 4294901760
        %1784 = vmatpush.msra.mxu0 %v1783
        %v1785 = vand.u32 %v1262, 4294901760
        %v1786 = vsub.f32 %v1262, %v1785
        %v1787 = vand.u32 %v1786, 4294901760
        %v1788 = vsub.f32 %v1786, %v1787
        %v1789 = vand.u32 %v1788, 4294901760
        %1790 = vmatpush.msra.mxu0 %v1789
        %v1791 = vand.u32 %v1259, 4294901760
        %v1792 = vsub.f32 %v1259, %v1791
        %v1793 = vand.u32 %v1792, 4294901760
        %v1794 = vsub.f32 %v1792, %v1793
        %v1795 = vand.u32 %v1794, 4294901760
        %1796 = vmatpush.msra.mxu0 %v1795
        %v1797 = vand.u32 %v1256, 4294901760
        %v1798 = vsub.f32 %v1256, %v1797
        %v1799 = vand.u32 %v1798, 4294901760
        %v1800 = vsub.f32 %v1798, %v1799
        %v1801 = vand.u32 %v1800, 4294901760
        %1802 = vmatpush.msra.mxu0 %v1801
        %v1803 = vand.u32 %v1253, 4294901760
        %v1804 = vsub.f32 %v1253, %v1803
        %v1805 = vand.u32 %v1804, 4294901760
        %v1806 = vsub.f32 %v1804, %v1805
        %v1807 = vand.u32 %v1806, 4294901760
        %1808 = vmatpush.msra.mxu0 %v1807
        %v1809 = vand.u32 %v1250, 4294901760
        %v1810 = vsub.f32 %v1250, %v1809
        %v1811 = vand.u32 %v1810, 4294901760
        %v1812 = vsub.f32 %v1810, %v1811
        %v1813 = vand.u32 %v1812, 4294901760
        %1814 = vmatpush.msra.mxu0 %v1813
        %v1815 = vand.u32 %v1199, 4294901760
        %1816 = vmatmul.f32.gmra.mxu0 %v1815
        %v1817 = vpop.f32.mrf.mxu0
        %v1818 = vadd.f32 %v1709, %v1817
        %v1819 = vand.u32 %v1201, 4294901760
        %1820 = vmatmul.f32.gmra.mxu0 %v1819
        %v1821 = vpop.f32.mrf.mxu0
        %v1822 = vadd.f32 %v1717, %v1821
        %1823 = vdwg.mxu0
        %v1824 = vand.u32 %v1295, 4294901760
        %v1825 = vsub.f32 %v1295, %v1824
        %1826 = vmatpush.msra.mxu0 %v1825
        %v1827 = vand.u32 %v1292, 4294901760
        %v1828 = vsub.f32 %v1292, %v1827
        %1829 = vmatpush.msra.mxu0 %v1828
        %v1830 = vand.u32 %v1289, 4294901760
        %v1831 = vsub.f32 %v1289, %v1830
        %1832 = vmatpush.msra.mxu0 %v1831
        %v1833 = vand.u32 %v1286, 4294901760
        %v1834 = vsub.f32 %v1286, %v1833
        %1835 = vmatpush.msra.mxu0 %v1834
        %v1836 = vand.u32 %v1283, 4294901760
        %v1837 = vsub.f32 %v1283, %v1836
        %1838 = vmatpush.msra.mxu0 %v1837
        %v1839 = vand.u32 %v1280, 4294901760
        %v1840 = vsub.f32 %v1280, %v1839
        %1841 = vmatpush.msra.mxu0 %v1840
        %v1842 = vand.u32 %v1277, 4294901760
        %v1843 = vsub.f32 %v1277, %v1842
        %1844 = vmatpush.msra.mxu0 %v1843
        %v1845 = vand.u32 %v1274, 4294901760
        %v1846 = vsub.f32 %v1274, %v1845
        %1847 = vmatpush.msra.mxu0 %v1846
        %v1848 = vand.u32 %v1271, 4294901760
        %v1849 = vsub.f32 %v1271, %v1848
        %1850 = vmatpush.msra.mxu0 %v1849
        %v1851 = vand.u32 %v1268, 4294901760
        %v1852 = vsub.f32 %v1268, %v1851
        %1853 = vmatpush.msra.mxu0 %v1852
        %v1854 = vand.u32 %v1265, 4294901760
        %v1855 = vsub.f32 %v1265, %v1854
        %1856 = vmatpush.msra.mxu0 %v1855
        %v1857 = vand.u32 %v1262, 4294901760
        %v1858 = vsub.f32 %v1262, %v1857
        %1859 = vmatpush.msra.mxu0 %v1858
        %v1860 = vand.u32 %v1259, 4294901760
        %v1861 = vsub.f32 %v1259, %v1860
        %1862 = vmatpush.msra.mxu0 %v1861
        %v1863 = vand.u32 %v1256, 4294901760
        %v1864 = vsub.f32 %v1256, %v1863
        %1865 = vmatpush.msra.mxu0 %v1864
        %v1866 = vand.u32 %v1253, 4294901760
        %v1867 = vsub.f32 %v1253, %v1866
        %1868 = vmatpush.msra.mxu0 %v1867
        %v1869 = vand.u32 %v1250, 4294901760
        %v1870 = vsub.f32 %v1250, %v1869
        %1871 = vmatpush.msra.mxu0 %v1870
        %v1872 = vand.u32 %v1199, 4294901760
        %v1873 = vsub.f32 %v1199, %v1872
        %1874 = vmatmul.f32.gmra.mxu0 %v1873
        %v1875 = vpop.f32.mrf.mxu0
        %v1876 = vadd.f32 %v1818, %v1875
        %v1877 = vand.u32 %v1201, 4294901760
        %v1878 = vsub.f32 %v1201, %v1877
        %1879 = vmatmul.f32.gmra.mxu0 %v1878
        %v1880 = vpop.f32.mrf.mxu0
        %v1881 = vadd.f32 %v1822, %v1880
        %1882 = vdwg.mxu0
        %v1883 = vand.u32 %v1295, 4294901760
        %1884 = vmatpush.msra.mxu0 %v1883
        %v1885 = vand.u32 %v1292, 4294901760
        %1886 = vmatpush.msra.mxu0 %v1885
        %v1887 = vand.u32 %v1289, 4294901760
        %1888 = vmatpush.msra.mxu0 %v1887
        %v1889 = vand.u32 %v1286, 4294901760
        %1890 = vmatpush.msra.mxu0 %v1889
        %v1891 = vand.u32 %v1283, 4294901760
        %1892 = vmatpush.msra.mxu0 %v1891
        %v1893 = vand.u32 %v1280, 4294901760
        %1894 = vmatpush.msra.mxu0 %v1893
        %v1895 = vand.u32 %v1277, 4294901760
        %1896 = vmatpush.msra.mxu0 %v1895
        %v1897 = vand.u32 %v1274, 4294901760
        %1898 = vmatpush.msra.mxu0 %v1897
        %v1899 = vand.u32 %v1271, 4294901760
        %1900 = vmatpush.msra.mxu0 %v1899
        %v1901 = vand.u32 %v1268, 4294901760
        %1902 = vmatpush.msra.mxu0 %v1901
        %v1903 = vand.u32 %v1265, 4294901760
        %1904 = vmatpush.msra.mxu0 %v1903
        %v1905 = vand.u32 %v1262, 4294901760
        %1906 = vmatpush.msra.mxu0 %v1905
        %v1907 = vand.u32 %v1259, 4294901760
        %1908 = vmatpush.msra.mxu0 %v1907
        %v1909 = vand.u32 %v1256, 4294901760
        %1910 = vmatpush.msra.mxu0 %v1909
        %v1911 = vand.u32 %v1253, 4294901760
        %1912 = vmatpush.msra.mxu0 %v1911
        %v1913 = vand.u32 %v1250, 4294901760
        %1914 = vmatpush.msra.mxu0 %v1913
        %v1915 = vand.u32 %v1199, 4294901760
        %v1916 = vsub.f32 %v1199, %v1915
        %v1917 = vand.u32 %v1916, 4294901760
        %1918 = vmatmul.f32.gmra.mxu0 %v1917
        %v1919 = vpop.f32.mrf.mxu0
        %v1920 = vadd.f32 %v1876, %v1919
        %v1921 = vand.u32 %v1201, 4294901760
        %v1922 = vsub.f32 %v1201, %v1921
        %v1923 = vand.u32 %v1922, 4294901760
        %1924 = vmatmul.f32.gmra.mxu0 %v1923
        %v1925 = vpop.f32.mrf.mxu0
        %v1926 = vadd.f32 %v1881, %v1925
        %1927 = vdwg.mxu0
        %v1928 = vand.u32 %v1295, 4294901760
        %v1929 = vsub.f32 %v1295, %v1928
        %v1930 = vand.u32 %v1929, 4294901760
        %1931 = vmatpush.msra.mxu0 %v1930
        %v1932 = vand.u32 %v1292, 4294901760
        %v1933 = vsub.f32 %v1292, %v1932
        %v1934 = vand.u32 %v1933, 4294901760
        %1935 = vmatpush.msra.mxu0 %v1934
        %v1936 = vand.u32 %v1289, 4294901760
        %v1937 = vsub.f32 %v1289, %v1936
        %v1938 = vand.u32 %v1937, 4294901760
        %1939 = vmatpush.msra.mxu0 %v1938
        %v1940 = vand.u32 %v1286, 4294901760
        %v1941 = vsub.f32 %v1286, %v1940
        %v1942 = vand.u32 %v1941, 4294901760
        %1943 = vmatpush.msra.mxu0 %v1942
        %v1944 = vand.u32 %v1283, 4294901760
        %v1945 = vsub.f32 %v1283, %v1944
        %v1946 = vand.u32 %v1945, 4294901760
        %1947 = vmatpush.msra.mxu0 %v1946
        %v1948 = vand.u32 %v1280, 4294901760
        %v1949 = vsub.f32 %v1280, %v1948
        %v1950 = vand.u32 %v1949, 4294901760
        %1951 = vmatpush.msra.mxu0 %v1950
        %v1952 = vand.u32 %v1277, 4294901760
        %v1953 = vsub.f32 %v1277, %v1952
        %v1954 = vand.u32 %v1953, 4294901760
        %1955 = vmatpush.msra.mxu0 %v1954
        %v1956 = vand.u32 %v1274, 4294901760
        %v1957 = vsub.f32 %v1274, %v1956
        %v1958 = vand.u32 %v1957, 4294901760
        %1959 = vmatpush.msra.mxu0 %v1958
        %v1960 = vand.u32 %v1271, 4294901760
        %v1961 = vsub.f32 %v1271, %v1960
        %v1962 = vand.u32 %v1961, 4294901760
        %1963 = vmatpush.msra.mxu0 %v1962
        %v1964 = vand.u32 %v1268, 4294901760
        %v1965 = vsub.f32 %v1268, %v1964
        %v1966 = vand.u32 %v1965, 4294901760
        %1967 = vmatpush.msra.mxu0 %v1966
        %v1968 = vand.u32 %v1265, 4294901760
        %v1969 = vsub.f32 %v1265, %v1968
        %v1970 = vand.u32 %v1969, 4294901760
        %1971 = vmatpush.msra.mxu0 %v1970
        %v1972 = vand.u32 %v1262, 4294901760
        %v1973 = vsub.f32 %v1262, %v1972
        %v1974 = vand.u32 %v1973, 4294901760
        %1975 = vmatpush.msra.mxu0 %v1974
        %v1976 = vand.u32 %v1259, 4294901760
        %v1977 = vsub.f32 %v1259, %v1976
        %v1978 = vand.u32 %v1977, 4294901760
        %1979 = vmatpush.msra.mxu0 %v1978
        %v1980 = vand.u32 %v1256, 4294901760
        %v1981 = vsub.f32 %v1256, %v1980
        %v1982 = vand.u32 %v1981, 4294901760
        %1983 = vmatpush.msra.mxu0 %v1982
        %v1984 = vand.u32 %v1253, 4294901760
        %v1985 = vsub.f32 %v1253, %v1984
        %v1986 = vand.u32 %v1985, 4294901760
        %1987 = vmatpush.msra.mxu0 %v1986
        %v1988 = vand.u32 %v1250, 4294901760
        %v1989 = vsub.f32 %v1250, %v1988
        %v1990 = vand.u32 %v1989, 4294901760
        %1991 = vmatpush.msra.mxu0 %v1990
        %v1992 = vand.u32 %v1199, 4294901760
        %1993 = vmatmul.f32.gmra.mxu0 %v1992
        %v1994 = vpop.f32.mrf.mxu0
        %v1995 = vadd.f32 %v1920, %v1994
        %v1996 = vand.u32 %v1201, 4294901760
        %1997 = vmatmul.f32.gmra.mxu0 %v1996
        %v1998 = vpop.f32.mrf.mxu0
        %v1999 = vadd.f32 %v1926, %v1998
        %2000 = vdwg.mxu0
        %v2001 = vand.u32 %v1295, 4294901760
        %2002 = vmatpush.msra.mxu0 %v2001
        %v2003 = vand.u32 %v1292, 4294901760
        %2004 = vmatpush.msra.mxu0 %v2003
        %v2005 = vand.u32 %v1289, 4294901760
        %2006 = vmatpush.msra.mxu0 %v2005
        %v2007 = vand.u32 %v1286, 4294901760
        %2008 = vmatpush.msra.mxu0 %v2007
        %v2009 = vand.u32 %v1283, 4294901760
        %2010 = vmatpush.msra.mxu0 %v2009
        %v2011 = vand.u32 %v1280, 4294901760
        %2012 = vmatpush.msra.mxu0 %v2011
        %v2013 = vand.u32 %v1277, 4294901760
        %2014 = vmatpush.msra.mxu0 %v2013
        %v2015 = vand.u32 %v1274, 4294901760
        %2016 = vmatpush.msra.mxu0 %v2015
        %v2017 = vand.u32 %v1271, 4294901760
        %2018 = vmatpush.msra.mxu0 %v2017
        %v2019 = vand.u32 %v1268, 4294901760
        %2020 = vmatpush.msra.mxu0 %v2019
        %v2021 = vand.u32 %v1265, 4294901760
        %2022 = vmatpush.msra.mxu0 %v2021
        %v2023 = vand.u32 %v1262, 4294901760
        %2024 = vmatpush.msra.mxu0 %v2023
        %v2025 = vand.u32 %v1259, 4294901760
        %2026 = vmatpush.msra.mxu0 %v2025
        %v2027 = vand.u32 %v1256, 4294901760
        %2028 = vmatpush.msra.mxu0 %v2027
        %v2029 = vand.u32 %v1253, 4294901760
        %2030 = vmatpush.msra.mxu0 %v2029
        %v2031 = vand.u32 %v1250, 4294901760
        %2032 = vmatpush.msra.mxu0 %v2031
        %v2033 = vand.u32 %v1199, 4294901760
        %2034 = vmatmul.f32.gmra.mxu0 %v2033
        %v2035 = vpop.f32.mrf.mxu0
        %v2036 = vadd.f32 %v1995, %v2035
        %v2037 = vand.u32 %v1201, 4294901760
        %2038 = vmatmul.f32.gmra.mxu0 %v2037
        %v2039 = vpop.f32.mrf.mxu0
        %v2040 = vadd.f32 %v1999, %v2039
        %2041 = vdwg.mxu0
        %v2042 = vand.u32 %v1248, 4294901760
        %2043 = vmatpush.msra.mxu0 %v2042
        %v2044 = vand.u32 %v1245, 4294901760
        %2045 = vmatpush.msra.mxu0 %v2044
        %v2046 = vand.u32 %v1242, 4294901760
        %2047 = vmatpush.msra.mxu0 %v2046
        %v2048 = vand.u32 %v1239, 4294901760
        %2049 = vmatpush.msra.mxu0 %v2048
        %v2050 = vand.u32 %v1236, 4294901760
        %2051 = vmatpush.msra.mxu0 %v2050
        %v2052 = vand.u32 %v1233, 4294901760
        %2053 = vmatpush.msra.mxu0 %v2052
        %v2054 = vand.u32 %v1230, 4294901760
        %2055 = vmatpush.msra.mxu0 %v2054
        %v2056 = vand.u32 %v1227, 4294901760
        %2057 = vmatpush.msra.mxu0 %v2056
        %v2058 = vand.u32 %v1224, 4294901760
        %2059 = vmatpush.msra.mxu0 %v2058
        %v2060 = vand.u32 %v1221, 4294901760
        %2061 = vmatpush.msra.mxu0 %v2060
        %v2062 = vand.u32 %v1218, 4294901760
        %2063 = vmatpush.msra.mxu0 %v2062
        %v2064 = vand.u32 %v1215, 4294901760
        %2065 = vmatpush.msra.mxu0 %v2064
        %v2066 = vand.u32 %v1212, 4294901760
        %2067 = vmatpush.msra.mxu0 %v2066
        %v2068 = vand.u32 %v1209, 4294901760
        %2069 = vmatpush.msra.mxu0 %v2068
        %v2070 = vand.u32 %v1206, 4294901760
        %2071 = vmatpush.msra.mxu0 %v2070
        %v2072 = vand.u32 %v1203, 4294901760
        %2073 = vmatpush.msra.mxu0 %v2072
        %v2074 = vand.u32 %v1198, 4294901760
        %v2075 = vsub.f32 %v1198, %v2074
        %v2076 = vand.u32 %v2075, 4294901760
        %v2077 = vsub.f32 %v2075, %v2076
        %v2078 = vand.u32 %v2077, 4294901760
        %2079 = vmatmul.f32.gmra.mxu0 %v2078
        %v2080 = vpop.f32.mrf.mxu0
        %v2081 = vadd.f32 0.0, %v2080
        %v2082 = vand.u32 %v1200, 4294901760
        %v2083 = vsub.f32 %v1200, %v2082
        %v2084 = vand.u32 %v2083, 4294901760
        %v2085 = vsub.f32 %v2083, %v2084
        %v2086 = vand.u32 %v2085, 4294901760
        %2087 = vmatmul.f32.gmra.mxu0 %v2086
        %v2088 = vpop.f32.mrf.mxu0
        %v2089 = vadd.f32 0.0, %v2088
        %2090 = vdwg.mxu0
        %v2091 = vand.u32 %v1248, 4294901760
        %v2092 = vsub.f32 %v1248, %v2091
        %v2093 = vand.u32 %v2092, 4294901760
        %v2094 = vsub.f32 %v2092, %v2093
        %v2095 = vand.u32 %v2094, 4294901760
        %2096 = vmatpush.msra.mxu0 %v2095
        %v2097 = vand.u32 %v1245, 4294901760
        %v2098 = vsub.f32 %v1245, %v2097
        %v2099 = vand.u32 %v2098, 4294901760
        %v2100 = vsub.f32 %v2098, %v2099
        %v2101 = vand.u32 %v2100, 4294901760
        %2102 = vmatpush.msra.mxu0 %v2101
        %v2103 = vand.u32 %v1242, 4294901760
        %v2104 = vsub.f32 %v1242, %v2103
        %v2105 = vand.u32 %v2104, 4294901760
        %v2106 = vsub.f32 %v2104, %v2105
        %v2107 = vand.u32 %v2106, 4294901760
        %2108 = vmatpush.msra.mxu0 %v2107
        %v2109 = vand.u32 %v1239, 4294901760
        %v2110 = vsub.f32 %v1239, %v2109
        %v2111 = vand.u32 %v2110, 4294901760
        %v2112 = vsub.f32 %v2110, %v2111
        %v2113 = vand.u32 %v2112, 4294901760
        %2114 = vmatpush.msra.mxu0 %v2113
        %v2115 = vand.u32 %v1236, 4294901760
        %v2116 = vsub.f32 %v1236, %v2115
        %v2117 = vand.u32 %v2116, 4294901760
        %v2118 = vsub.f32 %v2116, %v2117
        %v2119 = vand.u32 %v2118, 4294901760
        %2120 = vmatpush.msra.mxu0 %v2119
        %v2121 = vand.u32 %v1233, 4294901760
        %v2122 = vsub.f32 %v1233, %v2121
        %v2123 = vand.u32 %v2122, 4294901760
        %v2124 = vsub.f32 %v2122, %v2123
        %v2125 = vand.u32 %v2124, 4294901760
        %2126 = vmatpush.msra.mxu0 %v2125
        %v2127 = vand.u32 %v1230, 4294901760
        %v2128 = vsub.f32 %v1230, %v2127
        %v2129 = vand.u32 %v2128, 4294901760
        %v2130 = vsub.f32 %v2128, %v2129
        %v2131 = vand.u32 %v2130, 4294901760
        %2132 = vmatpush.msra.mxu0 %v2131
        %v2133 = vand.u32 %v1227, 4294901760
        %v2134 = vsub.f32 %v1227, %v2133
        %v2135 = vand.u32 %v2134, 4294901760
        %v2136 = vsub.f32 %v2134, %v2135
        %v2137 = vand.u32 %v2136, 4294901760
        %2138 = vmatpush.msra.mxu0 %v2137
        %v2139 = vand.u32 %v1224, 4294901760
        %v2140 = vsub.f32 %v1224, %v2139
        %v2141 = vand.u32 %v2140, 4294901760
        %v2142 = vsub.f32 %v2140, %v2141
        %v2143 = vand.u32 %v2142, 4294901760
        %2144 = vmatpush.msra.mxu0 %v2143
        %v2145 = vand.u32 %v1221, 4294901760
        %v2146 = vsub.f32 %v1221, %v2145
        %v2147 = vand.u32 %v2146, 4294901760
        %v2148 = vsub.f32 %v2146, %v2147
        %v2149 = vand.u32 %v2148, 4294901760
        %2150 = vmatpush.msra.mxu0 %v2149
        %v2151 = vand.u32 %v1218, 4294901760
        %v2152 = vsub.f32 %v1218, %v2151
        %v2153 = vand.u32 %v2152, 4294901760
        %v2154 = vsub.f32 %v2152, %v2153
        %v2155 = vand.u32 %v2154, 4294901760
        %2156 = vmatpush.msra.mxu0 %v2155
        %v2157 = vand.u32 %v1215, 4294901760
        %v2158 = vsub.f32 %v1215, %v2157
        %v2159 = vand.u32 %v2158, 4294901760
        %v2160 = vsub.f32 %v2158, %v2159
        %v2161 = vand.u32 %v2160, 4294901760
        %2162 = vmatpush.msra.mxu0 %v2161
        %v2163 = vand.u32 %v1212, 4294901760
        %v2164 = vsub.f32 %v1212, %v2163
        %v2165 = vand.u32 %v2164, 4294901760
        %v2166 = vsub.f32 %v2164, %v2165
        %v2167 = vand.u32 %v2166, 4294901760
        %2168 = vmatpush.msra.mxu0 %v2167
        %v2169 = vand.u32 %v1209, 4294901760
        %v2170 = vsub.f32 %v1209, %v2169
        %v2171 = vand.u32 %v2170, 4294901760
        %v2172 = vsub.f32 %v2170, %v2171
        %v2173 = vand.u32 %v2172, 4294901760
        %2174 = vmatpush.msra.mxu0 %v2173
        %v2175 = vand.u32 %v1206, 4294901760
        %v2176 = vsub.f32 %v1206, %v2175
        %v2177 = vand.u32 %v2176, 4294901760
        %v2178 = vsub.f32 %v2176, %v2177
        %v2179 = vand.u32 %v2178, 4294901760
        %2180 = vmatpush.msra.mxu0 %v2179
        %v2181 = vand.u32 %v1203, 4294901760
        %v2182 = vsub.f32 %v1203, %v2181
        %v2183 = vand.u32 %v2182, 4294901760
        %v2184 = vsub.f32 %v2182, %v2183
        %v2185 = vand.u32 %v2184, 4294901760
        %2186 = vmatpush.msra.mxu0 %v2185
        %v2187 = vand.u32 %v1198, 4294901760
        %2188 = vmatmul.f32.gmra.mxu0 %v2187
        %v2189 = vpop.f32.mrf.mxu0
        %v2190 = vadd.f32 %v2081, %v2189
        %v2191 = vand.u32 %v1200, 4294901760
        %2192 = vmatmul.f32.gmra.mxu0 %v2191
        %v2193 = vpop.f32.mrf.mxu0
        %v2194 = vadd.f32 %v2089, %v2193
        %2195 = vdwg.mxu0
        %v2196 = vand.u32 %v1248, 4294901760
        %v2197 = vsub.f32 %v1248, %v2196
        %2198 = vmatpush.msra.mxu0 %v2197
        %v2199 = vand.u32 %v1245, 4294901760
        %v2200 = vsub.f32 %v1245, %v2199
        %2201 = vmatpush.msra.mxu0 %v2200
        %v2202 = vand.u32 %v1242, 4294901760
        %v2203 = vsub.f32 %v1242, %v2202
        %2204 = vmatpush.msra.mxu0 %v2203
        %v2205 = vand.u32 %v1239, 4294901760
        %v2206 = vsub.f32 %v1239, %v2205
        %2207 = vmatpush.msra.mxu0 %v2206
        %v2208 = vand.u32 %v1236, 4294901760
        %v2209 = vsub.f32 %v1236, %v2208
        %2210 = vmatpush.msra.mxu0 %v2209
        %v2211 = vand.u32 %v1233, 4294901760
        %v2212 = vsub.f32 %v1233, %v2211
        %2213 = vmatpush.msra.mxu0 %v2212
        %v2214 = vand.u32 %v1230, 4294901760
        %v2215 = vsub.f32 %v1230, %v2214
        %2216 = vmatpush.msra.mxu0 %v2215
        %v2217 = vand.u32 %v1227, 4294901760
        %v2218 = vsub.f32 %v1227, %v2217
        %2219 = vmatpush.msra.mxu0 %v2218
        %v2220 = vand.u32 %v1224, 4294901760
        %v2221 = vsub.f32 %v1224, %v2220
        %2222 = vmatpush.msra.mxu0 %v2221
        %v2223 = vand.u32 %v1221, 4294901760
        %v2224 = vsub.f32 %v1221, %v2223
        %2225 = vmatpush.msra.mxu0 %v2224
        %v2226 = vand.u32 %v1218, 4294901760
        %v2227 = vsub.f32 %v1218, %v2226
        %2228 = vmatpush.msra.mxu0 %v2227
        %v2229 = vand.u32 %v1215, 4294901760
        %v2230 = vsub.f32 %v1215, %v2229
        %2231 = vmatpush.msra.mxu0 %v2230
        %v2232 = vand.u32 %v1212, 4294901760
        %v2233 = vsub.f32 %v1212, %v2232
        %2234 = vmatpush.msra.mxu0 %v2233
        %v2235 = vand.u32 %v1209, 4294901760
        %v2236 = vsub.f32 %v1209, %v2235
        %2237 = vmatpush.msra.mxu0 %v2236
        %v2238 = vand.u32 %v1206, 4294901760
        %v2239 = vsub.f32 %v1206, %v2238
        %2240 = vmatpush.msra.mxu0 %v2239
        %v2241 = vand.u32 %v1203, 4294901760
        %v2242 = vsub.f32 %v1203, %v2241
        %2243 = vmatpush.msra.mxu0 %v2242
        %v2244 = vand.u32 %v1198, 4294901760
        %v2245 = vsub.f32 %v1198, %v2244
        %2246 = vmatmul.f32.gmra.mxu0 %v2245
        %v2247 = vpop.f32.mrf.mxu0
        %v2248 = vadd.f32 %v2190, %v2247
        %v2249 = vand.u32 %v1200, 4294901760
        %v2250 = vsub.f32 %v1200, %v2249
        %2251 = vmatmul.f32.gmra.mxu0 %v2250
        %v2252 = vpop.f32.mrf.mxu0
        %v2253 = vadd.f32 %v2194, %v2252
        %2254 = vdwg.mxu0
        %v2255 = vand.u32 %v1248, 4294901760
        %2256 = vmatpush.msra.mxu0 %v2255
        %v2257 = vand.u32 %v1245, 4294901760
        %2258 = vmatpush.msra.mxu0 %v2257
        %v2259 = vand.u32 %v1242, 4294901760
        %2260 = vmatpush.msra.mxu0 %v2259
        %v2261 = vand.u32 %v1239, 4294901760
        %2262 = vmatpush.msra.mxu0 %v2261
        %v2263 = vand.u32 %v1236, 4294901760
        %2264 = vmatpush.msra.mxu0 %v2263
        %v2265 = vand.u32 %v1233, 4294901760
        %2266 = vmatpush.msra.mxu0 %v2265
        %v2267 = vand.u32 %v1230, 4294901760
        %2268 = vmatpush.msra.mxu0 %v2267
        %v2269 = vand.u32 %v1227, 4294901760
        %2270 = vmatpush.msra.mxu0 %v2269
        %v2271 = vand.u32 %v1224, 4294901760
        %2272 = vmatpush.msra.mxu0 %v2271
        %v2273 = vand.u32 %v1221, 4294901760
        %2274 = vmatpush.msra.mxu0 %v2273
        %v2275 = vand.u32 %v1218, 4294901760
        %2276 = vmatpush.msra.mxu0 %v2275
        %v2277 = vand.u32 %v1215, 4294901760
        %2278 = vmatpush.msra.mxu0 %v2277
        %v2279 = vand.u32 %v1212, 4294901760
        %2280 = vmatpush.msra.mxu0 %v2279
        %v2281 = vand.u32 %v1209, 4294901760
        %2282 = vmatpush.msra.mxu0 %v2281
        %v2283 = vand.u32 %v1206, 4294901760
        %2284 = vmatpush.msra.mxu0 %v2283
        %v2285 = vand.u32 %v1203, 4294901760
        %2286 = vmatpush.msra.mxu0 %v2285
        %v2287 = vand.u32 %v1198, 4294901760
        %v2288 = vsub.f32 %v1198, %v2287
        %v2289 = vand.u32 %v2288, 4294901760
        %2290 = vmatmul.f32.gmra.mxu0 %v2289
        %v2291 = vpop.f32.mrf.mxu0
        %v2292 = vadd.f32 %v2248, %v2291
        %v2293 = vand.u32 %v1200, 4294901760
        %v2294 = vsub.f32 %v1200, %v2293
        %v2295 = vand.u32 %v2294, 4294901760
        %2296 = vmatmul.f32.gmra.mxu0 %v2295
        %v2297 = vpop.f32.mrf.mxu0
        %v2298 = vadd.f32 %v2253, %v2297
        %2299 = vdwg.mxu0
        %v2300 = vand.u32 %v1248, 4294901760
        %v2301 = vsub.f32 %v1248, %v2300
        %v2302 = vand.u32 %v2301, 4294901760
        %2303 = vmatpush.msra.mxu0 %v2302
        %v2304 = vand.u32 %v1245, 4294901760
        %v2305 = vsub.f32 %v1245, %v2304
        %v2306 = vand.u32 %v2305, 4294901760
        %2307 = vmatpush.msra.mxu0 %v2306
        %v2308 = vand.u32 %v1242, 4294901760
        %v2309 = vsub.f32 %v1242, %v2308
        %v2310 = vand.u32 %v2309, 4294901760
        %2311 = vmatpush.msra.mxu0 %v2310
        %v2312 = vand.u32 %v1239, 4294901760
        %v2313 = vsub.f32 %v1239, %v2312
        %v2314 = vand.u32 %v2313, 4294901760
        %2315 = vmatpush.msra.mxu0 %v2314
        %v2316 = vand.u32 %v1236, 4294901760
        %v2317 = vsub.f32 %v1236, %v2316
        %v2318 = vand.u32 %v2317, 4294901760
        %2319 = vmatpush.msra.mxu0 %v2318
        %v2320 = vand.u32 %v1233, 4294901760
        %v2321 = vsub.f32 %v1233, %v2320
        %v2322 = vand.u32 %v2321, 4294901760
        %2323 = vmatpush.msra.mxu0 %v2322
        %v2324 = vand.u32 %v1230, 4294901760
        %v2325 = vsub.f32 %v1230, %v2324
        %v2326 = vand.u32 %v2325, 4294901760
        %2327 = vmatpush.msra.mxu0 %v2326
        %v2328 = vand.u32 %v1227, 4294901760
        %v2329 = vsub.f32 %v1227, %v2328
        %v2330 = vand.u32 %v2329, 4294901760
        %2331 = vmatpush.msra.mxu0 %v2330
        %v2332 = vand.u32 %v1224, 4294901760
        %v2333 = vsub.f32 %v1224, %v2332
        %v2334 = vand.u32 %v2333, 4294901760
        %2335 = vmatpush.msra.mxu0 %v2334
        %v2336 = vand.u32 %v1221, 4294901760
        %v2337 = vsub.f32 %v1221, %v2336
        %v2338 = vand.u32 %v2337, 4294901760
        %2339 = vmatpush.msra.mxu0 %v2338
        %v2340 = vand.u32 %v1218, 4294901760
        %v2341 = vsub.f32 %v1218, %v2340
        %v2342 = vand.u32 %v2341, 4294901760
        %2343 = vmatpush.msra.mxu0 %v2342
        %v2344 = vand.u32 %v1215, 4294901760
        %v2345 = vsub.f32 %v1215, %v2344
        %v2346 = vand.u32 %v2345, 4294901760
        %2347 = vmatpush.msra.mxu0 %v2346
        %v2348 = vand.u32 %v1212, 4294901760
        %v2349 = vsub.f32 %v1212, %v2348
        %v2350 = vand.u32 %v2349, 4294901760
        %2351 = vmatpush.msra.mxu0 %v2350
        %v2352 = vand.u32 %v1209, 4294901760
        %v2353 = vsub.f32 %v1209, %v2352
        %v2354 = vand.u32 %v2353, 4294901760
        %2355 = vmatpush.msra.mxu0 %v2354
        %v2356 = vand.u32 %v1206, 4294901760
        %v2357 = vsub.f32 %v1206, %v2356
        %v2358 = vand.u32 %v2357, 4294901760
        %2359 = vmatpush.msra.mxu0 %v2358
        %v2360 = vand.u32 %v1203, 4294901760
        %v2361 = vsub.f32 %v1203, %v2360
        %v2362 = vand.u32 %v2361, 4294901760
        %2363 = vmatpush.msra.mxu0 %v2362
        %v2364 = vand.u32 %v1198, 4294901760
        %2365 = vmatmul.f32.gmra.mxu0 %v2364
        %v2366 = vpop.f32.mrf.mxu0
        %v2367 = vadd.f32 %v2292, %v2366
        %v2368 = vand.u32 %v1200, 4294901760
        %2369 = vmatmul.f32.gmra.mxu0 %v2368
        %v2370 = vpop.f32.mrf.mxu0
        %v2371 = vadd.f32 %v2298, %v2370
        %2372 = vdwg.mxu0
        %v2373 = vand.u32 %v1248, 4294901760
        %2374 = vmatpush.msra.mxu0 %v2373
        %v2375 = vand.u32 %v1245, 4294901760
        %2376 = vmatpush.msra.mxu0 %v2375
        %v2377 = vand.u32 %v1242, 4294901760
        %2378 = vmatpush.msra.mxu0 %v2377
        %v2379 = vand.u32 %v1239, 4294901760
        %2380 = vmatpush.msra.mxu0 %v2379
        %v2381 = vand.u32 %v1236, 4294901760
        %2382 = vmatpush.msra.mxu0 %v2381
        %v2383 = vand.u32 %v1233, 4294901760
        %2384 = vmatpush.msra.mxu0 %v2383
        %v2385 = vand.u32 %v1230, 4294901760
        %2386 = vmatpush.msra.mxu0 %v2385
        %v2387 = vand.u32 %v1227, 4294901760
        %2388 = vmatpush.msra.mxu0 %v2387
        %v2389 = vand.u32 %v1224, 4294901760
        %2390 = vmatpush.msra.mxu0 %v2389
        %v2391 = vand.u32 %v1221, 4294901760
        %2392 = vmatpush.msra.mxu0 %v2391
        %v2393 = vand.u32 %v1218, 4294901760
        %2394 = vmatpush.msra.mxu0 %v2393
        %v2395 = vand.u32 %v1215, 4294901760
        %2396 = vmatpush.msra.mxu0 %v2395
        %v2397 = vand.u32 %v1212, 4294901760
        %2398 = vmatpush.msra.mxu0 %v2397
        %v2399 = vand.u32 %v1209, 4294901760
        %2400 = vmatpush.msra.mxu0 %v2399
        %v2401 = vand.u32 %v1206, 4294901760
        %2402 = vmatpush.msra.mxu0 %v2401
        %v2403 = vand.u32 %v1203, 4294901760
        %2404 = vmatpush.msra.mxu0 %v2403
        %v2405 = vand.u32 %v1198, 4294901760
        %2406 = vmatmul.f32.gmra.mxu0 %v2405
        %v2407 = vpop.f32.mrf.mxu0
        %v2408 = vadd.f32 %v2367, %v2407
        %v2409 = vand.u32 %v1200, 4294901760
        %2410 = vmatmul.f32.gmra.mxu0 %v2409
        %v2411 = vpop.f32.mrf.mxu0
        %v2412 = vadd.f32 %v2371, %v2411
        %2413 = vdwg.mxu0
        %v2414 = vand.u32 %v1296, 4294901760
        %2415 = vmatpush.msra.mxu0 %v2414
        %v2416 = vand.u32 %v1293, 4294901760
        %2417 = vmatpush.msra.mxu0 %v2416
        %v2418 = vand.u32 %v1290, 4294901760
        %2419 = vmatpush.msra.mxu0 %v2418
        %v2420 = vand.u32 %v1287, 4294901760
        %2421 = vmatpush.msra.mxu0 %v2420
        %v2422 = vand.u32 %v1284, 4294901760
        %2423 = vmatpush.msra.mxu0 %v2422
        %v2424 = vand.u32 %v1281, 4294901760
        %2425 = vmatpush.msra.mxu0 %v2424
        %v2426 = vand.u32 %v1278, 4294901760
        %2427 = vmatpush.msra.mxu0 %v2426
        %v2428 = vand.u32 %v1275, 4294901760
        %2429 = vmatpush.msra.mxu0 %v2428
        %v2430 = vand.u32 %v1272, 4294901760
        %2431 = vmatpush.msra.mxu0 %v2430
        %v2432 = vand.u32 %v1269, 4294901760
        %2433 = vmatpush.msra.mxu0 %v2432
        %v2434 = vand.u32 %v1266, 4294901760
        %2435 = vmatpush.msra.mxu0 %v2434
        %v2436 = vand.u32 %v1263, 4294901760
        %2437 = vmatpush.msra.mxu0 %v2436
        %v2438 = vand.u32 %v1260, 4294901760
        %2439 = vmatpush.msra.mxu0 %v2438
        %v2440 = vand.u32 %v1257, 4294901760
        %2441 = vmatpush.msra.mxu0 %v2440
        %v2442 = vand.u32 %v1254, 4294901760
        %2443 = vmatpush.msra.mxu0 %v2442
        %v2444 = vand.u32 %v1251, 4294901760
        %2445 = vmatpush.msra.mxu0 %v2444
        %v2446 = vand.u32 %v1199, 4294901760
        %v2447 = vsub.f32 %v1199, %v2446
        %v2448 = vand.u32 %v2447, 4294901760
        %v2449 = vsub.f32 %v2447, %v2448
        %v2450 = vand.u32 %v2449, 4294901760
        %2451 = vmatmul.f32.gmra.mxu0 %v2450
        %v2452 = vpop.f32.mrf.mxu0
        %v2453 = vadd.f32 %v2408, %v2452
        %v2454 = vand.u32 %v1201, 4294901760
        %v2455 = vsub.f32 %v1201, %v2454
        %v2456 = vand.u32 %v2455, 4294901760
        %v2457 = vsub.f32 %v2455, %v2456
        %v2458 = vand.u32 %v2457, 4294901760
        %2459 = vmatmul.f32.gmra.mxu0 %v2458
        %v2460 = vpop.f32.mrf.mxu0
        %v2461 = vadd.f32 %v2412, %v2460
        %2462 = vdwg.mxu0
        %v2463 = vand.u32 %v1296, 4294901760
        %v2464 = vsub.f32 %v1296, %v2463
        %v2465 = vand.u32 %v2464, 4294901760
        %v2466 = vsub.f32 %v2464, %v2465
        %v2467 = vand.u32 %v2466, 4294901760
        %2468 = vmatpush.msra.mxu0 %v2467
        %v2469 = vand.u32 %v1293, 4294901760
        %v2470 = vsub.f32 %v1293, %v2469
        %v2471 = vand.u32 %v2470, 4294901760
        %v2472 = vsub.f32 %v2470, %v2471
        %v2473 = vand.u32 %v2472, 4294901760
        %2474 = vmatpush.msra.mxu0 %v2473
        %v2475 = vand.u32 %v1290, 4294901760
        %v2476 = vsub.f32 %v1290, %v2475
        %v2477 = vand.u32 %v2476, 4294901760
        %v2478 = vsub.f32 %v2476, %v2477
        %v2479 = vand.u32 %v2478, 4294901760
        %2480 = vmatpush.msra.mxu0 %v2479
        %v2481 = vand.u32 %v1287, 4294901760
        %v2482 = vsub.f32 %v1287, %v2481
        %v2483 = vand.u32 %v2482, 4294901760
        %v2484 = vsub.f32 %v2482, %v2483
        %v2485 = vand.u32 %v2484, 4294901760
        %2486 = vmatpush.msra.mxu0 %v2485
        %v2487 = vand.u32 %v1284, 4294901760
        %v2488 = vsub.f32 %v1284, %v2487
        %v2489 = vand.u32 %v2488, 4294901760
        %v2490 = vsub.f32 %v2488, %v2489
        %v2491 = vand.u32 %v2490, 4294901760
        %2492 = vmatpush.msra.mxu0 %v2491
        %v2493 = vand.u32 %v1281, 4294901760
        %v2494 = vsub.f32 %v1281, %v2493
        %v2495 = vand.u32 %v2494, 4294901760
        %v2496 = vsub.f32 %v2494, %v2495
        %v2497 = vand.u32 %v2496, 4294901760
        %2498 = vmatpush.msra.mxu0 %v2497
        %v2499 = vand.u32 %v1278, 4294901760
        %v2500 = vsub.f32 %v1278, %v2499
        %v2501 = vand.u32 %v2500, 4294901760
        %v2502 = vsub.f32 %v2500, %v2501
        %v2503 = vand.u32 %v2502, 4294901760
        %2504 = vmatpush.msra.mxu0 %v2503
        %v2505 = vand.u32 %v1275, 4294901760
        %v2506 = vsub.f32 %v1275, %v2505
        %v2507 = vand.u32 %v2506, 4294901760
        %v2508 = vsub.f32 %v2506, %v2507
        %v2509 = vand.u32 %v2508, 4294901760
        %2510 = vmatpush.msra.mxu0 %v2509
        %v2511 = vand.u32 %v1272, 4294901760
        %v2512 = vsub.f32 %v1272, %v2511
        %v2513 = vand.u32 %v2512, 4294901760
        %v2514 = vsub.f32 %v2512, %v2513
        %v2515 = vand.u32 %v2514, 4294901760
        %2516 = vmatpush.msra.mxu0 %v2515
        %v2517 = vand.u32 %v1269, 4294901760
        %v2518 = vsub.f32 %v1269, %v2517
        %v2519 = vand.u32 %v2518, 4294901760
        %v2520 = vsub.f32 %v2518, %v2519
        %v2521 = vand.u32 %v2520, 4294901760
        %2522 = vmatpush.msra.mxu0 %v2521
        %v2523 = vand.u32 %v1266, 4294901760
        %v2524 = vsub.f32 %v1266, %v2523
        %v2525 = vand.u32 %v2524, 4294901760
        %v2526 = vsub.f32 %v2524, %v2525
        %v2527 = vand.u32 %v2526, 4294901760
        %2528 = vmatpush.msra.mxu0 %v2527
        %v2529 = vand.u32 %v1263, 4294901760
        %v2530 = vsub.f32 %v1263, %v2529
        %v2531 = vand.u32 %v2530, 4294901760
        %v2532 = vsub.f32 %v2530, %v2531
        %v2533 = vand.u32 %v2532, 4294901760
        %2534 = vmatpush.msra.mxu0 %v2533
        %v2535 = vand.u32 %v1260, 4294901760
        %v2536 = vsub.f32 %v1260, %v2535
        %v2537 = vand.u32 %v2536, 4294901760
        %v2538 = vsub.f32 %v2536, %v2537
        %v2539 = vand.u32 %v2538, 4294901760
        %2540 = vmatpush.msra.mxu0 %v2539
        %v2541 = vand.u32 %v1257, 4294901760
        %v2542 = vsub.f32 %v1257, %v2541
        %v2543 = vand.u32 %v2542, 4294901760
        %v2544 = vsub.f32 %v2542, %v2543
        %v2545 = vand.u32 %v2544, 4294901760
        %2546 = vmatpush.msra.mxu0 %v2545
        %v2547 = vand.u32 %v1254, 4294901760
        %v2548 = vsub.f32 %v1254, %v2547
        %v2549 = vand.u32 %v2548, 4294901760
        %v2550 = vsub.f32 %v2548, %v2549
        %v2551 = vand.u32 %v2550, 4294901760
        %2552 = vmatpush.msra.mxu0 %v2551
        %v2553 = vand.u32 %v1251, 4294901760
        %v2554 = vsub.f32 %v1251, %v2553
        %v2555 = vand.u32 %v2554, 4294901760
        %v2556 = vsub.f32 %v2554, %v2555
        %v2557 = vand.u32 %v2556, 4294901760
        %2558 = vmatpush.msra.mxu0 %v2557
        %v2559 = vand.u32 %v1199, 4294901760
        %2560 = vmatmul.f32.gmra.mxu0 %v2559
        %v2561 = vpop.f32.mrf.mxu0
        %v2562 = vadd.f32 %v2453, %v2561
        %v2563 = vand.u32 %v1201, 4294901760
        %2564 = vmatmul.f32.gmra.mxu0 %v2563
        %v2565 = vpop.f32.mrf.mxu0
        %v2566 = vadd.f32 %v2461, %v2565
        %2567 = vdwg.mxu0
        %v2568 = vand.u32 %v1296, 4294901760
        %v2569 = vsub.f32 %v1296, %v2568
        %2570 = vmatpush.msra.mxu0 %v2569
        %v2571 = vand.u32 %v1293, 4294901760
        %v2572 = vsub.f32 %v1293, %v2571
        %2573 = vmatpush.msra.mxu0 %v2572
        %v2574 = vand.u32 %v1290, 4294901760
        %v2575 = vsub.f32 %v1290, %v2574
        %2576 = vmatpush.msra.mxu0 %v2575
        %v2577 = vand.u32 %v1287, 4294901760
        %v2578 = vsub.f32 %v1287, %v2577
        %2579 = vmatpush.msra.mxu0 %v2578
        %v2580 = vand.u32 %v1284, 4294901760
        %v2581 = vsub.f32 %v1284, %v2580
        %2582 = vmatpush.msra.mxu0 %v2581
        %v2583 = vand.u32 %v1281, 4294901760
        %v2584 = vsub.f32 %v1281, %v2583
        %2585 = vmatpush.msra.mxu0 %v2584
        %v2586 = vand.u32 %v1278, 4294901760
        %v2587 = vsub.f32 %v1278, %v2586
        %2588 = vmatpush.msra.mxu0 %v2587
        %v2589 = vand.u32 %v1275, 4294901760
        %v2590 = vsub.f32 %v1275, %v2589
        %2591 = vmatpush.msra.mxu0 %v2590
        %v2592 = vand.u32 %v1272, 4294901760
        %v2593 = vsub.f32 %v1272, %v2592
        %2594 = vmatpush.msra.mxu0 %v2593
        %v2595 = vand.u32 %v1269, 4294901760
        %v2596 = vsub.f32 %v1269, %v2595
        %2597 = vmatpush.msra.mxu0 %v2596
        %v2598 = vand.u32 %v1266, 4294901760
        %v2599 = vsub.f32 %v1266, %v2598
        %2600 = vmatpush.msra.mxu0 %v2599
        %v2601 = vand.u32 %v1263, 4294901760
        %v2602 = vsub.f32 %v1263, %v2601
        %2603 = vmatpush.msra.mxu0 %v2602
        %v2604 = vand.u32 %v1260, 4294901760
        %v2605 = vsub.f32 %v1260, %v2604
        %2606 = vmatpush.msra.mxu0 %v2605
        %v2607 = vand.u32 %v1257, 4294901760
        %v2608 = vsub.f32 %v1257, %v2607
        %2609 = vmatpush.msra.mxu0 %v2608
        %v2610 = vand.u32 %v1254, 4294901760
        %v2611 = vsub.f32 %v1254, %v2610
        %2612 = vmatpush.msra.mxu0 %v2611
        %v2613 = vand.u32 %v1251, 4294901760
        %v2614 = vsub.f32 %v1251, %v2613
        %2615 = vmatpush.msra.mxu0 %v2614
        %v2616 = vand.u32 %v1199, 4294901760
        %v2617 = vsub.f32 %v1199, %v2616
        %2618 = vmatmul.f32.gmra.mxu0 %v2617
        %v2619 = vpop.f32.mrf.mxu0
        %v2620 = vadd.f32 %v2562, %v2619
        %v2621 = vand.u32 %v1201, 4294901760
        %v2622 = vsub.f32 %v1201, %v2621
        %2623 = vmatmul.f32.gmra.mxu0 %v2622
        %v2624 = vpop.f32.mrf.mxu0
        %v2625 = vadd.f32 %v2566, %v2624
        %2626 = vdwg.mxu0
        %v2627 = vand.u32 %v1296, 4294901760
        %2628 = vmatpush.msra.mxu0 %v2627
        %v2629 = vand.u32 %v1293, 4294901760
        %2630 = vmatpush.msra.mxu0 %v2629
        %v2631 = vand.u32 %v1290, 4294901760
        %2632 = vmatpush.msra.mxu0 %v2631
        %v2633 = vand.u32 %v1287, 4294901760
        %2634 = vmatpush.msra.mxu0 %v2633
        %v2635 = vand.u32 %v1284, 4294901760
        %2636 = vmatpush.msra.mxu0 %v2635
        %v2637 = vand.u32 %v1281, 4294901760
        %2638 = vmatpush.msra.mxu0 %v2637
        %v2639 = vand.u32 %v1278, 4294901760
        %2640 = vmatpush.msra.mxu0 %v2639
        %v2641 = vand.u32 %v1275, 4294901760
        %2642 = vmatpush.msra.mxu0 %v2641
        %v2643 = vand.u32 %v1272, 4294901760
        %2644 = vmatpush.msra.mxu0 %v2643
        %v2645 = vand.u32 %v1269, 4294901760
        %2646 = vmatpush.msra.mxu0 %v2645
        %v2647 = vand.u32 %v1266, 4294901760
        %2648 = vmatpush.msra.mxu0 %v2647
        %v2649 = vand.u32 %v1263, 4294901760
        %2650 = vmatpush.msra.mxu0 %v2649
        %v2651 = vand.u32 %v1260, 4294901760
        %2652 = vmatpush.msra.mxu0 %v2651
        %v2653 = vand.u32 %v1257, 4294901760
        %2654 = vmatpush.msra.mxu0 %v2653
        %v2655 = vand.u32 %v1254, 4294901760
        %2656 = vmatpush.msra.mxu0 %v2655
        %v2657 = vand.u32 %v1251, 4294901760
        %2658 = vmatpush.msra.mxu0 %v2657
        %v2659 = vand.u32 %v1199, 4294901760
        %v2660 = vsub.f32 %v1199, %v2659
        %v2661 = vand.u32 %v2660, 4294901760
        %2662 = vmatmul.f32.gmra.mxu0 %v2661
        %v2663 = vpop.f32.mrf.mxu0
        %v2664 = vadd.f32 %v2620, %v2663
        %v2665 = vand.u32 %v1201, 4294901760
        %v2666 = vsub.f32 %v1201, %v2665
        %v2667 = vand.u32 %v2666, 4294901760
        %2668 = vmatmul.f32.gmra.mxu0 %v2667
        %v2669 = vpop.f32.mrf.mxu0
        %v2670 = vadd.f32 %v2625, %v2669
        %2671 = vdwg.mxu0
        %v2672 = vand.u32 %v1296, 4294901760
        %v2673 = vsub.f32 %v1296, %v2672
        %v2674 = vand.u32 %v2673, 4294901760
        %2675 = vmatpush.msra.mxu0 %v2674
        %v2676 = vand.u32 %v1293, 4294901760
        %v2677 = vsub.f32 %v1293, %v2676
        %v2678 = vand.u32 %v2677, 4294901760
        %2679 = vmatpush.msra.mxu0 %v2678
        %v2680 = vand.u32 %v1290, 4294901760
        %v2681 = vsub.f32 %v1290, %v2680
        %v2682 = vand.u32 %v2681, 4294901760
        %2683 = vmatpush.msra.mxu0 %v2682
        %v2684 = vand.u32 %v1287, 4294901760
        %v2685 = vsub.f32 %v1287, %v2684
        %v2686 = vand.u32 %v2685, 4294901760
        %2687 = vmatpush.msra.mxu0 %v2686
        %v2688 = vand.u32 %v1284, 4294901760
        %v2689 = vsub.f32 %v1284, %v2688
        %v2690 = vand.u32 %v2689, 4294901760
        %2691 = vmatpush.msra.mxu0 %v2690
        %v2692 = vand.u32 %v1281, 4294901760
        %v2693 = vsub.f32 %v1281, %v2692
        %v2694 = vand.u32 %v2693, 4294901760
        %2695 = vmatpush.msra.mxu0 %v2694
        %v2696 = vand.u32 %v1278, 4294901760
        %v2697 = vsub.f32 %v1278, %v2696
        %v2698 = vand.u32 %v2697, 4294901760
        %2699 = vmatpush.msra.mxu0 %v2698
        %v2700 = vand.u32 %v1275, 4294901760
        %v2701 = vsub.f32 %v1275, %v2700
        %v2702 = vand.u32 %v2701, 4294901760
        %2703 = vmatpush.msra.mxu0 %v2702
        %v2704 = vand.u32 %v1272, 4294901760
        %v2705 = vsub.f32 %v1272, %v2704
        %v2706 = vand.u32 %v2705, 4294901760
        %2707 = vmatpush.msra.mxu0 %v2706
        %v2708 = vand.u32 %v1269, 4294901760
        %v2709 = vsub.f32 %v1269, %v2708
        %v2710 = vand.u32 %v2709, 4294901760
        %2711 = vmatpush.msra.mxu0 %v2710
        %v2712 = vand.u32 %v1266, 4294901760
        %v2713 = vsub.f32 %v1266, %v2712
        %v2714 = vand.u32 %v2713, 4294901760
        %2715 = vmatpush.msra.mxu0 %v2714
        %v2716 = vand.u32 %v1263, 4294901760
        %v2717 = vsub.f32 %v1263, %v2716
        %v2718 = vand.u32 %v2717, 4294901760
        %2719 = vmatpush.msra.mxu0 %v2718
        %v2720 = vand.u32 %v1260, 4294901760
        %v2721 = vsub.f32 %v1260, %v2720
        %v2722 = vand.u32 %v2721, 4294901760
        %2723 = vmatpush.msra.mxu0 %v2722
        %v2724 = vand.u32 %v1257, 4294901760
        %v2725 = vsub.f32 %v1257, %v2724
        %v2726 = vand.u32 %v2725, 4294901760
        %2727 = vmatpush.msra.mxu0 %v2726
        %v2728 = vand.u32 %v1254, 4294901760
        %v2729 = vsub.f32 %v1254, %v2728
        %v2730 = vand.u32 %v2729, 4294901760
        %2731 = vmatpush.msra.mxu0 %v2730
        %v2732 = vand.u32 %v1251, 4294901760
        %v2733 = vsub.f32 %v1251, %v2732
        %v2734 = vand.u32 %v2733, 4294901760
        %2735 = vmatpush.msra.mxu0 %v2734
        %v2736 = vand.u32 %v1199, 4294901760
        %2737 = vmatmul.f32.gmra.mxu0 %v2736
        %v2738 = vpop.f32.mrf.mxu0
        %v2739 = vadd.f32 %v2664, %v2738
        %v2740 = vand.u32 %v1201, 4294901760
        %2741 = vmatmul.f32.gmra.mxu0 %v2740
        %v2742 = vpop.f32.mrf.mxu0
        %v2743 = vadd.f32 %v2670, %v2742
        %2744 = vdwg.mxu0
        %v2745 = vand.u32 %v1296, 4294901760
        %2746 = vmatpush.msra.mxu0 %v2745
        %v2747 = vand.u32 %v1293, 4294901760
        %2748 = vmatpush.msra.mxu0 %v2747
        %v2749 = vand.u32 %v1290, 4294901760
        %2750 = vmatpush.msra.mxu0 %v2749
        %v2751 = vand.u32 %v1287, 4294901760
        %2752 = vmatpush.msra.mxu0 %v2751
        %v2753 = vand.u32 %v1284, 4294901760
        %2754 = vmatpush.msra.mxu0 %v2753
        %v2755 = vand.u32 %v1281, 4294901760
        %2756 = vmatpush.msra.mxu0 %v2755
        %v2757 = vand.u32 %v1278, 4294901760
        %2758 = vmatpush.msra.mxu0 %v2757
        %v2759 = vand.u32 %v1275, 4294901760
        %2760 = vmatpush.msra.mxu0 %v2759
        %v2761 = vand.u32 %v1272, 4294901760
        %2762 = vmatpush.msra.mxu0 %v2761
        %v2763 = vand.u32 %v1269, 4294901760
        %2764 = vmatpush.msra.mxu0 %v2763
        %v2765 = vand.u32 %v1266, 4294901760
        %2766 = vmatpush.msra.mxu0 %v2765
        %v2767 = vand.u32 %v1263, 4294901760
        %2768 = vmatpush.msra.mxu0 %v2767
        %v2769 = vand.u32 %v1260, 4294901760
        %2770 = vmatpush.msra.mxu0 %v2769
        %v2771 = vand.u32 %v1257, 4294901760
        %2772 = vmatpush.msra.mxu0 %v2771
        %v2773 = vand.u32 %v1254, 4294901760
        %2774 = vmatpush.msra.mxu0 %v2773
        %v2775 = vand.u32 %v1251, 4294901760
        %2776 = vmatpush.msra.mxu0 %v2775
        %v2777 = vand.u32 %v1199, 4294901760
        %2778 = vmatmul.f32.gmra.mxu0 %v2777
        %v2779 = vpop.f32.mrf.mxu0
        %v2780 = vadd.f32 %v2739, %v2779
        %v2781 = vand.u32 %v1201, 4294901760
        %2782 = vmatmul.f32.gmra.mxu0 %v2781
        %v2783 = vpop.f32.mrf.mxu0
        %v2784 = vadd.f32 %v2743, %v2783
        %2785 = vdwg.mxu0
        %v2786 = vand.u32 %v1249, 4294901760
        %2787 = vmatpush.msra.mxu0 %v2786
        %v2788 = vand.u32 %v1246, 4294901760
        %2789 = vmatpush.msra.mxu0 %v2788
        %v2790 = vand.u32 %v1243, 4294901760
        %2791 = vmatpush.msra.mxu0 %v2790
        %v2792 = vand.u32 %v1240, 4294901760
        %2793 = vmatpush.msra.mxu0 %v2792
        %v2794 = vand.u32 %v1237, 4294901760
        %2795 = vmatpush.msra.mxu0 %v2794
        %v2796 = vand.u32 %v1234, 4294901760
        %2797 = vmatpush.msra.mxu0 %v2796
        %v2798 = vand.u32 %v1231, 4294901760
        %2799 = vmatpush.msra.mxu0 %v2798
        %v2800 = vand.u32 %v1228, 4294901760
        %2801 = vmatpush.msra.mxu0 %v2800
        %v2802 = vand.u32 %v1225, 4294901760
        %2803 = vmatpush.msra.mxu0 %v2802
        %v2804 = vand.u32 %v1222, 4294901760
        %2805 = vmatpush.msra.mxu0 %v2804
        %v2806 = vand.u32 %v1219, 4294901760
        %2807 = vmatpush.msra.mxu0 %v2806
        %v2808 = vand.u32 %v1216, 4294901760
        %2809 = vmatpush.msra.mxu0 %v2808
        %v2810 = vand.u32 %v1213, 4294901760
        %2811 = vmatpush.msra.mxu0 %v2810
        %v2812 = vand.u32 %v1210, 4294901760
        %2813 = vmatpush.msra.mxu0 %v2812
        %v2814 = vand.u32 %v1207, 4294901760
        %2815 = vmatpush.msra.mxu0 %v2814
        %v2816 = vand.u32 %v1204, 4294901760
        %2817 = vmatpush.msra.mxu0 %v2816
        %v2818 = vand.u32 %v1198, 4294901760
        %v2819 = vsub.f32 %v1198, %v2818
        %v2820 = vand.u32 %v2819, 4294901760
        %v2821 = vsub.f32 %v2819, %v2820
        %v2822 = vand.u32 %v2821, 4294901760
        %2823 = vmatmul.f32.gmra.mxu0 %v2822
        %v2824 = vpop.f32.mrf.mxu0
        %v2825 = vadd.f32 0.0, %v2824
        %v2826 = vand.u32 %v1200, 4294901760
        %v2827 = vsub.f32 %v1200, %v2826
        %v2828 = vand.u32 %v2827, 4294901760
        %v2829 = vsub.f32 %v2827, %v2828
        %v2830 = vand.u32 %v2829, 4294901760
        %2831 = vmatmul.f32.gmra.mxu0 %v2830
        %v2832 = vpop.f32.mrf.mxu0
        %v2833 = vadd.f32 0.0, %v2832
        %2834 = vdwg.mxu0
        %v2835 = vand.u32 %v1249, 4294901760
        %v2836 = vsub.f32 %v1249, %v2835
        %v2837 = vand.u32 %v2836, 4294901760
        %v2838 = vsub.f32 %v2836, %v2837
        %v2839 = vand.u32 %v2838, 4294901760
        %2840 = vmatpush.msra.mxu0 %v2839
        %v2841 = vand.u32 %v1246, 4294901760
        %v2842 = vsub.f32 %v1246, %v2841
        %v2843 = vand.u32 %v2842, 4294901760
        %v2844 = vsub.f32 %v2842, %v2843
        %v2845 = vand.u32 %v2844, 4294901760
        %2846 = vmatpush.msra.mxu0 %v2845
        %v2847 = vand.u32 %v1243, 4294901760
        %v2848 = vsub.f32 %v1243, %v2847
        %v2849 = vand.u32 %v2848, 4294901760
        %v2850 = vsub.f32 %v2848, %v2849
        %v2851 = vand.u32 %v2850, 4294901760
        %2852 = vmatpush.msra.mxu0 %v2851
        %v2853 = vand.u32 %v1240, 4294901760
        %v2854 = vsub.f32 %v1240, %v2853
        %v2855 = vand.u32 %v2854, 4294901760
        %v2856 = vsub.f32 %v2854, %v2855
        %v2857 = vand.u32 %v2856, 4294901760
        %2858 = vmatpush.msra.mxu0 %v2857
        %v2859 = vand.u32 %v1237, 4294901760
        %v2860 = vsub.f32 %v1237, %v2859
        %v2861 = vand.u32 %v2860, 4294901760
        %v2862 = vsub.f32 %v2860, %v2861
        %v2863 = vand.u32 %v2862, 4294901760
        %2864 = vmatpush.msra.mxu0 %v2863
        %v2865 = vand.u32 %v1234, 4294901760
        %v2866 = vsub.f32 %v1234, %v2865
        %v2867 = vand.u32 %v2866, 4294901760
        %v2868 = vsub.f32 %v2866, %v2867
        %v2869 = vand.u32 %v2868, 4294901760
        %2870 = vmatpush.msra.mxu0 %v2869
        %v2871 = vand.u32 %v1231, 4294901760
        %v2872 = vsub.f32 %v1231, %v2871
        %v2873 = vand.u32 %v2872, 4294901760
        %v2874 = vsub.f32 %v2872, %v2873
        %v2875 = vand.u32 %v2874, 4294901760
        %2876 = vmatpush.msra.mxu0 %v2875
        %v2877 = vand.u32 %v1228, 4294901760
        %v2878 = vsub.f32 %v1228, %v2877
        %v2879 = vand.u32 %v2878, 4294901760
        %v2880 = vsub.f32 %v2878, %v2879
        %v2881 = vand.u32 %v2880, 4294901760
        %2882 = vmatpush.msra.mxu0 %v2881
        %v2883 = vand.u32 %v1225, 4294901760
        %v2884 = vsub.f32 %v1225, %v2883
        %v2885 = vand.u32 %v2884, 4294901760
        %v2886 = vsub.f32 %v2884, %v2885
        %v2887 = vand.u32 %v2886, 4294901760
        %2888 = vmatpush.msra.mxu0 %v2887
        %v2889 = vand.u32 %v1222, 4294901760
        %v2890 = vsub.f32 %v1222, %v2889
        %v2891 = vand.u32 %v2890, 4294901760
        %v2892 = vsub.f32 %v2890, %v2891
        %v2893 = vand.u32 %v2892, 4294901760
        %2894 = vmatpush.msra.mxu0 %v2893
        %v2895 = vand.u32 %v1219, 4294901760
        %v2896 = vsub.f32 %v1219, %v2895
        %v2897 = vand.u32 %v2896, 4294901760
        %v2898 = vsub.f32 %v2896, %v2897
        %v2899 = vand.u32 %v2898, 4294901760
        %2900 = vmatpush.msra.mxu0 %v2899
        %v2901 = vand.u32 %v1216, 4294901760
        %v2902 = vsub.f32 %v1216, %v2901
        %v2903 = vand.u32 %v2902, 4294901760
        %v2904 = vsub.f32 %v2902, %v2903
        %v2905 = vand.u32 %v2904, 4294901760
        %2906 = vmatpush.msra.mxu0 %v2905
        %v2907 = vand.u32 %v1213, 4294901760
        %v2908 = vsub.f32 %v1213, %v2907
        %v2909 = vand.u32 %v2908, 4294901760
        %v2910 = vsub.f32 %v2908, %v2909
        %v2911 = vand.u32 %v2910, 4294901760
        %2912 = vmatpush.msra.mxu0 %v2911
        %v2913 = vand.u32 %v1210, 4294901760
        %v2914 = vsub.f32 %v1210, %v2913
        %v2915 = vand.u32 %v2914, 4294901760
        %v2916 = vsub.f32 %v2914, %v2915
        %v2917 = vand.u32 %v2916, 4294901760
        %2918 = vmatpush.msra.mxu0 %v2917
        %v2919 = vand.u32 %v1207, 4294901760
        %v2920 = vsub.f32 %v1207, %v2919
        %v2921 = vand.u32 %v2920, 4294901760
        %v2922 = vsub.f32 %v2920, %v2921
        %v2923 = vand.u32 %v2922, 4294901760
        %2924 = vmatpush.msra.mxu0 %v2923
        %v2925 = vand.u32 %v1204, 4294901760
        %v2926 = vsub.f32 %v1204, %v2925
        %v2927 = vand.u32 %v2926, 4294901760
        %v2928 = vsub.f32 %v2926, %v2927
        %v2929 = vand.u32 %v2928, 4294901760
        %2930 = vmatpush.msra.mxu0 %v2929
        %v2931 = vand.u32 %v1198, 4294901760
        %2932 = vmatmul.f32.gmra.mxu0 %v2931
        %v2933 = vpop.f32.mrf.mxu0
        %v2934 = vadd.f32 %v2825, %v2933
        %v2935 = vand.u32 %v1200, 4294901760
        %2936 = vmatmul.f32.gmra.mxu0 %v2935
        %v2937 = vpop.f32.mrf.mxu0
        %v2938 = vadd.f32 %v2833, %v2937
        %2939 = vdwg.mxu0
        %v2940 = vand.u32 %v1249, 4294901760
        %v2941 = vsub.f32 %v1249, %v2940
        %2942 = vmatpush.msra.mxu0 %v2941
        %v2943 = vand.u32 %v1246, 4294901760
        %v2944 = vsub.f32 %v1246, %v2943
        %2945 = vmatpush.msra.mxu0 %v2944
        %v2946 = vand.u32 %v1243, 4294901760
        %v2947 = vsub.f32 %v1243, %v2946
        %2948 = vmatpush.msra.mxu0 %v2947
        %v2949 = vand.u32 %v1240, 4294901760
        %v2950 = vsub.f32 %v1240, %v2949
        %2951 = vmatpush.msra.mxu0 %v2950
        %v2952 = vand.u32 %v1237, 4294901760
        %v2953 = vsub.f32 %v1237, %v2952
        %2954 = vmatpush.msra.mxu0 %v2953
        %v2955 = vand.u32 %v1234, 4294901760
        %v2956 = vsub.f32 %v1234, %v2955
        %2957 = vmatpush.msra.mxu0 %v2956
        %v2958 = vand.u32 %v1231, 4294901760
        %v2959 = vsub.f32 %v1231, %v2958
        %2960 = vmatpush.msra.mxu0 %v2959
        %v2961 = vand.u32 %v1228, 4294901760
        %v2962 = vsub.f32 %v1228, %v2961
        %2963 = vmatpush.msra.mxu0 %v2962
        %v2964 = vand.u32 %v1225, 4294901760
        %v2965 = vsub.f32 %v1225, %v2964
        %2966 = vmatpush.msra.mxu0 %v2965
        %v2967 = vand.u32 %v1222, 4294901760
        %v2968 = vsub.f32 %v1222, %v2967
        %2969 = vmatpush.msra.mxu0 %v2968
        %v2970 = vand.u32 %v1219, 4294901760
        %v2971 = vsub.f32 %v1219, %v2970
        %2972 = vmatpush.msra.mxu0 %v2971
        %v2973 = vand.u32 %v1216, 4294901760
        %v2974 = vsub.f32 %v1216, %v2973
        %2975 = vmatpush.msra.mxu0 %v2974
        %v2976 = vand.u32 %v1213, 4294901760
        %v2977 = vsub.f32 %v1213, %v2976
        %2978 = vmatpush.msra.mxu0 %v2977
        %v2979 = vand.u32 %v1210, 4294901760
        %v2980 = vsub.f32 %v1210, %v2979
        %2981 = vmatpush.msra.mxu0 %v2980
        %v2982 = vand.u32 %v1207, 4294901760
        %v2983 = vsub.f32 %v1207, %v2982
        %2984 = vmatpush.msra.mxu0 %v2983
        %v2985 = vand.u32 %v1204, 4294901760
        %v2986 = vsub.f32 %v1204, %v2985
        %2987 = vmatpush.msra.mxu0 %v2986
        %v2988 = vand.u32 %v1198, 4294901760
        %v2989 = vsub.f32 %v1198, %v2988
        %2990 = vmatmul.f32.gmra.mxu0 %v2989
        %v2991 = vpop.f32.mrf.mxu0
        %v2992 = vadd.f32 %v2934, %v2991
        %v2993 = vand.u32 %v1200, 4294901760
        %v2994 = vsub.f32 %v1200, %v2993
        %2995 = vmatmul.f32.gmra.mxu0 %v2994
        %v2996 = vpop.f32.mrf.mxu0
        %v2997 = vadd.f32 %v2938, %v2996
        %2998 = vdwg.mxu0
        %v2999 = vand.u32 %v1249, 4294901760
        %3000 = vmatpush.msra.mxu0 %v2999
        %v3001 = vand.u32 %v1246, 4294901760
        %3002 = vmatpush.msra.mxu0 %v3001
        %v3003 = vand.u32 %v1243, 4294901760
        %3004 = vmatpush.msra.mxu0 %v3003
        %v3005 = vand.u32 %v1240, 4294901760
        %3006 = vmatpush.msra.mxu0 %v3005
        %v3007 = vand.u32 %v1237, 4294901760
        %3008 = vmatpush.msra.mxu0 %v3007
        %v3009 = vand.u32 %v1234, 4294901760
        %3010 = vmatpush.msra.mxu0 %v3009
        %v3011 = vand.u32 %v1231, 4294901760
        %3012 = vmatpush.msra.mxu0 %v3011
        %v3013 = vand.u32 %v1228, 4294901760
        %3014 = vmatpush.msra.mxu0 %v3013
        %v3015 = vand.u32 %v1225, 4294901760
        %3016 = vmatpush.msra.mxu0 %v3015
        %v3017 = vand.u32 %v1222, 4294901760
        %3018 = vmatpush.msra.mxu0 %v3017
        %v3019 = vand.u32 %v1219, 4294901760
        %3020 = vmatpush.msra.mxu0 %v3019
        %v3021 = vand.u32 %v1216, 4294901760
        %3022 = vmatpush.msra.mxu0 %v3021
        %v3023 = vand.u32 %v1213, 4294901760
        %3024 = vmatpush.msra.mxu0 %v3023
        %v3025 = vand.u32 %v1210, 4294901760
        %3026 = vmatpush.msra.mxu0 %v3025
        %v3027 = vand.u32 %v1207, 4294901760
        %3028 = vmatpush.msra.mxu0 %v3027
        %v3029 = vand.u32 %v1204, 4294901760
        %3030 = vmatpush.msra.mxu0 %v3029
        %v3031 = vand.u32 %v1198, 4294901760
        %v3032 = vsub.f32 %v1198, %v3031
        %v3033 = vand.u32 %v3032, 4294901760
        %3034 = vmatmul.f32.gmra.mxu0 %v3033
        %v3035 = vpop.f32.mrf.mxu0
        %v3036 = vadd.f32 %v2992, %v3035
        %v3037 = vand.u32 %v1200, 4294901760
        %v3038 = vsub.f32 %v1200, %v3037
        %v3039 = vand.u32 %v3038, 4294901760
        %3040 = vmatmul.f32.gmra.mxu0 %v3039
        %v3041 = vpop.f32.mrf.mxu0
        %v3042 = vadd.f32 %v2997, %v3041
        %3043 = vdwg.mxu0
        %v3044 = vand.u32 %v1249, 4294901760
        %v3045 = vsub.f32 %v1249, %v3044
        %v3046 = vand.u32 %v3045, 4294901760
        %3047 = vmatpush.msra.mxu0 %v3046
        %v3048 = vand.u32 %v1246, 4294901760
        %v3049 = vsub.f32 %v1246, %v3048
        %v3050 = vand.u32 %v3049, 4294901760
        %3051 = vmatpush.msra.mxu0 %v3050
        %v3052 = vand.u32 %v1243, 4294901760
        %v3053 = vsub.f32 %v1243, %v3052
        %v3054 = vand.u32 %v3053, 4294901760
        %3055 = vmatpush.msra.mxu0 %v3054
        %v3056 = vand.u32 %v1240, 4294901760
        %v3057 = vsub.f32 %v1240, %v3056
        %v3058 = vand.u32 %v3057, 4294901760
        %3059 = vmatpush.msra.mxu0 %v3058
        %v3060 = vand.u32 %v1237, 4294901760
        %v3061 = vsub.f32 %v1237, %v3060
        %v3062 = vand.u32 %v3061, 4294901760
        %3063 = vmatpush.msra.mxu0 %v3062
        %v3064 = vand.u32 %v1234, 4294901760
        %v3065 = vsub.f32 %v1234, %v3064
        %v3066 = vand.u32 %v3065, 4294901760
        %3067 = vmatpush.msra.mxu0 %v3066
        %v3068 = vand.u32 %v1231, 4294901760
        %v3069 = vsub.f32 %v1231, %v3068
        %v3070 = vand.u32 %v3069, 4294901760
        %3071 = vmatpush.msra.mxu0 %v3070
        %v3072 = vand.u32 %v1228, 4294901760
        %v3073 = vsub.f32 %v1228, %v3072
        %v3074 = vand.u32 %v3073, 4294901760
        %3075 = vmatpush.msra.mxu0 %v3074
        %v3076 = vand.u32 %v1225, 4294901760
        %v3077 = vsub.f32 %v1225, %v3076
        %v3078 = vand.u32 %v3077, 4294901760
        %3079 = vmatpush.msra.mxu0 %v3078
        %v3080 = vand.u32 %v1222, 4294901760
        %v3081 = vsub.f32 %v1222, %v3080
        %v3082 = vand.u32 %v3081, 4294901760
        %3083 = vmatpush.msra.mxu0 %v3082
        %v3084 = vand.u32 %v1219, 4294901760
        %v3085 = vsub.f32 %v1219, %v3084
        %v3086 = vand.u32 %v3085, 4294901760
        %3087 = vmatpush.msra.mxu0 %v3086
        %v3088 = vand.u32 %v1216, 4294901760
        %v3089 = vsub.f32 %v1216, %v3088
        %v3090 = vand.u32 %v3089, 4294901760
        %3091 = vmatpush.msra.mxu0 %v3090
        %v3092 = vand.u32 %v1213, 4294901760
        %v3093 = vsub.f32 %v1213, %v3092
        %v3094 = vand.u32 %v3093, 4294901760
        %3095 = vmatpush.msra.mxu0 %v3094
        %v3096 = vand.u32 %v1210, 4294901760
        %v3097 = vsub.f32 %v1210, %v3096
        %v3098 = vand.u32 %v3097, 4294901760
        %3099 = vmatpush.msra.mxu0 %v3098
        %v3100 = vand.u32 %v1207, 4294901760
        %v3101 = vsub.f32 %v1207, %v3100
        %v3102 = vand.u32 %v3101, 4294901760
        %3103 = vmatpush.msra.mxu0 %v3102
        %v3104 = vand.u32 %v1204, 4294901760
        %v3105 = vsub.f32 %v1204, %v3104
        %v3106 = vand.u32 %v3105, 4294901760
        %3107 = vmatpush.msra.mxu0 %v3106
        %v3108 = vand.u32 %v1198, 4294901760
        %3109 = vmatmul.f32.gmra.mxu0 %v3108
        %v3110 = vpop.f32.mrf.mxu0
        %v3111 = vadd.f32 %v3036, %v3110
        %v3112 = vand.u32 %v1200, 4294901760
        %3113 = vmatmul.f32.gmra.mxu0 %v3112
        %v3114 = vpop.f32.mrf.mxu0
        %v3115 = vadd.f32 %v3042, %v3114
        %3116 = vdwg.mxu0
        %v3117 = vand.u32 %v1249, 4294901760
        %3118 = vmatpush.msra.mxu0 %v3117
        %v3119 = vand.u32 %v1246, 4294901760
        %3120 = vmatpush.msra.mxu0 %v3119
        %v3121 = vand.u32 %v1243, 4294901760
        %3122 = vmatpush.msra.mxu0 %v3121
        %v3123 = vand.u32 %v1240, 4294901760
        %3124 = vmatpush.msra.mxu0 %v3123
        %v3125 = vand.u32 %v1237, 4294901760
        %3126 = vmatpush.msra.mxu0 %v3125
        %v3127 = vand.u32 %v1234, 4294901760
        %3128 = vmatpush.msra.mxu0 %v3127
        %v3129 = vand.u32 %v1231, 4294901760
        %3130 = vmatpush.msra.mxu0 %v3129
        %v3131 = vand.u32 %v1228, 4294901760
        %3132 = vmatpush.msra.mxu0 %v3131
        %v3133 = vand.u32 %v1225, 4294901760
        %3134 = vmatpush.msra.mxu0 %v3133
        %v3135 = vand.u32 %v1222, 4294901760
        %3136 = vmatpush.msra.mxu0 %v3135
        %v3137 = vand.u32 %v1219, 4294901760
        %3138 = vmatpush.msra.mxu0 %v3137
        %v3139 = vand.u32 %v1216, 4294901760
        %3140 = vmatpush.msra.mxu0 %v3139
        %v3141 = vand.u32 %v1213, 4294901760
        %3142 = vmatpush.msra.mxu0 %v3141
        %v3143 = vand.u32 %v1210, 4294901760
        %3144 = vmatpush.msra.mxu0 %v3143
        %v3145 = vand.u32 %v1207, 4294901760
        %3146 = vmatpush.msra.mxu0 %v3145
        %v3147 = vand.u32 %v1204, 4294901760
        %3148 = vmatpush.msra.mxu0 %v3147
        %v3149 = vand.u32 %v1198, 4294901760
        %3150 = vmatmul.f32.gmra.mxu0 %v3149
        %v3151 = vpop.f32.mrf.mxu0
        %v3152 = vadd.f32 %v3111, %v3151
        %v3153 = vand.u32 %v1200, 4294901760
        %3154 = vmatmul.f32.gmra.mxu0 %v3153
        %v3155 = vpop.f32.mrf.mxu0
        %v3156 = vadd.f32 %v3115, %v3155
        %3157 = vdwg.mxu0
        %v3158 = vand.u32 %v1297, 4294901760
        %3159 = vmatpush.msra.mxu0 %v3158
        %v3160 = vand.u32 %v1294, 4294901760
        %3161 = vmatpush.msra.mxu0 %v3160
        %v3162 = vand.u32 %v1291, 4294901760
        %3163 = vmatpush.msra.mxu0 %v3162
        %v3164 = vand.u32 %v1288, 4294901760
        %3165 = vmatpush.msra.mxu0 %v3164
        %v3166 = vand.u32 %v1285, 4294901760
        %3167 = vmatpush.msra.mxu0 %v3166
        %v3168 = vand.u32 %v1282, 4294901760
        %3169 = vmatpush.msra.mxu0 %v3168
        %v3170 = vand.u32 %v1279, 4294901760
        %3171 = vmatpush.msra.mxu0 %v3170
        %v3172 = vand.u32 %v1276, 4294901760
        %3173 = vmatpush.msra.mxu0 %v3172
        %v3174 = vand.u32 %v1273, 4294901760
        %3175 = vmatpush.msra.mxu0 %v3174
        %v3176 = vand.u32 %v1270, 4294901760
        %3177 = vmatpush.msra.mxu0 %v3176
        %v3178 = vand.u32 %v1267, 4294901760
        %3179 = vmatpush.msra.mxu0 %v3178
        %v3180 = vand.u32 %v1264, 4294901760
        %3181 = vmatpush.msra.mxu0 %v3180
        %v3182 = vand.u32 %v1261, 4294901760
        %3183 = vmatpush.msra.mxu0 %v3182
        %v3184 = vand.u32 %v1258, 4294901760
        %3185 = vmatpush.msra.mxu0 %v3184
        %v3186 = vand.u32 %v1255, 4294901760
        %3187 = vmatpush.msra.mxu0 %v3186
        %v3188 = vand.u32 %v1252, 4294901760
        %3189 = vmatpush.msra.mxu0 %v3188
        %v3190 = vand.u32 %v1199, 4294901760
        %v3191 = vsub.f32 %v1199, %v3190
        %v3192 = vand.u32 %v3191, 4294901760
        %v3193 = vsub.f32 %v3191, %v3192
        %v3194 = vand.u32 %v3193, 4294901760
        %3195 = vmatmul.f32.gmra.mxu0 %v3194
        %v3196 = vpop.f32.mrf.mxu0
        %v3197 = vadd.f32 %v3152, %v3196
        %v3198 = vand.u32 %v1201, 4294901760
        %v3199 = vsub.f32 %v1201, %v3198
        %v3200 = vand.u32 %v3199, 4294901760
        %v3201 = vsub.f32 %v3199, %v3200
        %v3202 = vand.u32 %v3201, 4294901760
        %3203 = vmatmul.f32.gmra.mxu0 %v3202
        %v3204 = vpop.f32.mrf.mxu0
        %v3205 = vadd.f32 %v3156, %v3204
        %3206 = vdwg.mxu0
        %v3207 = vand.u32 %v1297, 4294901760
        %v3208 = vsub.f32 %v1297, %v3207
        %v3209 = vand.u32 %v3208, 4294901760
        %v3210 = vsub.f32 %v3208, %v3209
        %v3211 = vand.u32 %v3210, 4294901760
        %3212 = vmatpush.msra.mxu0 %v3211
        %v3213 = vand.u32 %v1294, 4294901760
        %v3214 = vsub.f32 %v1294, %v3213
        %v3215 = vand.u32 %v3214, 4294901760
        %v3216 = vsub.f32 %v3214, %v3215
        %v3217 = vand.u32 %v3216, 4294901760
        %3218 = vmatpush.msra.mxu0 %v3217
        %v3219 = vand.u32 %v1291, 4294901760
        %v3220 = vsub.f32 %v1291, %v3219
        %v3221 = vand.u32 %v3220, 4294901760
        %v3222 = vsub.f32 %v3220, %v3221
        %v3223 = vand.u32 %v3222, 4294901760
        %3224 = vmatpush.msra.mxu0 %v3223
        %v3225 = vand.u32 %v1288, 4294901760
        %v3226 = vsub.f32 %v1288, %v3225
        %v3227 = vand.u32 %v3226, 4294901760
        %v3228 = vsub.f32 %v3226, %v3227
        %v3229 = vand.u32 %v3228, 4294901760
        %3230 = vmatpush.msra.mxu0 %v3229
        %v3231 = vand.u32 %v1285, 4294901760
        %v3232 = vsub.f32 %v1285, %v3231
        %v3233 = vand.u32 %v3232, 4294901760
        %v3234 = vsub.f32 %v3232, %v3233
        %v3235 = vand.u32 %v3234, 4294901760
        %3236 = vmatpush.msra.mxu0 %v3235
        %v3237 = vand.u32 %v1282, 4294901760
        %v3238 = vsub.f32 %v1282, %v3237
        %v3239 = vand.u32 %v3238, 4294901760
        %v3240 = vsub.f32 %v3238, %v3239
        %v3241 = vand.u32 %v3240, 4294901760
        %3242 = vmatpush.msra.mxu0 %v3241
        %v3243 = vand.u32 %v1279, 4294901760
        %v3244 = vsub.f32 %v1279, %v3243
        %v3245 = vand.u32 %v3244, 4294901760
        %v3246 = vsub.f32 %v3244, %v3245
        %v3247 = vand.u32 %v3246, 4294901760
        %3248 = vmatpush.msra.mxu0 %v3247
        %v3249 = vand.u32 %v1276, 4294901760
        %v3250 = vsub.f32 %v1276, %v3249
        %v3251 = vand.u32 %v3250, 4294901760
        %v3252 = vsub.f32 %v3250, %v3251
        %v3253 = vand.u32 %v3252, 4294901760
        %3254 = vmatpush.msra.mxu0 %v3253
        %v3255 = vand.u32 %v1273, 4294901760
        %v3256 = vsub.f32 %v1273, %v3255
        %v3257 = vand.u32 %v3256, 4294901760
        %v3258 = vsub.f32 %v3256, %v3257
        %v3259 = vand.u32 %v3258, 4294901760
        %3260 = vmatpush.msra.mxu0 %v3259
        %v3261 = vand.u32 %v1270, 4294901760
        %v3262 = vsub.f32 %v1270, %v3261
        %v3263 = vand.u32 %v3262, 4294901760
        %v3264 = vsub.f32 %v3262, %v3263
        %v3265 = vand.u32 %v3264, 4294901760
        %3266 = vmatpush.msra.mxu0 %v3265
        %v3267 = vand.u32 %v1267, 4294901760
        %v3268 = vsub.f32 %v1267, %v3267
        %v3269 = vand.u32 %v3268, 4294901760
        %v3270 = vsub.f32 %v3268, %v3269
        %v3271 = vand.u32 %v3270, 4294901760
        %3272 = vmatpush.msra.mxu0 %v3271
        %v3273 = vand.u32 %v1264, 4294901760
        %v3274 = vsub.f32 %v1264, %v3273
        %v3275 = vand.u32 %v3274, 4294901760
        %v3276 = vsub.f32 %v3274, %v3275
        %v3277 = vand.u32 %v3276, 4294901760
        %3278 = vmatpush.msra.mxu0 %v3277
        %v3279 = vand.u32 %v1261, 4294901760
        %v3280 = vsub.f32 %v1261, %v3279
        %v3281 = vand.u32 %v3280, 4294901760
        %v3282 = vsub.f32 %v3280, %v3281
        %v3283 = vand.u32 %v3282, 4294901760
        %3284 = vmatpush.msra.mxu0 %v3283
        %v3285 = vand.u32 %v1258, 4294901760
        %v3286 = vsub.f32 %v1258, %v3285
        %v3287 = vand.u32 %v3286, 4294901760
        %v3288 = vsub.f32 %v3286, %v3287
        %v3289 = vand.u32 %v3288, 4294901760
        %3290 = vmatpush.msra.mxu0 %v3289
        %v3291 = vand.u32 %v1255, 4294901760
        %v3292 = vsub.f32 %v1255, %v3291
        %v3293 = vand.u32 %v3292, 4294901760
        %v3294 = vsub.f32 %v3292, %v3293
        %v3295 = vand.u32 %v3294, 4294901760
        %3296 = vmatpush.msra.mxu0 %v3295
        %v3297 = vand.u32 %v1252, 4294901760
        %v3298 = vsub.f32 %v1252, %v3297
        %v3299 = vand.u32 %v3298, 4294901760
        %v3300 = vsub.f32 %v3298, %v3299
        %v3301 = vand.u32 %v3300, 4294901760
        %3302 = vmatpush.msra.mxu0 %v3301
        %v3303 = vand.u32 %v1199, 4294901760
        %3304 = vmatmul.f32.gmra.mxu0 %v3303
        %v3305 = vpop.f32.mrf.mxu0
        %v3306 = vadd.f32 %v3197, %v3305
        %v3307 = vand.u32 %v1201, 4294901760
        %3308 = vmatmul.f32.gmra.mxu0 %v3307
        %v3309 = vpop.f32.mrf.mxu0
        %v3310 = vadd.f32 %v3205, %v3309
        %3311 = vdwg.mxu0
        %v3312 = vand.u32 %v1297, 4294901760
        %v3313 = vsub.f32 %v1297, %v3312
        %3314 = vmatpush.msra.mxu0 %v3313
        %v3315 = vand.u32 %v1294, 4294901760
        %v3316 = vsub.f32 %v1294, %v3315
        %3317 = vmatpush.msra.mxu0 %v3316
        %v3318 = vand.u32 %v1291, 4294901760
        %v3319 = vsub.f32 %v1291, %v3318
        %3320 = vmatpush.msra.mxu0 %v3319
        %v3321 = vand.u32 %v1288, 4294901760
        %v3322 = vsub.f32 %v1288, %v3321
        %3323 = vmatpush.msra.mxu0 %v3322
        %v3324 = vand.u32 %v1285, 4294901760
        %v3325 = vsub.f32 %v1285, %v3324
        %3326 = vmatpush.msra.mxu0 %v3325
        %v3327 = vand.u32 %v1282, 4294901760
        %v3328 = vsub.f32 %v1282, %v3327
        %3329 = vmatpush.msra.mxu0 %v3328
        %v3330 = vand.u32 %v1279, 4294901760
        %v3331 = vsub.f32 %v1279, %v3330
        %3332 = vmatpush.msra.mxu0 %v3331
        %v3333 = vand.u32 %v1276, 4294901760
        %v3334 = vsub.f32 %v1276, %v3333
        %3335 = vmatpush.msra.mxu0 %v3334
        %v3336 = vand.u32 %v1273, 4294901760
        %v3337 = vsub.f32 %v1273, %v3336
        %3338 = vmatpush.msra.mxu0 %v3337
        %v3339 = vand.u32 %v1270, 4294901760
        %v3340 = vsub.f32 %v1270, %v3339
        %3341 = vmatpush.msra.mxu0 %v3340
        %v3342 = vand.u32 %v1267, 4294901760
        %v3343 = vsub.f32 %v1267, %v3342
        %3344 = vmatpush.msra.mxu0 %v3343
        %v3345 = vand.u32 %v1264, 4294901760
        %v3346 = vsub.f32 %v1264, %v3345
        %3347 = vmatpush.msra.mxu0 %v3346
        %v3348 = vand.u32 %v1261, 4294901760
        %v3349 = vsub.f32 %v1261, %v3348
        %3350 = vmatpush.msra.mxu0 %v3349
        %v3351 = vand.u32 %v1258, 4294901760
        %v3352 = vsub.f32 %v1258, %v3351
        %3353 = vmatpush.msra.mxu0 %v3352
        %v3354 = vand.u32 %v1255, 4294901760
        %v3355 = vsub.f32 %v1255, %v3354
        %3356 = vmatpush.msra.mxu0 %v3355
        %v3357 = vand.u32 %v1252, 4294901760
        %v3358 = vsub.f32 %v1252, %v3357
        %3359 = vmatpush.msra.mxu0 %v3358
        %v3360 = vand.u32 %v1199, 4294901760
        %v3361 = vsub.f32 %v1199, %v3360
        %3362 = vmatmul.f32.gmra.mxu0 %v3361
        %v3363 = vpop.f32.mrf.mxu0
        %v3364 = vadd.f32 %v3306, %v3363
        %v3365 = vand.u32 %v1201, 4294901760
        %v3366 = vsub.f32 %v1201, %v3365
        %3367 = vmatmul.f32.gmra.mxu0 %v3366
        %v3368 = vpop.f32.mrf.mxu0
        %v3369 = vadd.f32 %v3310, %v3368
        %3370 = vdwg.mxu0
        %v3371 = vand.u32 %v1297, 4294901760
        %3372 = vmatpush.msra.mxu0 %v3371
        %v3373 = vand.u32 %v1294, 4294901760
        %3374 = vmatpush.msra.mxu0 %v3373
        %v3375 = vand.u32 %v1291, 4294901760
        %3376 = vmatpush.msra.mxu0 %v3375
        %v3377 = vand.u32 %v1288, 4294901760
        %3378 = vmatpush.msra.mxu0 %v3377
        %v3379 = vand.u32 %v1285, 4294901760
        %3380 = vmatpush.msra.mxu0 %v3379
        %v3381 = vand.u32 %v1282, 4294901760
        %3382 = vmatpush.msra.mxu0 %v3381
        %v3383 = vand.u32 %v1279, 4294901760
        %3384 = vmatpush.msra.mxu0 %v3383
        %v3385 = vand.u32 %v1276, 4294901760
        %3386 = vmatpush.msra.mxu0 %v3385
        %v3387 = vand.u32 %v1273, 4294901760
        %3388 = vmatpush.msra.mxu0 %v3387
        %v3389 = vand.u32 %v1270, 4294901760
        %3390 = vmatpush.msra.mxu0 %v3389
        %v3391 = vand.u32 %v1267, 4294901760
        %3392 = vmatpush.msra.mxu0 %v3391
        %v3393 = vand.u32 %v1264, 4294901760
        %3394 = vmatpush.msra.mxu0 %v3393
        %v3395 = vand.u32 %v1261, 4294901760
        %3396 = vmatpush.msra.mxu0 %v3395
        %v3397 = vand.u32 %v1258, 4294901760
        %3398 = vmatpush.msra.mxu0 %v3397
        %v3399 = vand.u32 %v1255, 4294901760
        %3400 = vmatpush.msra.mxu0 %v3399
        %v3401 = vand.u32 %v1252, 4294901760
        %3402 = vmatpush.msra.mxu0 %v3401
        %v3403 = vand.u32 %v1199, 4294901760
        %v3404 = vsub.f32 %v1199, %v3403
        %v3405 = vand.u32 %v3404, 4294901760
        %3406 = vmatmul.f32.gmra.mxu0 %v3405
        %v3407 = vpop.f32.mrf.mxu0
        %v3408 = vadd.f32 %v3364, %v3407
        %v3409 = vand.u32 %v1201, 4294901760
        %v3410 = vsub.f32 %v1201, %v3409
        %v3411 = vand.u32 %v3410, 4294901760
        %3412 = vmatmul.f32.gmra.mxu0 %v3411
        %v3413 = vpop.f32.mrf.mxu0
        %v3414 = vadd.f32 %v3369, %v3413
        %3415 = vdwg.mxu0
        %v3416 = vand.u32 %v1297, 4294901760
        %v3417 = vsub.f32 %v1297, %v3416
        %v3418 = vand.u32 %v3417, 4294901760
        %3419 = vmatpush.msra.mxu0 %v3418
        %v3420 = vand.u32 %v1294, 4294901760
        %v3421 = vsub.f32 %v1294, %v3420
        %v3422 = vand.u32 %v3421, 4294901760
        %3423 = vmatpush.msra.mxu0 %v3422
        %v3424 = vand.u32 %v1291, 4294901760
        %v3425 = vsub.f32 %v1291, %v3424
        %v3426 = vand.u32 %v3425, 4294901760
        %3427 = vmatpush.msra.mxu0 %v3426
        %v3428 = vand.u32 %v1288, 4294901760
        %v3429 = vsub.f32 %v1288, %v3428
        %v3430 = vand.u32 %v3429, 4294901760
        %3431 = vmatpush.msra.mxu0 %v3430
        %v3432 = vand.u32 %v1285, 4294901760
        %v3433 = vsub.f32 %v1285, %v3432
        %v3434 = vand.u32 %v3433, 4294901760
        %3435 = vmatpush.msra.mxu0 %v3434
        %v3436 = vand.u32 %v1282, 4294901760
        %v3437 = vsub.f32 %v1282, %v3436
        %v3438 = vand.u32 %v3437, 4294901760
        %3439 = vmatpush.msra.mxu0 %v3438
        %v3440 = vand.u32 %v1279, 4294901760
        %v3441 = vsub.f32 %v1279, %v3440
        %v3442 = vand.u32 %v3441, 4294901760
        %3443 = vmatpush.msra.mxu0 %v3442
        %v3444 = vand.u32 %v1276, 4294901760
        %v3445 = vsub.f32 %v1276, %v3444
        %v3446 = vand.u32 %v3445, 4294901760
        %3447 = vmatpush.msra.mxu0 %v3446
        %v3448 = vand.u32 %v1273, 4294901760
        %v3449 = vsub.f32 %v1273, %v3448
        %v3450 = vand.u32 %v3449, 4294901760
        %3451 = vmatpush.msra.mxu0 %v3450
        %v3452 = vand.u32 %v1270, 4294901760
        %v3453 = vsub.f32 %v1270, %v3452
        %v3454 = vand.u32 %v3453, 4294901760
        %3455 = vmatpush.msra.mxu0 %v3454
        %v3456 = vand.u32 %v1267, 4294901760
        %v3457 = vsub.f32 %v1267, %v3456
        %v3458 = vand.u32 %v3457, 4294901760
        %3459 = vmatpush.msra.mxu0 %v3458
        %v3460 = vand.u32 %v1264, 4294901760
        %v3461 = vsub.f32 %v1264, %v3460
        %v3462 = vand.u32 %v3461, 4294901760
        %3463 = vmatpush.msra.mxu0 %v3462
        %v3464 = vand.u32 %v1261, 4294901760
        %v3465 = vsub.f32 %v1261, %v3464
        %v3466 = vand.u32 %v3465, 4294901760
        %3467 = vmatpush.msra.mxu0 %v3466
        %v3468 = vand.u32 %v1258, 4294901760
        %v3469 = vsub.f32 %v1258, %v3468
        %v3470 = vand.u32 %v3469, 4294901760
        %3471 = vmatpush.msra.mxu0 %v3470
        %v3472 = vand.u32 %v1255, 4294901760
        %v3473 = vsub.f32 %v1255, %v3472
        %v3474 = vand.u32 %v3473, 4294901760
        %3475 = vmatpush.msra.mxu0 %v3474
        %v3476 = vand.u32 %v1252, 4294901760
        %v3477 = vsub.f32 %v1252, %v3476
        %v3478 = vand.u32 %v3477, 4294901760
        %3479 = vmatpush.msra.mxu0 %v3478
        %v3480 = vand.u32 %v1199, 4294901760
        %3481 = vmatmul.f32.gmra.mxu0 %v3480
        %v3482 = vpop.f32.mrf.mxu0
        %v3483 = vadd.f32 %v3408, %v3482
        %v3484 = vand.u32 %v1201, 4294901760
        %3485 = vmatmul.f32.gmra.mxu0 %v3484
        %v3486 = vpop.f32.mrf.mxu0
        %v3487 = vadd.f32 %v3414, %v3486
        %3488 = vdwg.mxu0
        %v3489 = vand.u32 %v1297, 4294901760
        %3490 = vmatpush.msra.mxu0 %v3489
        %v3491 = vand.u32 %v1294, 4294901760
        %3492 = vmatpush.msra.mxu0 %v3491
        %v3493 = vand.u32 %v1291, 4294901760
        %3494 = vmatpush.msra.mxu0 %v3493
        %v3495 = vand.u32 %v1288, 4294901760
        %3496 = vmatpush.msra.mxu0 %v3495
        %v3497 = vand.u32 %v1285, 4294901760
        %3498 = vmatpush.msra.mxu0 %v3497
        %v3499 = vand.u32 %v1282, 4294901760
        %3500 = vmatpush.msra.mxu0 %v3499
        %v3501 = vand.u32 %v1279, 4294901760
        %3502 = vmatpush.msra.mxu0 %v3501
        %v3503 = vand.u32 %v1276, 4294901760
        %3504 = vmatpush.msra.mxu0 %v3503
        %v3505 = vand.u32 %v1273, 4294901760
        %3506 = vmatpush.msra.mxu0 %v3505
        %v3507 = vand.u32 %v1270, 4294901760
        %3508 = vmatpush.msra.mxu0 %v3507
        %v3509 = vand.u32 %v1267, 4294901760
        %3510 = vmatpush.msra.mxu0 %v3509
        %v3511 = vand.u32 %v1264, 4294901760
        %3512 = vmatpush.msra.mxu0 %v3511
        %v3513 = vand.u32 %v1261, 4294901760
        %3514 = vmatpush.msra.mxu0 %v3513
        %v3515 = vand.u32 %v1258, 4294901760
        %3516 = vmatpush.msra.mxu0 %v3515
        %v3517 = vand.u32 %v1255, 4294901760
        %3518 = vmatpush.msra.mxu0 %v3517
        %v3519 = vand.u32 %v1252, 4294901760
        %3520 = vmatpush.msra.mxu0 %v3519
        %v3521 = vand.u32 %v1199, 4294901760
        %3522 = vmatmul.f32.gmra.mxu0 %v3521
        %v3523 = vpop.f32.mrf.mxu0
        %v3524 = vadd.f32 %v3483, %v3523
        %v3525 = vand.u32 %v1201, 4294901760
        %3526 = vmatmul.f32.gmra.mxu0 %v3525
        %v3527 = vpop.f32.mrf.mxu0
        %v3528 = vadd.f32 %v3487, %v3527
        %3529 = vdwg.mxu0
        %vm3532 = vcmask 1040384
        %v3533 = vrot.slane %v2036, 7
        %v3534 = vrot.slane %v2040, 7
        %v3535 = vsel %vm3532, %v3533, %v3534
        %v3538 = vsel %vm3532, 0.0, %v3533
        %v3539 = vadd.f32 %v2780, %v3538
        %v3540 = vadd.f32 %v2784, %v3535
        %vm3543 = vcmask 1046528
        %v3544 = vrot.slane %v3524, 1
        %v3545 = vrot.slane %v3528, 1
        %v3546 = vsel %vm3543, %v3544, %v3545
        %v3549 = vsel %vm3543, %v3545, 0.0
        %v3550 = vadd.f32 %v3539, %v3546
        %v3551 = vadd.f32 %v3540, %v3549
        %s3552 = sld [smem:[#allocation2]]
        %v3553 = vstv %s3552
        %v3554 = vadd.f32 %v3550, %v3553
        %v3555 = vadd.f32 %v3551, %v3553
        %v3556 = vxor.u32 %v3554, 2147483648
        %v3557 = vxor.u32 %v3555, 2147483648
        %v3558 = vmul.f32 %v3556, 1.442695
        %v3559 = vpow.pop %v3558
        %v3560 = vmul.f32 %v3557, 1.442695
        %v3561 = vpow.pop %v3560
        %v3562 = vadd.f32 %v3559, 1.0
        %v3563 = vadd.f32 %v3561, 1.0
        %v3564 = vrcp.pop %v3562
        %v3565 = vmul.f32 %v3562, %v3564
        %v3566 = vsub.f32 1.0, %v3565
        %v3567 = vmul.f32 %v3564, %v3566
        %v3568 = vadd.f32 %v3564, %v3567
        %vm3569 = vweird.f32 %v3562
        %vm3570 = vweird.f32 %v3564
        %vm3571 = vmor %vm3569, %vm3570
        %v3572 = vsel %vm3571, %v3564, %v3568
        %v3573 = vand.u32 2147483647, %v3562
        %vm3574 = vcmp.eq.f32.partialorder %v3573, 8.507059e+37
        %v3575 = vand.u32 %v3562, 2147483648
        %v3576 = vor.u32 1.1754944e-38, %v3575
        %v3577 = vsel %vm3574, %v3576, %v3572
        %v3578 = vmul.f32 1.0, %v3577
        %v3579 = vrcp.pop %v3563
        %v3580 = vmul.f32 %v3563, %v3579
        %v3581 = vsub.f32 1.0, %v3580
        %v3582 = vmul.f32 %v3579, %v3581
        %v3583 = vadd.f32 %v3579, %v3582
        %vm3584 = vweird.f32 %v3563
        %vm3585 = vweird.f32 %v3579
        %vm3586 = vmor %vm3584, %vm3585
        %v3587 = vsel %vm3586, %v3579, %v3583
        %v3588 = vand.u32 2147483647, %v3563
        %vm3589 = vcmp.eq.f32.partialorder %v3588, 8.507059e+37
        %v3590 = vand.u32 %v3563, 2147483648
        %v3591 = vor.u32 1.1754944e-38, %v3590
        %v3592 = vsel %vm3589, %v3591, %v3587
        %v3593 = vmul.f32 1.0, %v3592
        %v3594 = vld [vmem:[%s342] sm:$0xff]
        %v3595 = vld [vmem:[%s342 + $0x8] sm:$0xff]
        %v3596 = vmul.f32 %v3594, %v3578
        %v3597 = vmul.f32 %v3595, %v3593
        %v3598 = vsub.f32 1.0, %v3578
        %v3599 = vsub.f32 1.0, %v3593
        %v3600 = vld [vmem:[%s352] sm:$0xff]
        %v3601 = vld [vmem:[%s352 + $0x8] sm:$0xff]
        %v3602 = vmul.f32 %v3598, %v3600
        %v3603 = vmul.f32 %v3599, %v3601
        %v3604 = vadd.f32 %v3596, %v3602
        %v3605 = vadd.f32 %v3597, %v3603
        %3606 = vst [vmem:[%s413] sm:$0xff] %v3604
        %3607 = vst [vmem:[%s413 + $0x8] sm:$0xff] %v3605
        %s3608 = sand.u32 %s199, 1
        %s3609 = scalar_lea.sflag [#allocation5], %s3608
        %s3610 = sand.u32 %s199, 1
        %s3611 = smul.addr %s3610, 16
        %s3612 = scalar_lea.vmem [#allocation12], %s3611
        // Predicated region
        $region69: #{tpu_custom_call.1} parent=47 // pred_check
          %p3613 = pneg %p209
        $region70: #{tpu_custom_call.1} parent=47 // pred_check_branch
          %3615 = sbr.rel (%p3613) target = $region72
        $region71: #{tpu_custom_call.1} parent=47 // pred_region
          %3617 = vsyncadd %s3609, 0
          %s3618 = smul.addr %s29, 2
          %s3619 = smul.addr %s3618, 8
          %s3620 = scalar_lea.hbm %s7, %s3619
          %s3621 = sshll.u32 %s3612, 4
          %s3622 = int_to_ptr.vmem [resolvable:$true] %s3621
          %s3623 = sshll.u32 %s3620, 4
          %s3624 = int_to_ptr.hbm [resolvable:$true] %s3623
          %3629 = dma.vmem_to_hbm [thread:$0]  %s3622, 256, %s3624, %s3609, 128, 128, 8
        $region72: #{tpu_custom_call.1} parent=47 // pred_fallthru
          _
      $region48: #{tpu_custom_call.1} parent=5 // pred_fallthru
        _
      %p3630 = scmp.le.s32.totalorder 2, %s24
      // Predicated region
      $region73: #{tpu_custom_call.1} parent=5 // pred_check
        %p3631 = pneg %p3630
      $region74: #{tpu_custom_call.1} parent=5 // pred_check_branch
        %3633 = sbr.rel (%p3631) target = $region76
      $region75: #{tpu_custom_call.1} parent=5 // pred_region
        %s3634 = ssub.s32 %s24, 2
        // Predicated region
        $region77: #{tpu_custom_call.1} parent=75 // pred_check
          %p3635 = pneg %p215
        $region78: #{tpu_custom_call.1} parent=75 // pred_check_branch
          %3637 = sbr.rel (%p3635) target = $region80
        $region79: #{tpu_custom_call.1} parent=75 // pred_region
          %s3638 = sand.u32 %s200, 1
          %s3639 = scalar_lea.sflag [#allocation5], %s3638
          %s3640 = sand.u32 %s200, 1
          %s3641 = smul.addr %s3640, 16
          %s3642 = scalar_lea.vmem [#allocation12], %s3641
          %3644 = dma.done %s3639, 256
        $region80: #{tpu_custom_call.1} parent=75 // pred_fallthru
          _
      $region76: #{tpu_custom_call.1} parent=5 // pred_fallthru
        _
    $region6: #{tpu_custom_call.1} parent=1 // loop_footer
      %s28 = sadd.s32 1, %s24
    $region7: #{tpu_custom_call.1} parent=1 // loop_footer_branch
      %23 = sbr.rel target = $region3
    $region8: #{tpu_custom_call.1} parent=1 // loop_exit
      _
    %3645 = vsyncpa [#allocation4], 1
    %s3646 = scalar_lea.sflag [#allocation4], 1
    %3647 = vsyncpa %s3646, 1
    %3648 = vsyncpa [#allocation7], 1
    %s3649 = scalar_lea.sflag [#allocation7], 1
    %3650 = vsyncpa %s3649, 1
    %3651 = vsyncpa [#allocation10], 1
    %3652 = vsyncpa [#allocation5], 1
    %s3653 = scalar_lea.sflag [#allocation5], 1
    %3654 = vsyncpa %s3653, 1

</llo_original>
